<compile_context>
chip_gen: v7x
topology: tpu7x:2x2x1
jax: 0.10.0
libtpu: 0.0.40
codegen_flags: <defaults>
</compile_context>

<pallas_src>
import jax
import jax.numpy as jnp
from jax import lax
from jax.experimental import pallas as pl
from jax.experimental.pallas import tpu as pltpu

# ---- small-shape constants (real module uses 25 / 64 / 100 / 200) -----------
NUM_BINS = 8
CHANNELS = NUM_BINS
HIDDEN_DIM = 32
OUTPUT_DIM = NUM_BINS
BATCH_SIZE = 4
SEQUENCE_LENGTH = 16

LANE = 128  # padded lane width; equals BATCH_SIZE * HIDDEN_DIM for the toy config

_VMEM = pl.BlockSpec(memory_space=pltpu.MemorySpace.VMEM)


# ---------------------------------------------------------------------------
# One SSM layer: fused U/B projection + powers-based (non-serial) scan.
# x_tm: (T, K) value;  wub_ref: (K, 2*BH) bf16;  bub_ref: (1, 2*BH) f32;
# pow_ref: (T, BH, BH) bf16 with pow_ref[k] = kron(I_B, (A^T)^k);
# s_ref: (T, T*T) f32 causal shift-selector;  y_sc: (T*T, BH) f32 scratch.
# ---------------------------------------------------------------------------
def _ssm_powers_layer(x_tm, wub_ref, bub_ref, pow_ref, s_ref, y_sc):
    T = x_tm.shape[0]
    BH = pow_ref.shape[-1]

    # Fused U/B projection: one bf16 MXU matmul; halves split on a vreg boundary.
    proj = jnp.dot(x_tm.astype(jnp.bfloat16), wub_ref[...],
                   preferred_element_type=jnp.float32) + bub_ref[...]
    u = proj[:, :BH]
    g = jax.nn.sigmoid(proj[:, BH:]) * u          # f32 gate; stays a value in vregs
    g_bf = g.astype(jnp.bfloat16)

    # T INDEPENDENT power matmuls Y_k = g @ kron(I_B, (A^T)^k).
    # No serial chain between k's; stores are sublane-aligned full-width vst's.
    for k in range(T):
        y_sc[pl.ds(k * T, T), :] = jnp.dot(
            g_bf, pow_ref[k], preferred_element_type=jnp.float32)

    # Causal combine: H[t] = sum_{k<=t} Y_k[t-k]  ==  one (T, T*T)@(T*T, BH)
    # matmul against the exact 0/1 selector S (kept f32 for accuracy).
    return jnp.dot(s_ref[...], y_sc[...], preferred_element_type=jnp.float32)


def _fused_kernel(x_ref, wub1_ref, bub1_ref, pow1_ref,
                  wub2_ref, bub2_ref, pow2_ref, s_ref, w3_ref, b3_ref,
                  out_ref, y_sc):
    h1 = _ssm_powers_layer(x_ref[...], wub1_ref, bub1_ref, pow1_ref, s_ref, y_sc)
    h2 = _ssm_powers_layer(h1, wub2_ref, bub2_ref, pow2_ref, s_ref, y_sc)
    # Final Linear; w3/b3 are N-padded to 128 lanes -> unmasked full-width store.
    out_ref[...] = jnp.dot(h2.astype(jnp.bfloat16), w3_ref[...],
                           preferred_element_type=jnp.float32) + b3_ref[...]


# ---------------------------------------------------------------------------
# Trace-time weight packing: block-diagonal kron(I_B, W^T), fused U/B concat,
# precomputed block-diag powers of A^T, causal shift-selector, lane padding.
# ---------------------------------------------------------------------------
def _pack_params(p, batch, seq_len):
    eye_b = jnp.eye(batch, dtype=jnp.float32)

    def bd(w):     # torch (out, in) weight -> block-diag of W^T: (B*in, B*out)
        return jnp.kron(eye_b, w.T)

    def tile_bias(b):   # (out,) -> (1, B*out), replicated per batch block
        return jnp.tile(b, batch)[None, :]

    def pad_rows(m, n):
        return jnp.pad(m, ((0, n - m.shape[0]), (0, 0)))

    def pad_cols(m, n):
        return jnp.pad(m, ((0, 0), (0, n - m.shape[1])))

    def proj(wu, bu, wb, bb):
        w = jnp.concatenate([bd(wu), bd(wb)], axis=1)                 # (B*in, 2*B*H)
        b = jnp.concatenate([tile_bias(bu), tile_bias(bb)], axis=1)   # (1, 2*B*H)
        return w, b

    def powers(a):  # (T, B*H, B*H): kron(I_B, (A^T)^k), computed in f32, cast once
        mats, m = [], jnp.eye(a.shape[0], dtype=jnp.float32)
        for _ in range(seq_len):
            mats.append(jnp.kron(eye_b, m))
            m = m @ a.T
        return jnp.stack(mats, axis=0).astype(jnp.bfloat16)

    wub1, bub1 = proj(p["wu1"], p["bu1"], p["wb1"], p["bb1"])
    wub2, bub2 = proj(p["wu2"], p["bu2"], p["wb2"], p["bb2"])
    # 0/1 causal shift-selector: S[:, k*T:(k+1)*T] = shift-down-by-k identity.
    s_stack = jnp.concatenate(
        [jnp.eye(seq_len, k=-k, dtype=jnp.float32) for k in range(seq_len)], axis=1)

    return {
        "wub1": pad_rows(wub1, LANE).astype(jnp.bfloat16),   # K padded to match padded x
        "bub1": bub1,
        "pow1": powers(p["a1"]),
        "wub2": wub2.astype(jnp.bfloat16),
        "bub2": bub2,
        "pow2": powers(p["a2"]),
        "s": s_stack,
        "w3": pad_cols(bd(p["w3"]), LANE).astype(jnp.bfloat16),   # N padded -> lane-dense out
        "b3": pad_cols(tile_bias(p["b3"]), LANE),
    }


@jax.jit
def ssm_synaptic_delay(x, p):
    B, T, C = x.shape
    H = p["a1"].shape[0]
    OUT = p["w3"].shape[0]
    pk = _pack_params(p, B, T)

    # (B, T, C) -> time-major lane-dense (T, B*C), zero-padded to 128 lanes.
    x_tm = jnp.transpose(x, (1, 0, 2)).reshape(T, B * C)
    x_tm = jnp.pad(x_tm, ((0, 0), (0, LANE - B * C)))

    out_tm = pl.pallas_call(
        _fused_kernel,
        out_shape=jax.ShapeDtypeStruct((T, LANE), jnp.float32),
        in_specs=[_VMEM] * 10,
        out_specs=_VMEM,
        scratch_shapes=[
            pltpu.VMEM((T * T, B * H), jnp.float32),  # stacked Y_k, reused per layer
        ],
    )(x_tm, pk["wub1"], pk["bub1"], pk["pow1"],
      pk["wub2"], pk["bub2"], pk["pow2"], pk["s"], pk["w3"], pk["b3"])

    # drop lane padding, (T, B*OUT) -> (B, T, OUT)
    return jnp.transpose(out_tm[:, :B * OUT].reshape(T, B, OUT), (1, 0, 2))


# ---------------------------------------------------------------------------
# Parameter init (PyTorch nn.Linear default: U(-1/sqrt(fan_in), 1/sqrt(fan_in)))
# ---------------------------------------------------------------------------
def _linear_params(key, fan_in, fan_out, bias=True):
    kw, kb = jax.random.split(key)
    bound = 1.0 / jnp.sqrt(fan_in)
    w = jax.random.uniform(kw, (fan_out, fan_in), jnp.float32, -bound, bound)
    if not bias:
        return w, None
    b = jax.random.uniform(kb, (fan_out,), jnp.float32, -bound, bound)
    return w, b


def init_params(key):
    ks = jax.random.split(key, 7)
    p = {}
    p["wu1"], p["bu1"] = _linear_params(ks[0], CHANNELS, HIDDEN_DIM)
    p["wb1"], p["bb1"] = _linear_params(ks[1], CHANNELS, HIDDEN_DIM)
    p["a1"], _ = _linear_params(ks[2], HIDDEN_DIM, HIDDEN_DIM, bias=False)
    p["wu2"], p["bu2"] = _linear_params(ks[3], HIDDEN_DIM, HIDDEN_DIM)
    p["wb2"], p["bb2"] = _linear_params(ks[4], HIDDEN_DIM, HIDDEN_DIM)
    p["a2"], _ = _linear_params(ks[5], HIDDEN_DIM, HIDDEN_DIM, bias=False)
    p["w3"], p["b3"] = _linear_params(ks[6], HIDDEN_DIM, OUTPUT_DIM)
    return p


# ---------------------------------------------------------------------------
# Pure-JAX f32 reference (original weight layout, serial scan) for the check
# ---------------------------------------------------------------------------
def _ref_layer(x, wu, bu, wb, bb, a):
    u = x @ wu.T + bu
    bg = jax.nn.sigmoid(x @ wb.T + bb)
    g = bg * u

    def step(h, g_t):
        h = h @ a.T + g_t
        return h, h

    h0 = jnp.zeros((x.shape[0], wu.shape[0]), jnp.float32)
    _, hs = lax.scan(step, h0, jnp.swapaxes(g, 0, 1))
    return jnp.swapaxes(hs, 0, 1)


def _ref_forward(x, p):
    h1 = _ref_layer(x, p["wu1"], p["bu1"], p["wb1"], p["bb1"], p["a1"])
    h2 = _ref_layer(h1, p["wu2"], p["bu2"], p["wb2"], p["bb2"], p["a2"])
    return h2 @ p["w3"].T + p["b3"]


if __name__ == "__main__":
    key = jax.random.PRNGKey(0)
    kx, kp = jax.random.split(key)
    x = jax.random.normal(kx, (BATCH_SIZE, SEQUENCE_LENGTH, CHANNELS), jnp.float32)
    params = init_params(kp)

    out = ssm_synaptic_delay(x, params)
    jax.block_until_ready(out)

    ref = _ref_forward(x, params)
    assert out.shape == (BATCH_SIZE, SEQUENCE_LENGTH, OUTPUT_DIM)
    # Kernel uses bf16 MXU operands (per perf review); tolerance loosened vs the
    # f32 reference.  Structural bugs produce O(1) errors, so the check is still
    # meaningful.
    assert jnp.allclose(out, ref, atol=1e-1, rtol=1e-1), \
        float(jnp.max(jnp.abs(out - ref)))

    print("KERNEL_OK")
</pallas_src>

<mosaic_0001>
module attributes {stable_mosaic.version = 11 : i64} {
  func.func @_fused_kernel(%arg0: memref<16x128xf32, #tpu.memory_space<vmem>>, %arg1: memref<128x256xbf16, #tpu.memory_space<vmem>>, %arg2: memref<1x256xf32, #tpu.memory_space<vmem>>, %arg3: memref<16x128x128xbf16, #tpu.memory_space<vmem>>, %arg4: memref<128x256xbf16, #tpu.memory_space<vmem>>, %arg5: memref<1x256xf32, #tpu.memory_space<vmem>>, %arg6: memref<16x128x128xbf16, #tpu.memory_space<vmem>>, %arg7: memref<16x256xf32, #tpu.memory_space<vmem>>, %arg8: memref<128x128xbf16, #tpu.memory_space<vmem>>, %arg9: memref<1x128xf32, #tpu.memory_space<vmem>>, %arg10: memref<16x128xf32, #tpu.memory_space<vmem>>, %arg11: memref<256x128xf32, #tpu.memory_space<vmem>>) attributes {dimension_semantics = [], scalar_prefetch = 0 : i64, scratch_operands = 1 : i64, tpu.core_type = #tpu.core_type<tc>} {
    %c0 = arith.constant 0 : index
    %c0_0 = arith.constant 0 : index
    %0 = vector.load %arg0[%c0, %c0_0] : memref<16x128xf32, #tpu.memory_space<vmem>>, vector<16x128xf32>
    %1 = arith.truncf %0 : vector<16x128xf32> to vector<16x128xbf16>
    %c0_1 = arith.constant 0 : index
    %c0_2 = arith.constant 0 : index
    %2 = vector.load %arg1[%c0_1, %c0_2] : memref<128x256xbf16, #tpu.memory_space<vmem>>, vector<128x256xbf16>
    %cst = arith.constant dense<0.000000e+00> : vector<16x256xf32>
    %3 = tpu.matmul %1, %2, %cst {dimension_numbers = #tpu.dot_dimension_numbers<[1], [0], [0], [1], [0, 0, 1, 1], [], []>} : vector<16x128xbf16>, vector<128x256xbf16>, vector<16x256xf32> -> vector<16x256xf32>
    %c0_3 = arith.constant 0 : index
    %c0_4 = arith.constant 0 : index
    %4 = vector.load %arg2[%c0_3, %c0_4] : memref<1x256xf32, #tpu.memory_space<vmem>>, vector<1x256xf32>
    %5 = vector.broadcast %4 : vector<1x256xf32> to vector<16x256xf32>
    %6 = arith.addf %3, %5 : vector<16x256xf32>
    %7 = vector.extract_strided_slice %6 {offsets = [0, 0], sizes = [16, 128], strides = [1, 1]} : vector<16x256xf32> to vector<16x128xf32>
    %8 = vector.extract_strided_slice %6 {offsets = [0, 128], sizes = [16, 128], strides = [1, 1]} : vector<16x256xf32> to vector<16x128xf32>
    %9 = arith.negf %8 : vector<16x128xf32>
    %10 = math.exp %9 : vector<16x128xf32>
    %cst_5 = arith.constant 1.000000e+00 : f32
    %11 = vector.broadcast %cst_5 : f32 to vector<16x128xf32>
    %12 = arith.addf %11, %10 : vector<16x128xf32>
    %13 = arith.divf %11, %12 : vector<16x128xf32>
    %14 = arith.mulf %13, %7 : vector<16x128xf32>
    %15 = arith.truncf %14 : vector<16x128xf32> to vector<16x128xbf16>
    %c0_6 = arith.constant 0 : index
    %c0_7 = arith.constant 0 : index
    %c0_8 = arith.constant 0 : index
    %16 = vector.load %arg3[%c0_6, %c0_7, %c0_8] : memref<16x128x128xbf16, #tpu.memory_space<vmem>>, vector<1x128x128xbf16>
    %17 = vector.shape_cast %16 : vector<1x128x128xbf16> to vector<128x128xbf16>
    %cst_9 = arith.constant dense<0.000000e+00> : vector<16x128xf32>
    %18 = tpu.matmul %15, %17, %cst_9 {dimension_numbers = #tpu.dot_dimension_numbers<[1], [0], [0], [1], [0, 0, 1, 1], [], []>} : vector<16x128xbf16>, vector<128x128xbf16>, vector<16x128xf32> -> vector<16x128xf32>
    %c0_10 = arith.constant 0 : index
    %c0_11 = arith.constant 0 : index
    %19 = vector.load %arg11[%c0_10, %c0_11] : memref<256x128xf32, #tpu.memory_space<vmem>>, vector<16x128xf32>
    tpu.vector_store %arg11[%c0_10, %c0_11], %18 {strides = array<i32>} : memref<256x128xf32, #tpu.memory_space<vmem>>, vector<16x128xf32>,
    %c1 = arith.constant 1 : index
    %c0_12 = arith.constant 0 : index
    %c0_13 = arith.constant 0 : index
    %20 = vector.load %arg3[%c1, %c0_12, %c0_13] : memref<16x128x128xbf16, #tpu.memory_space<vmem>>, vector<1x128x128xbf16>
    %21 = vector.shape_cast %20 : vector<1x128x128xbf16> to vector<128x128xbf16>
    %cst_14 = arith.constant dense<0.000000e+00> : vector<16x128xf32>
    %22 = tpu.matmul %15, %21, %cst_14 {dimension_numbers = #tpu.dot_dimension_numbers<[1], [0], [0], [1], [0, 0, 1, 1], [], []>} : vector<16x128xbf16>, vector<128x128xbf16>, vector<16x128xf32> -> vector<16x128xf32>
    %c16 = arith.constant 16 : index
    %c0_15 = arith.constant 0 : index
    %23 = vector.load %arg11[%c16, %c0_15] : memref<256x128xf32, #tpu.memory_space<vmem>>, vector<16x128xf32>
    tpu.vector_store %arg11[%c16, %c0_15], %22 {strides = array<i32>} : memref<256x128xf32, #tpu.memory_space<vmem>>, vector<16x128xf32>,
    %c2 = arith.constant 2 : index
    %c0_16 = arith.constant 0 : index
    %c0_17 = arith.constant 0 : index
    %24 = vector.load %arg3[%c2, %c0_16, %c0_17] : memref<16x128x128xbf16, #tpu.memory_space<vmem>>, vector<1x128x128xbf16>
    %25 = vector.shape_cast %24 : vector<1x128x128xbf16> to vector<128x128xbf16>
    %cst_18 = arith.constant dense<0.000000e+00> : vector<16x128xf32>
    %26 = tpu.matmul %15, %25, %cst_18 {dimension_numbers = #tpu.dot_dimension_numbers<[1], [0], [0], [1], [0, 0, 1, 1], [], []>} : vector<16x128xbf16>, vector<128x128xbf16>, vector<16x128xf32> -> vector<16x128xf32>
    %c32 = arith.constant 32 : index
    %c0_19 = arith.constant 0 : index
    %27 = vector.load %arg11[%c32, %c0_19] : memref<256x128xf32, #tpu.memory_space<vmem>>, vector<16x128xf32>
    tpu.vector_store %arg11[%c32, %c0_19], %26 {strides = array<i32>} : memref<256x128xf32, #tpu.memory_space<vmem>>, vector<16x128xf32>,
    %c3 = arith.constant 3 : index
    %c0_20 = arith.constant 0 : index
    %c0_21 = arith.constant 0 : index
    %28 = vector.load %arg3[%c3, %c0_20, %c0_21] : memref<16x128x128xbf16, #tpu.memory_space<vmem>>, vector<1x128x128xbf16>
    %29 = vector.shape_cast %28 : vector<1x128x128xbf16> to vector<128x128xbf16>
    %cst_22 = arith.constant dense<0.000000e+00> : vector<16x128xf32>
    %30 = tpu.matmul %15, %29, %cst_22 {dimension_numbers = #tpu.dot_dimension_numbers<[1], [0], [0], [1], [0, 0, 1, 1], [], []>} : vector<16x128xbf16>, vector<128x128xbf16>, vector<16x128xf32> -> vector<16x128xf32>
    %c48 = arith.constant 48 : index
    %c0_23 = arith.constant 0 : index
    %31 = vector.load %arg11[%c48, %c0_23] : memref<256x128xf32, #tpu.memory_space<vmem>>, vector<16x128xf32>
    tpu.vector_store %arg11[%c48, %c0_23], %30 {strides = array<i32>} : memref<256x128xf32, #tpu.memory_space<vmem>>, vector<16x128xf32>,
    %c4 = arith.constant 4 : index
    %c0_24 = arith.constant 0 : index
    %c0_25 = arith.constant 0 : index
    %32 = vector.load %arg3[%c4, %c0_24, %c0_25] : memref<16x128x128xbf16, #tpu.memory_space<vmem>>, vector<1x128x128xbf16>
    %33 = vector.shape_cast %32 : vector<1x128x128xbf16> to vector<128x128xbf16>
    %cst_26 = arith.constant dense<0.000000e+00> : vector<16x128xf32>
    %34 = tpu.matmul %15, %33, %cst_26 {dimension_numbers = #tpu.dot_dimension_numbers<[1], [0], [0], [1], [0, 0, 1, 1], [], []>} : vector<16x128xbf16>, vector<128x128xbf16>, vector<16x128xf32> -> vector<16x128xf32>
    %c64 = arith.constant 64 : index
    %c0_27 = arith.constant 0 : index
    %35 = vector.load %arg11[%c64, %c0_27] : memref<256x128xf32, #tpu.memory_space<vmem>>, vector<16x128xf32>
    tpu.vector_store %arg11[%c64, %c0_27], %34 {strides = array<i32>} : memref<256x128xf32, #tpu.memory_space<vmem>>, vector<16x128xf32>,
    %c5 = arith.constant 5 : index
    %c0_28 = arith.constant 0 : index
    %c0_29 = arith.constant 0 : index
    %36 = vector.load %arg3[%c5, %c0_28, %c0_29] : memref<16x128x128xbf16, #tpu.memory_space<vmem>>, vector<1x128x128xbf16>
    %37 = vector.shape_cast %36 : vector<1x128x128xbf16> to vector<128x128xbf16>
    %cst_30 = arith.constant dense<0.000000e+00> : vector<16x128xf32>
    %38 = tpu.matmul %15, %37, %cst_30 {dimension_numbers = #tpu.dot_dimension_numbers<[1], [0], [0], [1], [0, 0, 1, 1], [], []>} : vector<16x128xbf16>, vector<128x128xbf16>, vector<16x128xf32> -> vector<16x128xf32>
    %c80 = arith.constant 80 : index
    %c0_31 = arith.constant 0 : index
    %39 = vector.load %arg11[%c80, %c0_31] : memref<256x128xf32, #tpu.memory_space<vmem>>, vector<16x128xf32>
    tpu.vector_store %arg11[%c80, %c0_31], %38 {strides = array<i32>} : memref<256x128xf32, #tpu.memory_space<vmem>>, vector<16x128xf32>,
    %c6 = arith.constant 6 : index
    %c0_32 = arith.constant 0 : index
    %c0_33 = arith.constant 0 : index
    %40 = vector.load %arg3[%c6, %c0_32, %c0_33] : memref<16x128x128xbf16, #tpu.memory_space<vmem>>, vector<1x128x128xbf16>
    %41 = vector.shape_cast %40 : vector<1x128x128xbf16> to vector<128x128xbf16>
    %cst_34 = arith.constant dense<0.000000e+00> : vector<16x128xf32>
    %42 = tpu.matmul %15, %41, %cst_34 {dimension_numbers = #tpu.dot_dimension_numbers<[1], [0], [0], [1], [0, 0, 1, 1], [], []>} : vector<16x128xbf16>, vector<128x128xbf16>, vector<16x128xf32> -> vector<16x128xf32>
    %c96 = arith.constant 96 : index
    %c0_35 = arith.constant 0 : index
    %43 = vector.load %arg11[%c96, %c0_35] : memref<256x128xf32, #tpu.memory_space<vmem>>, vector<16x128xf32>
    tpu.vector_store %arg11[%c96, %c0_35], %42 {strides = array<i32>} : memref<256x128xf32, #tpu.memory_space<vmem>>, vector<16x128xf32>,
    %c7 = arith.constant 7 : index
    %c0_36 = arith.constant 0 : index
    %c0_37 = arith.constant 0 : index
    %44 = vector.load %arg3[%c7, %c0_36, %c0_37] : memref<16x128x128xbf16, #tpu.memory_space<vmem>>, vector<1x128x128xbf16>
    %45 = vector.shape_cast %44 : vector<1x128x128xbf16> to vector<128x128xbf16>
    %cst_38 = arith.constant dense<0.000000e+00> : vector<16x128xf32>
    %46 = tpu.matmul %15, %45, %cst_38 {dimension_numbers = #tpu.dot_dimension_numbers<[1], [0], [0], [1], [0, 0, 1, 1], [], []>} : vector<16x128xbf16>, vector<128x128xbf16>, vector<16x128xf32> -> vector<16x128xf32>
    %c112 = arith.constant 112 : index
    %c0_39 = arith.constant 0 : index
    %47 = vector.load %arg11[%c112, %c0_39] : memref<256x128xf32, #tpu.memory_space<vmem>>, vector<16x128xf32>
    tpu.vector_store %arg11[%c112, %c0_39], %46 {strides = array<i32>} : memref<256x128xf32, #tpu.memory_space<vmem>>, vector<16x128xf32>,
    %c8 = arith.constant 8 : index
    %c0_40 = arith.constant 0 : index
    %c0_41 = arith.constant 0 : index
    %48 = vector.load %arg3[%c8, %c0_40, %c0_41] : memref<16x128x128xbf16, #tpu.memory_space<vmem>>, vector<1x128x128xbf16>
    %49 = vector.shape_cast %48 : vector<1x128x128xbf16> to vector<128x128xbf16>
    %cst_42 = arith.constant dense<0.000000e+00> : vector<16x128xf32>
    %50 = tpu.matmul %15, %49, %cst_42 {dimension_numbers = #tpu.dot_dimension_numbers<[1], [0], [0], [1], [0, 0, 1, 1], [], []>} : vector<16x128xbf16>, vector<128x128xbf16>, vector<16x128xf32> -> vector<16x128xf32>
    %c128 = arith.constant 128 : index
    %c0_43 = arith.constant 0 : index
    %51 = vector.load %arg11[%c128, %c0_43] : memref<256x128xf32, #tpu.memory_space<vmem>>, vector<16x128xf32>
    tpu.vector_store %arg11[%c128, %c0_43], %50 {strides = array<i32>} : memref<256x128xf32, #tpu.memory_space<vmem>>, vector<16x128xf32>,
    %c9 = arith.constant 9 : index
    %c0_44 = arith.constant 0 : index
    %c0_45 = arith.constant 0 : index
    %52 = vector.load %arg3[%c9, %c0_44, %c0_45] : memref<16x128x128xbf16, #tpu.memory_space<vmem>>, vector<1x128x128xbf16>
    %53 = vector.shape_cast %52 : vector<1x128x128xbf16> to vector<128x128xbf16>
    %cst_46 = arith.constant dense<0.000000e+00> : vector<16x128xf32>
    %54 = tpu.matmul %15, %53, %cst_46 {dimension_numbers = #tpu.dot_dimension_numbers<[1], [0], [0], [1], [0, 0, 1, 1], [], []>} : vector<16x128xbf16>, vector<128x128xbf16>, vector<16x128xf32> -> vector<16x128xf32>
    %c144 = arith.constant 144 : index
    %c0_47 = arith.constant 0 : index
    %55 = vector.load %arg11[%c144, %c0_47] : memref<256x128xf32, #tpu.memory_space<vmem>>, vector<16x128xf32>
    tpu.vector_store %arg11[%c144, %c0_47], %54 {strides = array<i32>} : memref<256x128xf32, #tpu.memory_space<vmem>>, vector<16x128xf32>,
    %c10 = arith.constant 10 : index
    %c0_48 = arith.constant 0 : index
    %c0_49 = arith.constant 0 : index
    %56 = vector.load %arg3[%c10, %c0_48, %c0_49] : memref<16x128x128xbf16, #tpu.memory_space<vmem>>, vector<1x128x128xbf16>
    %57 = vector.shape_cast %56 : vector<1x128x128xbf16> to vector<128x128xbf16>
    %cst_50 = arith.constant dense<0.000000e+00> : vector<16x128xf32>
    %58 = tpu.matmul %15, %57, %cst_50 {dimension_numbers = #tpu.dot_dimension_numbers<[1], [0], [0], [1], [0, 0, 1, 1], [], []>} : vector<16x128xbf16>, vector<128x128xbf16>, vector<16x128xf32> -> vector<16x128xf32>
    %c160 = arith.constant 160 : index
    %c0_51 = arith.constant 0 : index
    %59 = vector.load %arg11[%c160, %c0_51] : memref<256x128xf32, #tpu.memory_space<vmem>>, vector<16x128xf32>
    tpu.vector_store %arg11[%c160, %c0_51], %58 {strides = array<i32>} : memref<256x128xf32, #tpu.memory_space<vmem>>, vector<16x128xf32>,
    %c11 = arith.constant 11 : index
    %c0_52 = arith.constant 0 : index
    %c0_53 = arith.constant 0 : index
    %60 = vector.load %arg3[%c11, %c0_52, %c0_53] : memref<16x128x128xbf16, #tpu.memory_space<vmem>>, vector<1x128x128xbf16>
    %61 = vector.shape_cast %60 : vector<1x128x128xbf16> to vector<128x128xbf16>
    %cst_54 = arith.constant dense<0.000000e+00> : vector<16x128xf32>
    %62 = tpu.matmul %15, %61, %cst_54 {dimension_numbers = #tpu.dot_dimension_numbers<[1], [0], [0], [1], [0, 0, 1, 1], [], []>} : vector<16x128xbf16>, vector<128x128xbf16>, vector<16x128xf32> -> vector<16x128xf32>
    %c176 = arith.constant 176 : index
    %c0_55 = arith.constant 0 : index
    %63 = vector.load %arg11[%c176, %c0_55] : memref<256x128xf32, #tpu.memory_space<vmem>>, vector<16x128xf32>
    tpu.vector_store %arg11[%c176, %c0_55], %62 {strides = array<i32>} : memref<256x128xf32, #tpu.memory_space<vmem>>, vector<16x128xf32>,
    %c12 = arith.constant 12 : index
    %c0_56 = arith.constant 0 : index
    %c0_57 = arith.constant 0 : index
    %64 = vector.load %arg3[%c12, %c0_56, %c0_57] : memref<16x128x128xbf16, #tpu.memory_space<vmem>>, vector<1x128x128xbf16>
    %65 = vector.shape_cast %64 : vector<1x128x128xbf16> to vector<128x128xbf16>
    %cst_58 = arith.constant dense<0.000000e+00> : vector<16x128xf32>
    %66 = tpu.matmul %15, %65, %cst_58 {dimension_numbers = #tpu.dot_dimension_numbers<[1], [0], [0], [1], [0, 0, 1, 1], [], []>} : vector<16x128xbf16>, vector<128x128xbf16>, vector<16x128xf32> -> vector<16x128xf32>
    %c192 = arith.constant 192 : index
    %c0_59 = arith.constant 0 : index
    %67 = vector.load %arg11[%c192, %c0_59] : memref<256x128xf32, #tpu.memory_space<vmem>>, vector<16x128xf32>
    tpu.vector_store %arg11[%c192, %c0_59], %66 {strides = array<i32>} : memref<256x128xf32, #tpu.memory_space<vmem>>, vector<16x128xf32>,
    %c13 = arith.constant 13 : index
    %c0_60 = arith.constant 0 : index
    %c0_61 = arith.constant 0 : index
    %68 = vector.load %arg3[%c13, %c0_60, %c0_61] : memref<16x128x128xbf16, #tpu.memory_space<vmem>>, vector<1x128x128xbf16>
    %69 = vector.shape_cast %68 : vector<1x128x128xbf16> to vector<128x128xbf16>
    %cst_62 = arith.constant dense<0.000000e+00> : vector<16x128xf32>
    %70 = tpu.matmul %15, %69, %cst_62 {dimension_numbers = #tpu.dot_dimension_numbers<[1], [0], [0], [1], [0, 0, 1, 1], [], []>} : vector<16x128xbf16>, vector<128x128xbf16>, vector<16x128xf32> -> vector<16x128xf32>
    %c208 = arith.constant 208 : index
    %c0_63 = arith.constant 0 : index
    %71 = vector.load %arg11[%c208, %c0_63] : memref<256x128xf32, #tpu.memory_space<vmem>>, vector<16x128xf32>
    tpu.vector_store %arg11[%c208, %c0_63], %70 {strides = array<i32>} : memref<256x128xf32, #tpu.memory_space<vmem>>, vector<16x128xf32>,
    %c14 = arith.constant 14 : index
    %c0_64 = arith.constant 0 : index
    %c0_65 = arith.constant 0 : index
    %72 = vector.load %arg3[%c14, %c0_64, %c0_65] : memref<16x128x128xbf16, #tpu.memory_space<vmem>>, vector<1x128x128xbf16>
    %73 = vector.shape_cast %72 : vector<1x128x128xbf16> to vector<128x128xbf16>
    %cst_66 = arith.constant dense<0.000000e+00> : vector<16x128xf32>
    %74 = tpu.matmul %15, %73, %cst_66 {dimension_numbers = #tpu.dot_dimension_numbers<[1], [0], [0], [1], [0, 0, 1, 1], [], []>} : vector<16x128xbf16>, vector<128x128xbf16>, vector<16x128xf32> -> vector<16x128xf32>
    %c224 = arith.constant 224 : index
    %c0_67 = arith.constant 0 : index
    %75 = vector.load %arg11[%c224, %c0_67] : memref<256x128xf32, #tpu.memory_space<vmem>>, vector<16x128xf32>
    tpu.vector_store %arg11[%c224, %c0_67], %74 {strides = array<i32>} : memref<256x128xf32, #tpu.memory_space<vmem>>, vector<16x128xf32>,
    %c15 = arith.constant 15 : index
    %c0_68 = arith.constant 0 : index
    %c0_69 = arith.constant 0 : index
    %76 = vector.load %arg3[%c15, %c0_68, %c0_69] : memref<16x128x128xbf16, #tpu.memory_space<vmem>>, vector<1x128x128xbf16>
    %77 = vector.shape_cast %76 : vector<1x128x128xbf16> to vector<128x128xbf16>
    %cst_70 = arith.constant dense<0.000000e+00> : vector<16x128xf32>
    %78 = tpu.matmul %15, %77, %cst_70 {dimension_numbers = #tpu.dot_dimension_numbers<[1], [0], [0], [1], [0, 0, 1, 1], [], []>} : vector<16x128xbf16>, vector<128x128xbf16>, vector<16x128xf32> -> vector<16x128xf32>
    %c240 = arith.constant 240 : index
    %c0_71 = arith.constant 0 : index
    %79 = vector.load %arg11[%c240, %c0_71] : memref<256x128xf32, #tpu.memory_space<vmem>>, vector<16x128xf32>
    tpu.vector_store %arg11[%c240, %c0_71], %78 {strides = array<i32>} : memref<256x128xf32, #tpu.memory_space<vmem>>, vector<16x128xf32>,
    %c0_72 = arith.constant 0 : index
    %c0_73 = arith.constant 0 : index
    %80 = vector.load %arg7[%c0_72, %c0_73] : memref<16x256xf32, #tpu.memory_space<vmem>>, vector<16x256xf32>
    %c0_74 = arith.constant 0 : index
    %c0_75 = arith.constant 0 : index
    %81 = vector.load %arg11[%c0_74, %c0_75] : memref<256x128xf32, #tpu.memory_space<vmem>>, vector<256x128xf32>
    %cst_76 = arith.constant dense<0.000000e+00> : vector<16x128xf32>
    %82 = tpu.matmul %80, %81, %cst_76 {dimension_numbers = #tpu.dot_dimension_numbers<[1], [0], [0], [1], [0, 0, 1, 1], [], []>} : vector<16x256xf32>, vector<256x128xf32>, vector<16x128xf32> -> vector<16x128xf32>
    %83 = arith.truncf %82 : vector<16x128xf32> to vector<16x128xbf16>
    %c0_77 = arith.constant 0 : index
    %c0_78 = arith.constant 0 : index
    %84 = vector.load %arg4[%c0_77, %c0_78] : memref<128x256xbf16, #tpu.memory_space<vmem>>, vector<128x256xbf16>
    %cst_79 = arith.constant dense<0.000000e+00> : vector<16x256xf32>
    %85 = tpu.matmul %83, %84, %cst_79 {dimension_numbers = #tpu.dot_dimension_numbers<[1], [0], [0], [1], [0, 0, 1, 1], [], []>} : vector<16x128xbf16>, vector<128x256xbf16>, vector<16x256xf32> -> vector<16x256xf32>
    %c0_80 = arith.constant 0 : index
    %c0_81 = arith.constant 0 : index
    %86 = vector.load %arg5[%c0_80, %c0_81] : memref<1x256xf32, #tpu.memory_space<vmem>>, vector<1x256xf32>
    %87 = vector.broadcast %86 : vector<1x256xf32> to vector<16x256xf32>
    %88 = arith.addf %85, %87 : vector<16x256xf32>
    %89 = vector.extract_strided_slice %88 {offsets = [0, 0], sizes = [16, 128], strides = [1, 1]} : vector<16x256xf32> to vector<16x128xf32>
    %90 = vector.extract_strided_slice %88 {offsets = [0, 128], sizes = [16, 128], strides = [1, 1]} : vector<16x256xf32> to vector<16x128xf32>
    %91 = arith.negf %90 : vector<16x128xf32>
    %92 = math.exp %91 : vector<16x128xf32>
    %cst_82 = arith.constant 1.000000e+00 : f32
    %93 = vector.broadcast %cst_82 : f32 to vector<16x128xf32>
    %94 = arith.addf %93, %92 : vector<16x128xf32>
    %95 = arith.divf %93, %94 : vector<16x128xf32>
    %96 = arith.mulf %95, %89 : vector<16x128xf32>
    %97 = arith.truncf %96 : vector<16x128xf32> to vector<16x128xbf16>
    %c0_83 = arith.constant 0 : index
    %c0_84 = arith.constant 0 : index
    %c0_85 = arith.constant 0 : index
    %98 = vector.load %arg6[%c0_83, %c0_84, %c0_85] : memref<16x128x128xbf16, #tpu.memory_space<vmem>>, vector<1x128x128xbf16>
    %99 = vector.shape_cast %98 : vector<1x128x128xbf16> to vector<128x128xbf16>
    %cst_86 = arith.constant dense<0.000000e+00> : vector<16x128xf32>
    %100 = tpu.matmul %97, %99, %cst_86 {dimension_numbers = #tpu.dot_dimension_numbers<[1], [0], [0], [1], [0, 0, 1, 1], [], []>} : vector<16x128xbf16>, vector<128x128xbf16>, vector<16x128xf32> -> vector<16x128xf32>
    %c0_87 = arith.constant 0 : index
    %c0_88 = arith.constant 0 : index
    %101 = vector.load %arg11[%c0_87, %c0_88] : memref<256x128xf32, #tpu.memory_space<vmem>>, vector<16x128xf32>
    tpu.vector_store %arg11[%c0_87, %c0_88], %100 {strides = array<i32>} : memref<256x128xf32, #tpu.memory_space<vmem>>, vector<16x128xf32>,
    %c1_89 = arith.constant 1 : index
    %c0_90 = arith.constant 0 : index
    %c0_91 = arith.constant 0 : index
    %102 = vector.load %arg6[%c1_89, %c0_90, %c0_91] : memref<16x128x128xbf16, #tpu.memory_space<vmem>>, vector<1x128x128xbf16>
    %103 = vector.shape_cast %102 : vector<1x128x128xbf16> to vector<128x128xbf16>
    %cst_92 = arith.constant dense<0.000000e+00> : vector<16x128xf32>
    %104 = tpu.matmul %97, %103, %cst_92 {dimension_numbers = #tpu.dot_dimension_numbers<[1], [0], [0], [1], [0, 0, 1, 1], [], []>} : vector<16x128xbf16>, vector<128x128xbf16>, vector<16x128xf32> -> vector<16x128xf32>
    %c16_93 = arith.constant 16 : index
    %c0_94 = arith.constant 0 : index
    %105 = vector.load %arg11[%c16_93, %c0_94] : memref<256x128xf32, #tpu.memory_space<vmem>>, vector<16x128xf32>
    tpu.vector_store %arg11[%c16_93, %c0_94], %104 {strides = array<i32>} : memref<256x128xf32, #tpu.memory_space<vmem>>, vector<16x128xf32>,
    %c2_95 = arith.constant 2 : index
    %c0_96 = arith.constant 0 : index
    %c0_97 = arith.constant 0 : index
    %106 = vector.load %arg6[%c2_95, %c0_96, %c0_97] : memref<16x128x128xbf16, #tpu.memory_space<vmem>>, vector<1x128x128xbf16>
    %107 = vector.shape_cast %106 : vector<1x128x128xbf16> to vector<128x128xbf16>
    %cst_98 = arith.constant dense<0.000000e+00> : vector<16x128xf32>
    %108 = tpu.matmul %97, %107, %cst_98 {dimension_numbers = #tpu.dot_dimension_numbers<[1], [0], [0], [1], [0, 0, 1, 1], [], []>} : vector<16x128xbf16>, vector<128x128xbf16>, vector<16x128xf32> -> vector<16x128xf32>
    %c32_99 = arith.constant 32 : index
    %c0_100 = arith.constant 0 : index
    %109 = vector.load %arg11[%c32_99, %c0_100] : memref<256x128xf32, #tpu.memory_space<vmem>>, vector<16x128xf32>
    tpu.vector_store %arg11[%c32_99, %c0_100], %108 {strides = array<i32>} : memref<256x128xf32, #tpu.memory_space<vmem>>, vector<16x128xf32>,
    %c3_101 = arith.constant 3 : index
    %c0_102 = arith.constant 0 : index
    %c0_103 = arith.constant 0 : index
    %110 = vector.load %arg6[%c3_101, %c0_102, %c0_103] : memref<16x128x128xbf16, #tpu.memory_space<vmem>>, vector<1x128x128xbf16>
    %111 = vector.shape_cast %110 : vector<1x128x128xbf16> to vector<128x128xbf16>
    %cst_104 = arith.constant dense<0.000000e+00> : vector<16x128xf32>
    %112 = tpu.matmul %97, %111, %cst_104 {dimension_numbers = #tpu.dot_dimension_numbers<[1], [0], [0], [1], [0, 0, 1, 1], [], []>} : vector<16x128xbf16>, vector<128x128xbf16>, vector<16x128xf32> -> vector<16x128xf32>
    %c48_105 = arith.constant 48 : index
    %c0_106 = arith.constant 0 : index
    %113 = vector.load %arg11[%c48_105, %c0_106] : memref<256x128xf32, #tpu.memory_space<vmem>>, vector<16x128xf32>
    tpu.vector_store %arg11[%c48_105, %c0_106], %112 {strides = array<i32>} : memref<256x128xf32, #tpu.memory_space<vmem>>, vector<16x128xf32>,
    %c4_107 = arith.constant 4 : index
    %c0_108 = arith.constant 0 : index
    %c0_109 = arith.constant 0 : index
    %114 = vector.load %arg6[%c4_107, %c0_108, %c0_109] : memref<16x128x128xbf16, #tpu.memory_space<vmem>>, vector<1x128x128xbf16>
    %115 = vector.shape_cast %114 : vector<1x128x128xbf16> to vector<128x128xbf16>
    %cst_110 = arith.constant dense<0.000000e+00> : vector<16x128xf32>
    %116 = tpu.matmul %97, %115, %cst_110 {dimension_numbers = #tpu.dot_dimension_numbers<[1], [0], [0], [1], [0, 0, 1, 1], [], []>} : vector<16x128xbf16>, vector<128x128xbf16>, vector<16x128xf32> -> vector<16x128xf32>
    %c64_111 = arith.constant 64 : index
    %c0_112 = arith.constant 0 : index
    %117 = vector.load %arg11[%c64_111, %c0_112] : memref<256x128xf32, #tpu.memory_space<vmem>>, vector<16x128xf32>
    tpu.vector_store %arg11[%c64_111, %c0_112], %116 {strides = array<i32>} : memref<256x128xf32, #tpu.memory_space<vmem>>, vector<16x128xf32>,
    %c5_113 = arith.constant 5 : index
    %c0_114 = arith.constant 0 : index
    %c0_115 = arith.constant 0 : index
    %118 = vector.load %arg6[%c5_113, %c0_114, %c0_115] : memref<16x128x128xbf16, #tpu.memory_space<vmem>>, vector<1x128x128xbf16>
    %119 = vector.shape_cast %118 : vector<1x128x128xbf16> to vector<128x128xbf16>
    %cst_116 = arith.constant dense<0.000000e+00> : vector<16x128xf32>
    %120 = tpu.matmul %97, %119, %cst_116 {dimension_numbers = #tpu.dot_dimension_numbers<[1], [0], [0], [1], [0, 0, 1, 1], [], []>} : vector<16x128xbf16>, vector<128x128xbf16>, vector<16x128xf32> -> vector<16x128xf32>
    %c80_117 = arith.constant 80 : index
    %c0_118 = arith.constant 0 : index
    %121 = vector.load %arg11[%c80_117, %c0_118] : memref<256x128xf32, #tpu.memory_space<vmem>>, vector<16x128xf32>
    tpu.vector_store %arg11[%c80_117, %c0_118], %120 {strides = array<i32>} : memref<256x128xf32, #tpu.memory_space<vmem>>, vector<16x128xf32>,
    %c6_119 = arith.constant 6 : index
    %c0_120 = arith.constant 0 : index
    %c0_121 = arith.constant 0 : index
    %122 = vector.load %arg6[%c6_119, %c0_120, %c0_121] : memref<16x128x128xbf16, #tpu.memory_space<vmem>>, vector<1x128x128xbf16>
    %123 = vector.shape_cast %122 : vector<1x128x128xbf16> to vector<128x128xbf16>
    %cst_122 = arith.constant dense<0.000000e+00> : vector<16x128xf32>
    %124 = tpu.matmul %97, %123, %cst_122 {dimension_numbers = #tpu.dot_dimension_numbers<[1], [0], [0], [1], [0, 0, 1, 1], [], []>} : vector<16x128xbf16>, vector<128x128xbf16>, vector<16x128xf32> -> vector<16x128xf32>
    %c96_123 = arith.constant 96 : index
    %c0_124 = arith.constant 0 : index
    %125 = vector.load %arg11[%c96_123, %c0_124] : memref<256x128xf32, #tpu.memory_space<vmem>>, vector<16x128xf32>
    tpu.vector_store %arg11[%c96_123, %c0_124], %124 {strides = array<i32>} : memref<256x128xf32, #tpu.memory_space<vmem>>, vector<16x128xf32>,
    %c7_125 = arith.constant 7 : index
    %c0_126 = arith.constant 0 : index
    %c0_127 = arith.constant 0 : index
    %126 = vector.load %arg6[%c7_125, %c0_126, %c0_127] : memref<16x128x128xbf16, #tpu.memory_space<vmem>>, vector<1x128x128xbf16>
    %127 = vector.shape_cast %126 : vector<1x128x128xbf16> to vector<128x128xbf16>
    %cst_128 = arith.constant dense<0.000000e+00> : vector<16x128xf32>
    %128 = tpu.matmul %97, %127, %cst_128 {dimension_numbers = #tpu.dot_dimension_numbers<[1], [0], [0], [1], [0, 0, 1, 1], [], []>} : vector<16x128xbf16>, vector<128x128xbf16>, vector<16x128xf32> -> vector<16x128xf32>
    %c112_129 = arith.constant 112 : index
    %c0_130 = arith.constant 0 : index
    %129 = vector.load %arg11[%c112_129, %c0_130] : memref<256x128xf32, #tpu.memory_space<vmem>>, vector<16x128xf32>
    tpu.vector_store %arg11[%c112_129, %c0_130], %128 {strides = array<i32>} : memref<256x128xf32, #tpu.memory_space<vmem>>, vector<16x128xf32>,
    %c8_131 = arith.constant 8 : index
    %c0_132 = arith.constant 0 : index
    %c0_133 = arith.constant 0 : index
    %130 = vector.load %arg6[%c8_131, %c0_132, %c0_133] : memref<16x128x128xbf16, #tpu.memory_space<vmem>>, vector<1x128x128xbf16>
    %131 = vector.shape_cast %130 : vector<1x128x128xbf16> to vector<128x128xbf16>
    %cst_134 = arith.constant dense<0.000000e+00> : vector<16x128xf32>
    %132 = tpu.matmul %97, %131, %cst_134 {dimension_numbers = #tpu.dot_dimension_numbers<[1], [0], [0], [1], [0, 0, 1, 1], [], []>} : vector<16x128xbf16>, vector<128x128xbf16>, vector<16x128xf32> -> vector<16x128xf32>
    %c128_135 = arith.constant 128 : index
    %c0_136 = arith.constant 0 : index
    %133 = vector.load %arg11[%c128_135, %c0_136] : memref<256x128xf32, #tpu.memory_space<vmem>>, vector<16x128xf32>
    tpu.vector_store %arg11[%c128_135, %c0_136], %132 {strides = array<i32>} : memref<256x128xf32, #tpu.memory_space<vmem>>, vector<16x128xf32>,
    %c9_137 = arith.constant 9 : index
    %c0_138 = arith.constant 0 : index
    %c0_139 = arith.constant 0 : index
    %134 = vector.load %arg6[%c9_137, %c0_138, %c0_139] : memref<16x128x128xbf16, #tpu.memory_space<vmem>>, vector<1x128x128xbf16>
    %135 = vector.shape_cast %134 : vector<1x128x128xbf16> to vector<128x128xbf16>
    %cst_140 = arith.constant dense<0.000000e+00> : vector<16x128xf32>
    %136 = tpu.matmul %97, %135, %cst_140 {dimension_numbers = #tpu.dot_dimension_numbers<[1], [0], [0], [1], [0, 0, 1, 1], [], []>} : vector<16x128xbf16>, vector<128x128xbf16>, vector<16x128xf32> -> vector<16x128xf32>
    %c144_141 = arith.constant 144 : index
    %c0_142 = arith.constant 0 : index
    %137 = vector.load %arg11[%c144_141, %c0_142] : memref<256x128xf32, #tpu.memory_space<vmem>>, vector<16x128xf32>
    tpu.vector_store %arg11[%c144_141, %c0_142], %136 {strides = array<i32>} : memref<256x128xf32, #tpu.memory_space<vmem>>, vector<16x128xf32>,
    %c10_143 = arith.constant 10 : index
    %c0_144 = arith.constant 0 : index
    %c0_145 = arith.constant 0 : index
    %138 = vector.load %arg6[%c10_143, %c0_144, %c0_145] : memref<16x128x128xbf16, #tpu.memory_space<vmem>>, vector<1x128x128xbf16>
    %139 = vector.shape_cast %138 : vector<1x128x128xbf16> to vector<128x128xbf16>
    %cst_146 = arith.constant dense<0.000000e+00> : vector<16x128xf32>
    %140 = tpu.matmul %97, %139, %cst_146 {dimension_numbers = #tpu.dot_dimension_numbers<[1], [0], [0], [1], [0, 0, 1, 1], [], []>} : vector<16x128xbf16>, vector<128x128xbf16>, vector<16x128xf32> -> vector<16x128xf32>
    %c160_147 = arith.constant 160 : index
    %c0_148 = arith.constant 0 : index
    %141 = vector.load %arg11[%c160_147, %c0_148] : memref<256x128xf32, #tpu.memory_space<vmem>>, vector<16x128xf32>
    tpu.vector_store %arg11[%c160_147, %c0_148], %140 {strides = array<i32>} : memref<256x128xf32, #tpu.memory_space<vmem>>, vector<16x128xf32>,
    %c11_149 = arith.constant 11 : index
    %c0_150 = arith.constant 0 : index
    %c0_151 = arith.constant 0 : index
    %142 = vector.load %arg6[%c11_149, %c0_150, %c0_151] : memref<16x128x128xbf16, #tpu.memory_space<vmem>>, vector<1x128x128xbf16>
    %143 = vector.shape_cast %142 : vector<1x128x128xbf16> to vector<128x128xbf16>
    %cst_152 = arith.constant dense<0.000000e+00> : vector<16x128xf32>
    %144 = tpu.matmul %97, %143, %cst_152 {dimension_numbers = #tpu.dot_dimension_numbers<[1], [0], [0], [1], [0, 0, 1, 1], [], []>} : vector<16x128xbf16>, vector<128x128xbf16>, vector<16x128xf32> -> vector<16x128xf32>
    %c176_153 = arith.constant 176 : index
    %c0_154 = arith.constant 0 : index
    %145 = vector.load %arg11[%c176_153, %c0_154] : memref<256x128xf32, #tpu.memory_space<vmem>>, vector<16x128xf32>
    tpu.vector_store %arg11[%c176_153, %c0_154], %144 {strides = array<i32>} : memref<256x128xf32, #tpu.memory_space<vmem>>, vector<16x128xf32>,
    %c12_155 = arith.constant 12 : index
    %c0_156 = arith.constant 0 : index
    %c0_157 = arith.constant 0 : index
    %146 = vector.load %arg6[%c12_155, %c0_156, %c0_157] : memref<16x128x128xbf16, #tpu.memory_space<vmem>>, vector<1x128x128xbf16>
    %147 = vector.shape_cast %146 : vector<1x128x128xbf16> to vector<128x128xbf16>
    %cst_158 = arith.constant dense<0.000000e+00> : vector<16x128xf32>
    %148 = tpu.matmul %97, %147, %cst_158 {dimension_numbers = #tpu.dot_dimension_numbers<[1], [0], [0], [1], [0, 0, 1, 1], [], []>} : vector<16x128xbf16>, vector<128x128xbf16>, vector<16x128xf32> -> vector<16x128xf32>
    %c192_159 = arith.constant 192 : index
    %c0_160 = arith.constant 0 : index
    %149 = vector.load %arg11[%c192_159, %c0_160] : memref<256x128xf32, #tpu.memory_space<vmem>>, vector<16x128xf32>
    tpu.vector_store %arg11[%c192_159, %c0_160], %148 {strides = array<i32>} : memref<256x128xf32, #tpu.memory_space<vmem>>, vector<16x128xf32>,
    %c13_161 = arith.constant 13 : index
    %c0_162 = arith.constant 0 : index
    %c0_163 = arith.constant 0 : index
    %150 = vector.load %arg6[%c13_161, %c0_162, %c0_163] : memref<16x128x128xbf16, #tpu.memory_space<vmem>>, vector<1x128x128xbf16>
    %151 = vector.shape_cast %150 : vector<1x128x128xbf16> to vector<128x128xbf16>
    %cst_164 = arith.constant dense<0.000000e+00> : vector<16x128xf32>
    %152 = tpu.matmul %97, %151, %cst_164 {dimension_numbers = #tpu.dot_dimension_numbers<[1], [0], [0], [1], [0, 0, 1, 1], [], []>} : vector<16x128xbf16>, vector<128x128xbf16>, vector<16x128xf32> -> vector<16x128xf32>
    %c208_165 = arith.constant 208 : index
    %c0_166 = arith.constant 0 : index
    %153 = vector.load %arg11[%c208_165, %c0_166] : memref<256x128xf32, #tpu.memory_space<vmem>>, vector<16x128xf32>
    tpu.vector_store %arg11[%c208_165, %c0_166], %152 {strides = array<i32>} : memref<256x128xf32, #tpu.memory_space<vmem>>, vector<16x128xf32>,
    %c14_167 = arith.constant 14 : index
    %c0_168 = arith.constant 0 : index
    %c0_169 = arith.constant 0 : index
    %154 = vector.load %arg6[%c14_167, %c0_168, %c0_169] : memref<16x128x128xbf16, #tpu.memory_space<vmem>>, vector<1x128x128xbf16>
    %155 = vector.shape_cast %154 : vector<1x128x128xbf16> to vector<128x128xbf16>
    %cst_170 = arith.constant dense<0.000000e+00> : vector<16x128xf32>
    %156 = tpu.matmul %97, %155, %cst_170 {dimension_numbers = #tpu.dot_dimension_numbers<[1], [0], [0], [1], [0, 0, 1, 1], [], []>} : vector<16x128xbf16>, vector<128x128xbf16>, vector<16x128xf32> -> vector<16x128xf32>
    %c224_171 = arith.constant 224 : index
    %c0_172 = arith.constant 0 : index
    %157 = vector.load %arg11[%c224_171, %c0_172] : memref<256x128xf32, #tpu.memory_space<vmem>>, vector<16x128xf32>
    tpu.vector_store %arg11[%c224_171, %c0_172], %156 {strides = array<i32>} : memref<256x128xf32, #tpu.memory_space<vmem>>, vector<16x128xf32>,
    %c15_173 = arith.constant 15 : index
    %c0_174 = arith.constant 0 : index
    %c0_175 = arith.constant 0 : index
    %158 = vector.load %arg6[%c15_173, %c0_174, %c0_175] : memref<16x128x128xbf16, #tpu.memory_space<vmem>>, vector<1x128x128xbf16>
    %159 = vector.shape_cast %158 : vector<1x128x128xbf16> to vector<128x128xbf16>
    %cst_176 = arith.constant dense<0.000000e+00> : vector<16x128xf32>
    %160 = tpu.matmul %97, %159, %cst_176 {dimension_numbers = #tpu.dot_dimension_numbers<[1], [0], [0], [1], [0, 0, 1, 1], [], []>} : vector<16x128xbf16>, vector<128x128xbf16>, vector<16x128xf32> -> vector<16x128xf32>
    %c240_177 = arith.constant 240 : index
    %c0_178 = arith.constant 0 : index
    %161 = vector.load %arg11[%c240_177, %c0_178] : memref<256x128xf32, #tpu.memory_space<vmem>>, vector<16x128xf32>
    tpu.vector_store %arg11[%c240_177, %c0_178], %160 {strides = array<i32>} : memref<256x128xf32, #tpu.memory_space<vmem>>, vector<16x128xf32>,
    %c0_179 = arith.constant 0 : index
    %c0_180 = arith.constant 0 : index
    %162 = vector.load %arg7[%c0_179, %c0_180] : memref<16x256xf32, #tpu.memory_space<vmem>>, vector<16x256xf32>
    %c0_181 = arith.constant 0 : index
    %c0_182 = arith.constant 0 : index
    %163 = vector.load %arg11[%c0_181, %c0_182] : memref<256x128xf32, #tpu.memory_space<vmem>>, vector<256x128xf32>
    %cst_183 = arith.constant dense<0.000000e+00> : vector<16x128xf32>
    %164 = tpu.matmul %162, %163, %cst_183 {dimension_numbers = #tpu.dot_dimension_numbers<[1], [0], [0], [1], [0, 0, 1, 1], [], []>} : vector<16x256xf32>, vector<256x128xf32>, vector<16x128xf32> -> vector<16x128xf32>
    %165 = arith.truncf %164 : vector<16x128xf32> to vector<16x128xbf16>
    %c0_184 = arith.constant 0 : index
    %c0_185 = arith.constant 0 : index
    %166 = vector.load %arg8[%c0_184, %c0_185] : memref<128x128xbf16, #tpu.memory_space<vmem>>, vector<128x128xbf16>
    %cst_186 = arith.constant dense<0.000000e+00> : vector<16x128xf32>
    %167 = tpu.matmul %165, %166, %cst_186 {dimension_numbers = #tpu.dot_dimension_numbers<[1], [0], [0], [1], [0, 0, 1, 1], [], []>} : vector<16x128xbf16>, vector<128x128xbf16>, vector<16x128xf32> -> vector<16x128xf32>
    %c0_187 = arith.constant 0 : index
    %c0_188 = arith.constant 0 : index
    %168 = vector.load %arg9[%c0_187, %c0_188] : memref<1x128xf32, #tpu.memory_space<vmem>>, vector<1x128xf32>
    %169 = vector.broadcast %168 : vector<1x128xf32> to vector<16x128xf32>
    %170 = arith.addf %167, %169 : vector<16x128xf32>
    %c0_189 = arith.constant 0 : index
    %c0_190 = arith.constant 0 : index
    %171 = vector.load %arg10[%c0_189, %c0_190] : memref<16x128xf32, #tpu.memory_space<vmem>>, vector<16x128xf32>
    tpu.vector_store %arg10[%c0_189, %c0_190], %170 {strides = array<i32>} : memref<16x128xf32, #tpu.memory_space<vmem>>, vector<16x128xf32>,
    return
  }
}

</mosaic_0001>

<llo_original>
// kernel: tile.48
$region0: #{tile.48}
  #allocation0 [shape = 's32[1]{0}', space=sflag, size = 0x4, scoped, tag = 'scoped memory for tile.48']
  %s0 = inlined_call_operand.vmem [shape: f32[8], index: 0, kind: input, shape index: {}]
  %s1 = inlined_call_operand.vmem [shape: f32[4,8], index: 1, kind: output, shape index: {}]
  // Predicated region
  $region2: #{tile.48} parent=0 // pred_check
    _
  $region3: #{tile.48} parent=0 // pred_check_branch
    %3 = sbr.rel (0) target = $region5
  $region4: #{tile.48} parent=0 // pred_region
    _
  $region5: #{tile.48} parent=0 // pred_fallthru
    _
  %v4 = vld [vmem:[%s0] ss:$0 sm:$0xff]
  %5 = vst [vmem:[%s1] sm:$0xf] %v4

// kernel: tile.49
$region0: #{tile.49}
  %s0 = inlined_call_operand.vmem [shape: f32[4,8], index: 0, kind: input, shape index: {}]
  %s1 = inlined_call_operand.vmem [shape: f32[1,32], index: 1, kind: output, shape index: {}]
  $region1: #{tile.49} parent=0
    #allocation0 [shape = 'u8[4096]{0}', space=vmem, size = 0x1000, scoped, tag = 'scoped mem for output reshape']
    #allocation1 [shape = 'u8[4096]{0}', space=vmem, size = 0x1000, scoped, tag = 'scoped mem for input reshape']
    %s3 = sshllo.u32 0, 4
    %v4 = vld [vmem:[%s0] sm:%s3]
    %5 = vst [vmem:[#allocation1] sm:%s3] %v4
    %v6 = vld [vmem:[#allocation1] sm:$0x1]
    %vm7 = vcmask 64512
    %8 = vst.msk [vmem:[#allocation0] sm:$0x1] %vm7, %v6
    %s9 = scalar_lea.vmem [#allocation1], 3
    %v10 = vld [vmem:[%s9] sm:$0x1]
    %11 = vrot.lane.b32.xlu0 %v10, 24
    %v12 = vpop.permute.xlu0 %11
    %vm13 = vcmask 261312
    %14 = vst.msk [vmem:[#allocation0] sm:$0x1] %vm13, %v12
    %s15 = scalar_lea.vmem [#allocation1], 2
    %v16 = vld [vmem:[%s15] sm:$0x1]
    %17 = vrot.lane.b32.xlu0 %v16, 16
    %v18 = vpop.permute.xlu0 %17
    %vm19 = vcmask 195712
    %20 = vst.msk [vmem:[#allocation0] sm:$0x1] %vm19, %v18
    %s21 = scalar_lea.vmem [#allocation1], 1
    %v22 = vld [vmem:[%s21] sm:$0x1]
    %23 = vrot.lane.b32.xlu0 %v22, 8
    %v24 = vpop.permute.xlu0 %23
    %vm25 = vcmask 130112
    %26 = vst.msk [vmem:[#allocation0] sm:$0x1] %vm25, %v24
    %s28 = sshllo.u32 0, 1
    %v30 = vld [vmem:[#allocation0] sm:%s28]
    %s31 = sshllo.u32 0, 1
    %32 = vst [vmem:[%s1] sm:%s31] %v30

// kernel: tile.33
$region0: #{tile.33}
  #allocation0 [shape = 's32[1]{0}', space=sflag, size = 0x4, scoped, tag = 'scoped memory for tile.33']
  %s0 = inlined_call_operand.vmem [shape: f32[32], index: 0, kind: input, shape index: {}]
  %s1 = inlined_call_operand.vmem [shape: f32[4,32], index: 1, kind: output, shape index: {}]
  // Predicated region
  $region2: #{tile.33} parent=0 // pred_check
    _
  $region3: #{tile.33} parent=0 // pred_check_branch
    %3 = sbr.rel (0) target = $region5
  $region4: #{tile.33} parent=0 // pred_region
    _
  $region5: #{tile.33} parent=0 // pred_fallthru
    _
  %v4 = vld [vmem:[%s0] ss:$0 sm:$0xff]
  %5 = vst [vmem:[%s1] sm:$0xf] %v4

// kernel: tile.34
$region0: #{tile.34}
  %s0 = inlined_call_operand.vmem [shape: f32[4,32], index: 0, kind: input, shape index: {}]
  %s1 = inlined_call_operand.vmem [shape: f32[1,128], index: 1, kind: output, shape index: {}]
  $region1: #{tile.34} parent=0
    #allocation0 [shape = 'u8[4096]{0}', space=vmem, size = 0x1000, scoped, tag = 'scoped mem for output reshape']
    #allocation1 [shape = 'u8[4096]{0}', space=vmem, size = 0x1000, scoped, tag = 'scoped mem for input reshape']
    %s3 = sshllo.u32 0, 4
    %v4 = vld [vmem:[%s0] sm:%s3]
    %5 = vst [vmem:[#allocation1] sm:%s3] %v4
    %v6 = vld [vmem:[#allocation1] sm:$0x1]
    %vm7 = vcmask 261120
    %8 = vst.msk [vmem:[#allocation0] sm:$0x1] %vm7, %v6
    %s9 = scalar_lea.vmem [#allocation1], 3
    %v10 = vld [vmem:[%s9] sm:$0x1]
    %11 = vrot.lane.b32.xlu0 %v10, 96
    %v12 = vpop.permute.xlu0 %11
    %vm13 = vcmask 1048320
    %14 = vst.msk [vmem:[#allocation0] sm:$0x1] %vm13, %v12
    %s15 = scalar_lea.vmem [#allocation1], 2
    %v16 = vld [vmem:[%s15] sm:$0x1]
    %17 = vrot.lane.b32.xlu0 %v16, 64
    %v18 = vpop.permute.xlu0 %17
    %vm19 = vcmask 785920
    %20 = vst.msk [vmem:[#allocation0] sm:$0x1] %vm19, %v18
    %s21 = scalar_lea.vmem [#allocation1], 1
    %v22 = vld [vmem:[%s21] sm:$0x1]
    %23 = vrot.lane.b32.xlu0 %v22, 32
    %v24 = vpop.permute.xlu0 %23
    %vm25 = vcmask 523520
    %26 = vst.msk [vmem:[#allocation0] sm:$0x1] %vm25, %v24
    %s28 = sshllo.u32 0, 1
    %v30 = vld [vmem:[#allocation0] sm:%s28]
    %s31 = sshllo.u32 0, 1
    %32 = vst [vmem:[%s1] sm:%s31] %v30

// kernel: ssm_synaptic_delay.1
$region0: #{ssm_synaptic_delay.1}
  #allocation0 [shape = 'u32[]', space=smem, size = 0x4, offset = 0x4, fixed_abs, tag = 'smem constant byte address 0x4 - core index']
  #allocation1 [shape = 'u32[144,128]{1,0:T(1,128)}', space=vmem, size = 0x12000, scoped, tag = 'internal scratch']
  #allocation2 [shape = 'f32[256,128]{1,0:T(8,128)}', space=vmem, size = 0x20000, scoped, tag = 'scratch operand']
  %s0 = inlined_call_operand.vmem [shape: f32[16,128], index: 0, kind: input, shape index: {}]
  %s1 = inlined_call_operand.vmem [shape: bf16[128,256], index: 1, kind: input, shape index: {}]
  %s2 = inlined_call_operand.vmem [shape: f32[1,256], index: 2, kind: input, shape index: {}]
  %s3 = inlined_call_operand.vmem [shape: bf16[16,128,128], index: 3, kind: input, shape index: {}]
  %s4 = inlined_call_operand.vmem [shape: bf16[128,256], index: 4, kind: input, shape index: {}]
  %s5 = inlined_call_operand.vmem [shape: f32[1,256], index: 5, kind: input, shape index: {}]
  %s6 = inlined_call_operand.vmem [shape: bf16[16,128,128], index: 6, kind: input, shape index: {}]
  %s7 = inlined_call_operand.vmem [shape: f32[16,256], index: 7, kind: input, shape index: {}]
  %s8 = inlined_call_operand.vmem [shape: bf16[128,128], index: 8, kind: input, shape index: {}]
  %s9 = inlined_call_operand.vmem [shape: f32[1,128], index: 9, kind: input, shape index: {}]
  %s10 = inlined_call_operand.vmem [shape: f32[16,128], index: 10, kind: output, shape index: {}]
  %s11 = sld [smem:[#allocation0]]
  $region50: #{ssm_synaptic_delay.1} parent=0
    _
  %s13 = ssub.s32 1, %s11
  %s14 = scalar_select 0, %s13, %s11
  // Predicated region
  $region2: #{ssm_synaptic_delay.1} parent=0 // pred_check
    _
  $region3: #{ssm_synaptic_delay.1} parent=0 // pred_check_branch
    %16 = sbr.rel (0) target = $region5
  $region4: #{ssm_synaptic_delay.1} parent=0 // pred_region
    _
  $region5: #{ssm_synaptic_delay.1} parent=0 // pred_fallthru
    _
  // Predicated region
  $region6: #{ssm_synaptic_delay.1} parent=0 // pred_check
    _
  $region7: #{ssm_synaptic_delay.1} parent=0 // pred_check_branch
    %18 = sbr.rel (0) target = $region9
  $region8: #{ssm_synaptic_delay.1} parent=0 // pred_region
    _
  $region9: #{ssm_synaptic_delay.1} parent=0 // pred_fallthru
    _
  // Predicated region
  $region10: #{ssm_synaptic_delay.1} parent=0 // pred_check
    _
  $region11: #{ssm_synaptic_delay.1} parent=0 // pred_check_branch
    %20 = sbr.rel (0) target = $region13
  $region12: #{ssm_synaptic_delay.1} parent=0 // pred_region
    _
  $region13: #{ssm_synaptic_delay.1} parent=0 // pred_fallthru
    _
  // Predicated region
  $region14: #{ssm_synaptic_delay.1} parent=0 // pred_check
    _
  $region15: #{ssm_synaptic_delay.1} parent=0 // pred_check_branch
    %22 = sbr.rel (0) target = $region17
  $region16: #{ssm_synaptic_delay.1} parent=0 // pred_region
    _
  $region17: #{ssm_synaptic_delay.1} parent=0 // pred_fallthru
    _
  // Predicated region
  $region18: #{ssm_synaptic_delay.1} parent=0 // pred_check
    _
  $region19: #{ssm_synaptic_delay.1} parent=0 // pred_check_branch
    %24 = sbr.rel (0) target = $region21
  $region20: #{ssm_synaptic_delay.1} parent=0 // pred_region
    _
  $region21: #{ssm_synaptic_delay.1} parent=0 // pred_fallthru
    _
  // Predicated region
  $region22: #{ssm_synaptic_delay.1} parent=0 // pred_check
    _
  $region23: #{ssm_synaptic_delay.1} parent=0 // pred_check_branch
    %26 = sbr.rel (0) target = $region25
  $region24: #{ssm_synaptic_delay.1} parent=0 // pred_region
    _
  $region25: #{ssm_synaptic_delay.1} parent=0 // pred_fallthru
    _
  // Predicated region
  $region26: #{ssm_synaptic_delay.1} parent=0 // pred_check
    _
  $region27: #{ssm_synaptic_delay.1} parent=0 // pred_check_branch
    %28 = sbr.rel (0) target = $region29
  $region28: #{ssm_synaptic_delay.1} parent=0 // pred_region
    _
  $region29: #{ssm_synaptic_delay.1} parent=0 // pred_fallthru
    _
  // Predicated region
  $region30: #{ssm_synaptic_delay.1} parent=0 // pred_check
    _
  $region31: #{ssm_synaptic_delay.1} parent=0 // pred_check_branch
    %30 = sbr.rel (0) target = $region33
  $region32: #{ssm_synaptic_delay.1} parent=0 // pred_region
    _
  $region33: #{ssm_synaptic_delay.1} parent=0 // pred_fallthru
    _
  // Predicated region
  $region34: #{ssm_synaptic_delay.1} parent=0 // pred_check
    _
  $region35: #{ssm_synaptic_delay.1} parent=0 // pred_check_branch
    %32 = sbr.rel (0) target = $region37
  $region36: #{ssm_synaptic_delay.1} parent=0 // pred_region
    _
  $region37: #{ssm_synaptic_delay.1} parent=0 // pred_fallthru
    _
  // Predicated region
  $region38: #{ssm_synaptic_delay.1} parent=0 // pred_check
    _
  $region39: #{ssm_synaptic_delay.1} parent=0 // pred_check_branch
    %34 = sbr.rel (0) target = $region41
  $region40: #{ssm_synaptic_delay.1} parent=0 // pred_region
    _
  $region41: #{ssm_synaptic_delay.1} parent=0 // pred_fallthru
    _
  %v36 = vld [vmem:[%s0] sm:$0xff]
  %v37 = vld [vmem:[%s0 + $0x8] sm:$0xff]
  %v38 = vpack.c.bf16 %v37, %v36
  %v39 = vld [vmem:[%s1] sm:$0xff]
  %v40 = vld [vmem:[%s1 + $0x8] sm:$0xff]
  %v41 = vld [vmem:[%s1 + $0x10] sm:$0xff]
  %v42 = vld [vmem:[%s1 + $0x18] sm:$0xff]
  %v43 = vld [vmem:[%s1 + $0x20] sm:$0xff]
  %v44 = vld [vmem:[%s1 + $0x28] sm:$0xff]
  %v45 = vld [vmem:[%s1 + $0x30] sm:$0xff]
  %v46 = vld [vmem:[%s1 + $0x38] sm:$0xff]
  %v47 = vld [vmem:[%s1 + $0x40] sm:$0xff]
  %v48 = vld [vmem:[%s1 + $0x48] sm:$0xff]
  %v49 = vld [vmem:[%s1 + $0x50] sm:$0xff]
  %v50 = vld [vmem:[%s1 + $0x58] sm:$0xff]
  %v51 = vld [vmem:[%s1 + $0x60] sm:$0xff]
  %v52 = vld [vmem:[%s1 + $0x68] sm:$0xff]
  %v53 = vld [vmem:[%s1 + $0x70] sm:$0xff]
  %v54 = vld [vmem:[%s1 + $0x78] sm:$0xff]
  %v55 = vld [vmem:[%s2] sm:$0x3]
  %v57 = vlaneseq
  %v58 = vshrl.u32 %v57, 7
  %v59 = vsub.s32 0, %v58
  %v60 = vrot.slane %v55, %v59
  %v61 = vlaneseq
  %v62 = vshrl.u32 %v61, 7
  %v63 = vsub.s32 1, %v62
  %v64 = vrot.slane %v55, %v63
  %v83 = vunpack.c.l.b16 %v39
  %v84 = vunpack.c.h.b16 %v39
  %v85 = vunpack.c.l.b16 %v40
  %v86 = vunpack.c.h.b16 %v40
  %v87 = vunpack.c.l.b16 %v41
  %v88 = vunpack.c.h.b16 %v41
  %v89 = vunpack.c.l.b16 %v42
  %v90 = vunpack.c.h.b16 %v42
  %v91 = vunpack.c.l.b16 %v43
  %v92 = vunpack.c.h.b16 %v43
  %v93 = vunpack.c.l.b16 %v44
  %v94 = vunpack.c.h.b16 %v44
  %v95 = vunpack.c.l.b16 %v45
  %v96 = vunpack.c.h.b16 %v45
  %v97 = vunpack.c.l.b16 %v46
  %v98 = vunpack.c.h.b16 %v46
  %v99 = vunpack.c.l.b16 %v47
  %v100 = vunpack.c.h.b16 %v47
  %v101 = vunpack.c.l.b16 %v48
  %v102 = vunpack.c.h.b16 %v48
  %v103 = vunpack.c.l.b16 %v49
  %v104 = vunpack.c.h.b16 %v49
  %v105 = vunpack.c.l.b16 %v50
  %v106 = vunpack.c.h.b16 %v50
  %v107 = vunpack.c.l.b16 %v51
  %v108 = vunpack.c.h.b16 %v51
  %v109 = vunpack.c.l.b16 %v52
  %v110 = vunpack.c.h.b16 %v52
  %v111 = vunpack.c.l.b16 %v53
  %v112 = vunpack.c.h.b16 %v53
  %v113 = vunpack.c.l.b16 %v54
  %v114 = vunpack.c.h.b16 %v54
  %v115 = vpack.c.b16 %v85, %v83
  %v116 = vpack.c.b16 %v86, %v84
  %v117 = vpack.c.b16 %v89, %v87
  %v118 = vpack.c.b16 %v90, %v88
  %v119 = vpack.c.b16 %v93, %v91
  %v120 = vpack.c.b16 %v94, %v92
  %v121 = vpack.c.b16 %v97, %v95
  %v122 = vpack.c.b16 %v98, %v96
  %v123 = vpack.c.b16 %v101, %v99
  %v124 = vpack.c.b16 %v102, %v100
  %v125 = vpack.c.b16 %v105, %v103
  %v126 = vpack.c.b16 %v106, %v104
  %v127 = vpack.c.b16 %v109, %v107
  %v128 = vpack.c.b16 %v110, %v108
  %v129 = vpack.c.b16 %v113, %v111
  %v130 = vpack.c.b16 %v114, %v112
  %147 = vmatprep.subr.bf16.mxu0 %v116
  %148 = vmatpush1.bf16.msra.mxu0 %v115
  %149 = vmatprep.subr.bf16.mxu0 %v118
  %150 = vmatpush1.bf16.msra.mxu0 %v117
  %151 = vmatprep.subr.bf16.mxu0 %v120
  %152 = vmatpush1.bf16.msra.mxu0 %v119
  %153 = vmatprep.subr.bf16.mxu0 %v122
  %154 = vmatpush1.bf16.msra.mxu0 %v121
  %155 = vmatprep.subr.bf16.mxu0 %v124
  %156 = vmatpush1.bf16.msra.mxu0 %v123
  %157 = vmatprep.subr.bf16.mxu0 %v126
  %158 = vmatpush1.bf16.msra.mxu0 %v125
  %159 = vmatprep.subr.bf16.mxu0 %v128
  %160 = vmatpush1.bf16.msra.mxu0 %v127
  %161 = vmatprep.subr.bf16.mxu0 %v130
  %162 = vmatpush1.bf16.msra.mxu0 %v129
  %163 = vmatprep.subr.bf16.mxu0 0
  %164 = vmatpush1.bf16.msra.mxu0 0
  %165 = vmatprep.subr.bf16.mxu0 0
  %166 = vmatpush1.bf16.msra.mxu0 0
  %167 = vmatprep.subr.bf16.mxu0 0
  %168 = vmatpush1.bf16.msra.mxu0 0
  %169 = vmatprep.subr.bf16.mxu0 0
  %170 = vmatpush1.bf16.msra.mxu0 0
  %171 = vmatprep.subr.bf16.mxu0 0
  %172 = vmatpush1.bf16.msra.mxu0 0
  %173 = vmatprep.subr.bf16.mxu0 0
  %174 = vmatpush1.bf16.msra.mxu0 0
  %175 = vmatprep.subr.bf16.mxu0 0
  %176 = vmatpush1.bf16.msra.mxu0 0
  %177 = vmatprep.subr.bf16.mxu0 0
  %178 = vmatpush1.bf16.msra.mxu0 0
  %179 = vmatprep.mubr.bf16.mxu0 0
  %180 = vmatmul.mubr.bf16.gmra.mrb[0].mxu0 %v38
  %v181 = vpop.f32.mrb[0].mxu0
  %v182 = vadd.f32 %v60, %v181
  %v183 = vpop.f32.mrb[0].mxu0
  %v184 = vadd.f32 %v64, %v183
  %v185 = vpop.f32.mrb[0].mxu0
  %v186 = vadd.f32 %v60, %v185
  %v187 = vpop.f32.mrb[0].mxu0
  %v188 = vadd.f32 %v64, %v187
  %189 = vdwg.mxu0
  %v190 = vxor.u32 %v184, 2147483648
  %v191 = vxor.u32 %v188, 2147483648
  %v192 = vmul.f32 %v190, 1.442695
  %v193 = vpow.pop %v192
  %v194 = vmul.f32 %v191, 1.442695
  %v195 = vpow.pop %v194
  %v196 = vadd.f32 %v193, 1.0
  %v197 = vadd.f32 %v195, 1.0
  %v198 = vrcp.pop %v196
  %v199 = vmul.f32 1.0, %v198
  %v200 = vrcp.pop %v197
  %v201 = vmul.f32 1.0, %v200
  %v202 = vmul.f32 %v199, %v182
  %v203 = vmul.f32 %v201, %v186
  %v204 = vpack.c.bf16 %v203, %v202
  %v205 = vld [vmem:[%s3] sm:$0xf]
  %v206 = vld [vmem:[%s3 + $0x4] sm:$0xf]
  %v207 = vld [vmem:[%s3 + $0x8] sm:$0xf]
  %v208 = vld [vmem:[%s3 + $0xc] sm:$0xf]
  %v209 = vld [vmem:[%s3 + $0x10] sm:$0xf]
  %v210 = vld [vmem:[%s3 + $0x14] sm:$0xf]
  %v211 = vld [vmem:[%s3 + $0x18] sm:$0xf]
  %v212 = vld [vmem:[%s3 + $0x1c] sm:$0xf]
  %v213 = vld [vmem:[%s3 + $0x20] sm:$0xf]
  %v214 = vld [vmem:[%s3 + $0x24] sm:$0xf]
  %v215 = vld [vmem:[%s3 + $0x28] sm:$0xf]
  %v216 = vld [vmem:[%s3 + $0x2c] sm:$0xf]
  %v217 = vld [vmem:[%s3 + $0x30] sm:$0xf]
  %v218 = vld [vmem:[%s3 + $0x34] sm:$0xf]
  %v219 = vld [vmem:[%s3 + $0x38] sm:$0xf]
  %v220 = vld [vmem:[%s3 + $0x3c] sm:$0xf]
  %v237 = vunpack.c.l.b16 %v205
  %v238 = vunpack.c.l.b16 %v206
  %v239 = vunpack.c.l.b16 %v207
  %v240 = vunpack.c.l.b16 %v208
  %v241 = vunpack.c.l.b16 %v209
  %v242 = vunpack.c.l.b16 %v210
  %v243 = vunpack.c.l.b16 %v211
  %v244 = vunpack.c.l.b16 %v212
  %v245 = vunpack.c.l.b16 %v213
  %v246 = vunpack.c.l.b16 %v214
  %v247 = vunpack.c.l.b16 %v215
  %v248 = vunpack.c.l.b16 %v216
  %v249 = vunpack.c.l.b16 %v217
  %v250 = vunpack.c.l.b16 %v218
  %v251 = vunpack.c.l.b16 %v219
  %v252 = vunpack.c.l.b16 %v220
  %v253 = vpack.c.b16 %v238, %v237
  %v254 = vpack.c.b16 %v240, %v239
  %v255 = vpack.c.b16 %v242, %v241
  %v256 = vpack.c.b16 %v244, %v243
  %v257 = vpack.c.b16 %v246, %v245
  %v258 = vpack.c.b16 %v248, %v247
  %v259 = vpack.c.b16 %v250, %v249
  %v260 = vpack.c.b16 %v252, %v251
  %269 = vmatprep.subr.bf16.mxu0 0
  %270 = vmatpush1.bf16.msra.mxu0 %v253
  %271 = vmatprep.subr.bf16.mxu0 0
  %272 = vmatpush1.bf16.msra.mxu0 %v254
  %273 = vmatprep.subr.bf16.mxu0 0
  %274 = vmatpush1.bf16.msra.mxu0 %v255
  %275 = vmatprep.subr.bf16.mxu0 0
  %276 = vmatpush1.bf16.msra.mxu0 %v256
  %277 = vmatprep.subr.bf16.mxu0 0
  %278 = vmatpush1.bf16.msra.mxu0 %v257
  %279 = vmatprep.subr.bf16.mxu0 0
  %280 = vmatpush1.bf16.msra.mxu0 %v258
  %281 = vmatprep.subr.bf16.mxu0 0
  %282 = vmatpush1.bf16.msra.mxu0 %v259
  %283 = vmatprep.subr.bf16.mxu0 0
  %284 = vmatpush1.bf16.msra.mxu0 %v260
  %285 = vmatprep.subr.bf16.mxu0 0
  %286 = vmatpush1.bf16.msra.mxu0 0
  %287 = vmatprep.subr.bf16.mxu0 0
  %288 = vmatpush1.bf16.msra.mxu0 0
  %289 = vmatprep.subr.bf16.mxu0 0
  %290 = vmatpush1.bf16.msra.mxu0 0
  %291 = vmatprep.subr.bf16.mxu0 0
  %292 = vmatpush1.bf16.msra.mxu0 0
  %293 = vmatprep.subr.bf16.mxu0 0
  %294 = vmatpush1.bf16.msra.mxu0 0
  %295 = vmatprep.subr.bf16.mxu0 0
  %296 = vmatpush1.bf16.msra.mxu0 0
  %297 = vmatprep.subr.bf16.mxu0 0
  %298 = vmatpush1.bf16.msra.mxu0 0
  %299 = vmatprep.subr.bf16.mxu0 0
  %300 = vmatpush1.bf16.msra.mxu0 0
  %301 = vmatprep.mubr.bf16.mxu0 0
  %302 = vmatmul.mubr.bf16.gmra.mrb[0].mxu0 %v204
  %v303 = vpop.f32.mrb[0].mxu0
  %v304 = vadd.f32 0.0, %v303
  %v305 = vpop.f32.mrb[0].mxu0
  %v306 = vpop.f32.mrb[0].mxu0
  %v307 = vadd.f32 0.0, %v306
  %v308 = vpop.f32.mrb[0].mxu0
  %309 = vdwg.mxu0
  %310 = vst [vmem:[#allocation2] sm:$0xff] %v304
  %311 = vst [vmem:[#allocation2 + $0x8] sm:$0xff] %v307
  %s312 = scalar_lea.vmem %s3, 64
  %v313 = vld [vmem:[%s312] sm:$0xf]
  %v314 = vld [vmem:[%s312 + $0x4] sm:$0xf]
  %v315 = vld [vmem:[%s312 + $0x8] sm:$0xf]
  %v316 = vld [vmem:[%s312 + $0xc] sm:$0xf]
  %v317 = vld [vmem:[%s312 + $0x10] sm:$0xf]
  %v318 = vld [vmem:[%s312 + $0x14] sm:$0xf]
  %v319 = vld [vmem:[%s312 + $0x18] sm:$0xf]
  %v320 = vld [vmem:[%s312 + $0x1c] sm:$0xf]
  %v321 = vld [vmem:[%s312 + $0x20] sm:$0xf]
  %v322 = vld [vmem:[%s312 + $0x24] sm:$0xf]
  %v323 = vld [vmem:[%s312 + $0x28] sm:$0xf]
  %v324 = vld [vmem:[%s312 + $0x2c] sm:$0xf]
  %v325 = vld [vmem:[%s312 + $0x30] sm:$0xf]
  %v326 = vld [vmem:[%s312 + $0x34] sm:$0xf]
  %v327 = vld [vmem:[%s312 + $0x38] sm:$0xf]
  %v328 = vld [vmem:[%s312 + $0x3c] sm:$0xf]
  %v345 = vunpack.c.l.b16 %v313
  %v346 = vunpack.c.l.b16 %v314
  %v347 = vunpack.c.l.b16 %v315
  %v348 = vunpack.c.l.b16 %v316
  %v349 = vunpack.c.l.b16 %v317
  %v350 = vunpack.c.l.b16 %v318
  %v351 = vunpack.c.l.b16 %v319
  %v352 = vunpack.c.l.b16 %v320
  %v353 = vunpack.c.l.b16 %v321
  %v354 = vunpack.c.l.b16 %v322
  %v355 = vunpack.c.l.b16 %v323
  %v356 = vunpack.c.l.b16 %v324
  %v357 = vunpack.c.l.b16 %v325
  %v358 = vunpack.c.l.b16 %v326
  %v359 = vunpack.c.l.b16 %v327
  %v360 = vunpack.c.l.b16 %v328
  %v361 = vpack.c.b16 %v346, %v345
  %v362 = vpack.c.b16 %v348, %v347
  %v363 = vpack.c.b16 %v350, %v349
  %v364 = vpack.c.b16 %v352, %v351
  %v365 = vpack.c.b16 %v354, %v353
  %v366 = vpack.c.b16 %v356, %v355
  %v367 = vpack.c.b16 %v358, %v357
  %v368 = vpack.c.b16 %v360, %v359
  %377 = vmatprep.subr.bf16.mxu0 0
  %378 = vmatpush1.bf16.msra.mxu0 %v361
  %379 = vmatprep.subr.bf16.mxu0 0
  %380 = vmatpush1.bf16.msra.mxu0 %v362
  %381 = vmatprep.subr.bf16.mxu0 0
  %382 = vmatpush1.bf16.msra.mxu0 %v363
  %383 = vmatprep.subr.bf16.mxu0 0
  %384 = vmatpush1.bf16.msra.mxu0 %v364
  %385 = vmatprep.subr.bf16.mxu0 0
  %386 = vmatpush1.bf16.msra.mxu0 %v365
  %387 = vmatprep.subr.bf16.mxu0 0
  %388 = vmatpush1.bf16.msra.mxu0 %v366
  %389 = vmatprep.subr.bf16.mxu0 0
  %390 = vmatpush1.bf16.msra.mxu0 %v367
  %391 = vmatprep.subr.bf16.mxu0 0
  %392 = vmatpush1.bf16.msra.mxu0 %v368
  %393 = vmatprep.subr.bf16.mxu0 0
  %394 = vmatpush1.bf16.msra.mxu0 0
  %395 = vmatprep.subr.bf16.mxu0 0
  %396 = vmatpush1.bf16.msra.mxu0 0
  %397 = vmatprep.subr.bf16.mxu0 0
  %398 = vmatpush1.bf16.msra.mxu0 0
  %399 = vmatprep.subr.bf16.mxu0 0
  %400 = vmatpush1.bf16.msra.mxu0 0
  %401 = vmatprep.subr.bf16.mxu0 0
  %402 = vmatpush1.bf16.msra.mxu0 0
  %403 = vmatprep.subr.bf16.mxu0 0
  %404 = vmatpush1.bf16.msra.mxu0 0
  %405 = vmatprep.subr.bf16.mxu0 0
  %406 = vmatpush1.bf16.msra.mxu0 0
  %407 = vmatprep.subr.bf16.mxu0 0
  %408 = vmatpush1.bf16.msra.mxu0 0
  %409 = vmatprep.mubr.bf16.mxu0 0
  %410 = vmatmul.mubr.bf16.gmra.mrb[0].mxu0 %v204
  %v411 = vpop.f32.mrb[0].mxu0
  %v412 = vadd.f32 0.0, %v411
  %v413 = vpop.f32.mrb[0].mxu0
  %v414 = vpop.f32.mrb[0].mxu0
  %v415 = vadd.f32 0.0, %v414
  %v416 = vpop.f32.mrb[0].mxu0
  %417 = vdwg.mxu0
  %418 = vst [vmem:[#allocation2 + $0x10] sm:$0xff] %v412
  %419 = vst [vmem:[#allocation2 + $0x18] sm:$0xff] %v415
  %s420 = scalar_lea.vmem %s3, 128
  %v421 = vld [vmem:[%s420] sm:$0xf]
  %v422 = vld [vmem:[%s420 + $0x4] sm:$0xf]
  %v423 = vld [vmem:[%s420 + $0x8] sm:$0xf]
  %v424 = vld [vmem:[%s420 + $0xc] sm:$0xf]
  %v425 = vld [vmem:[%s420 + $0x10] sm:$0xf]
  %v426 = vld [vmem:[%s420 + $0x14] sm:$0xf]
  %v427 = vld [vmem:[%s420 + $0x18] sm:$0xf]
  %v428 = vld [vmem:[%s420 + $0x1c] sm:$0xf]
  %v429 = vld [vmem:[%s420 + $0x20] sm:$0xf]
  %v430 = vld [vmem:[%s420 + $0x24] sm:$0xf]
  %v431 = vld [vmem:[%s420 + $0x28] sm:$0xf]
  %v432 = vld [vmem:[%s420 + $0x2c] sm:$0xf]
  %v433 = vld [vmem:[%s420 + $0x30] sm:$0xf]
  %v434 = vld [vmem:[%s420 + $0x34] sm:$0xf]
  %v435 = vld [vmem:[%s420 + $0x38] sm:$0xf]
  %v436 = vld [vmem:[%s420 + $0x3c] sm:$0xf]
  %v453 = vunpack.c.l.b16 %v421
  %v454 = vunpack.c.l.b16 %v422
  %v455 = vunpack.c.l.b16 %v423
  %v456 = vunpack.c.l.b16 %v424
  %v457 = vunpack.c.l.b16 %v425
  %v458 = vunpack.c.l.b16 %v426
  %v459 = vunpack.c.l.b16 %v427
  %v460 = vunpack.c.l.b16 %v428
  %v461 = vunpack.c.l.b16 %v429
  %v462 = vunpack.c.l.b16 %v430
  %v463 = vunpack.c.l.b16 %v431
  %v464 = vunpack.c.l.b16 %v432
  %v465 = vunpack.c.l.b16 %v433
  %v466 = vunpack.c.l.b16 %v434
  %v467 = vunpack.c.l.b16 %v435
  %v468 = vunpack.c.l.b16 %v436
  %v469 = vpack.c.b16 %v454, %v453
  %v470 = vpack.c.b16 %v456, %v455
  %v471 = vpack.c.b16 %v458, %v457
  %v472 = vpack.c.b16 %v460, %v459
  %v473 = vpack.c.b16 %v462, %v461
  %v474 = vpack.c.b16 %v464, %v463
  %v475 = vpack.c.b16 %v466, %v465
  %v476 = vpack.c.b16 %v468, %v467
  %485 = vmatprep.subr.bf16.mxu0 0
  %486 = vmatpush1.bf16.msra.mxu0 %v469
  %487 = vmatprep.subr.bf16.mxu0 0
  %488 = vmatpush1.bf16.msra.mxu0 %v470
  %489 = vmatprep.subr.bf16.mxu0 0
  %490 = vmatpush1.bf16.msra.mxu0 %v471
  %491 = vmatprep.subr.bf16.mxu0 0
  %492 = vmatpush1.bf16.msra.mxu0 %v472
  %493 = vmatprep.subr.bf16.mxu0 0
  %494 = vmatpush1.bf16.msra.mxu0 %v473
  %495 = vmatprep.subr.bf16.mxu0 0
  %496 = vmatpush1.bf16.msra.mxu0 %v474
  %497 = vmatprep.subr.bf16.mxu0 0
  %498 = vmatpush1.bf16.msra.mxu0 %v475
  %499 = vmatprep.subr.bf16.mxu0 0
  %500 = vmatpush1.bf16.msra.mxu0 %v476
  %501 = vmatprep.subr.bf16.mxu0 0
  %502 = vmatpush1.bf16.msra.mxu0 0
  %503 = vmatprep.subr.bf16.mxu0 0
  %504 = vmatpush1.bf16.msra.mxu0 0
  %505 = vmatprep.subr.bf16.mxu0 0
  %506 = vmatpush1.bf16.msra.mxu0 0
  %507 = vmatprep.subr.bf16.mxu0 0
  %508 = vmatpush1.bf16.msra.mxu0 0
  %509 = vmatprep.subr.bf16.mxu0 0
  %510 = vmatpush1.bf16.msra.mxu0 0
  %511 = vmatprep.subr.bf16.mxu0 0
  %512 = vmatpush1.bf16.msra.mxu0 0
  %513 = vmatprep.subr.bf16.mxu0 0
  %514 = vmatpush1.bf16.msra.mxu0 0
  %515 = vmatprep.subr.bf16.mxu0 0
  %516 = vmatpush1.bf16.msra.mxu0 0
  %517 = vmatprep.mubr.bf16.mxu0 0
  %518 = vmatmul.mubr.bf16.gmra.mrb[0].mxu0 %v204
  %v519 = vpop.f32.mrb[0].mxu0
  %v520 = vadd.f32 0.0, %v519
  %v521 = vpop.f32.mrb[0].mxu0
  %v522 = vpop.f32.mrb[0].mxu0
  %v523 = vadd.f32 0.0, %v522
  %v524 = vpop.f32.mrb[0].mxu0
  %525 = vdwg.mxu0
  %526 = vst [vmem:[#allocation2 + $0x20] sm:$0xff] %v520
  %527 = vst [vmem:[#allocation2 + $0x28] sm:$0xff] %v523
  %s528 = scalar_lea.vmem %s3, 192
  %v529 = vld [vmem:[%s528] sm:$0xf]
  %v530 = vld [vmem:[%s528 + $0x4] sm:$0xf]
  %v531 = vld [vmem:[%s528 + $0x8] sm:$0xf]
  %v532 = vld [vmem:[%s528 + $0xc] sm:$0xf]
  %v533 = vld [vmem:[%s528 + $0x10] sm:$0xf]
  %v534 = vld [vmem:[%s528 + $0x14] sm:$0xf]
  %v535 = vld [vmem:[%s528 + $0x18] sm:$0xf]
  %v536 = vld [vmem:[%s528 + $0x1c] sm:$0xf]
  %v537 = vld [vmem:[%s528 + $0x20] sm:$0xf]
  %v538 = vld [vmem:[%s528 + $0x24] sm:$0xf]
  %v539 = vld [vmem:[%s528 + $0x28] sm:$0xf]
  %v540 = vld [vmem:[%s528 + $0x2c] sm:$0xf]
  %v541 = vld [vmem:[%s528 + $0x30] sm:$0xf]
  %v542 = vld [vmem:[%s528 + $0x34] sm:$0xf]
  %v543 = vld [vmem:[%s528 + $0x38] sm:$0xf]
  %v544 = vld [vmem:[%s528 + $0x3c] sm:$0xf]
  %v561 = vunpack.c.l.b16 %v529
  %v562 = vunpack.c.l.b16 %v530
  %v563 = vunpack.c.l.b16 %v531
  %v564 = vunpack.c.l.b16 %v532
  %v565 = vunpack.c.l.b16 %v533
  %v566 = vunpack.c.l.b16 %v534
  %v567 = vunpack.c.l.b16 %v535
  %v568 = vunpack.c.l.b16 %v536
  %v569 = vunpack.c.l.b16 %v537
  %v570 = vunpack.c.l.b16 %v538
  %v571 = vunpack.c.l.b16 %v539
  %v572 = vunpack.c.l.b16 %v540
  %v573 = vunpack.c.l.b16 %v541
  %v574 = vunpack.c.l.b16 %v542
  %v575 = vunpack.c.l.b16 %v543
  %v576 = vunpack.c.l.b16 %v544
  %v577 = vpack.c.b16 %v562, %v561
  %v578 = vpack.c.b16 %v564, %v563
  %v579 = vpack.c.b16 %v566, %v565
  %v580 = vpack.c.b16 %v568, %v567
  %v581 = vpack.c.b16 %v570, %v569
  %v582 = vpack.c.b16 %v572, %v571
  %v583 = vpack.c.b16 %v574, %v573
  %v584 = vpack.c.b16 %v576, %v575
  %593 = vmatprep.subr.bf16.mxu0 0
  %594 = vmatpush1.bf16.msra.mxu0 %v577
  %595 = vmatprep.subr.bf16.mxu0 0
  %596 = vmatpush1.bf16.msra.mxu0 %v578
  %597 = vmatprep.subr.bf16.mxu0 0
  %598 = vmatpush1.bf16.msra.mxu0 %v579
  %599 = vmatprep.subr.bf16.mxu0 0
  %600 = vmatpush1.bf16.msra.mxu0 %v580
  %601 = vmatprep.subr.bf16.mxu0 0
  %602 = vmatpush1.bf16.msra.mxu0 %v581
  %603 = vmatprep.subr.bf16.mxu0 0
  %604 = vmatpush1.bf16.msra.mxu0 %v582
  %605 = vmatprep.subr.bf16.mxu0 0
  %606 = vmatpush1.bf16.msra.mxu0 %v583
  %607 = vmatprep.subr.bf16.mxu0 0
  %608 = vmatpush1.bf16.msra.mxu0 %v584
  %609 = vmatprep.subr.bf16.mxu0 0
  %610 = vmatpush1.bf16.msra.mxu0 0
  %611 = vmatprep.subr.bf16.mxu0 0
  %612 = vmatpush1.bf16.msra.mxu0 0
  %613 = vmatprep.subr.bf16.mxu0 0
  %614 = vmatpush1.bf16.msra.mxu0 0
  %615 = vmatprep.subr.bf16.mxu0 0
  %616 = vmatpush1.bf16.msra.mxu0 0
  %617 = vmatprep.subr.bf16.mxu0 0
  %618 = vmatpush1.bf16.msra.mxu0 0
  %619 = vmatprep.subr.bf16.mxu0 0
  %620 = vmatpush1.bf16.msra.mxu0 0
  %621 = vmatprep.subr.bf16.mxu0 0
  %622 = vmatpush1.bf16.msra.mxu0 0
  %623 = vmatprep.subr.bf16.mxu0 0
  %624 = vmatpush1.bf16.msra.mxu0 0
  %625 = vmatprep.mubr.bf16.mxu0 0
  %626 = vmatmul.mubr.bf16.gmra.mrb[0].mxu0 %v204
  %v627 = vpop.f32.mrb[0].mxu0
  %v628 = vadd.f32 0.0, %v627
  %v629 = vpop.f32.mrb[0].mxu0
  %v630 = vpop.f32.mrb[0].mxu0
  %v631 = vadd.f32 0.0, %v630
  %v632 = vpop.f32.mrb[0].mxu0
  %633 = vdwg.mxu0
  %634 = vst [vmem:[#allocation2 + $0x30] sm:$0xff] %v628
  %635 = vst [vmem:[#allocation2 + $0x38] sm:$0xff] %v631
  %s636 = scalar_lea.vmem %s3, 256
  %v637 = vld [vmem:[%s636] sm:$0xf]
  %v638 = vld [vmem:[%s636 + $0x4] sm:$0xf]
  %v639 = vld [vmem:[%s636 + $0x8] sm:$0xf]
  %v640 = vld [vmem:[%s636 + $0xc] sm:$0xf]
  %v641 = vld [vmem:[%s636 + $0x10] sm:$0xf]
  %v642 = vld [vmem:[%s636 + $0x14] sm:$0xf]
  %v643 = vld [vmem:[%s636 + $0x18] sm:$0xf]
  %v644 = vld [vmem:[%s636 + $0x1c] sm:$0xf]
  %v645 = vld [vmem:[%s636 + $0x20] sm:$0xf]
  %v646 = vld [vmem:[%s636 + $0x24] sm:$0xf]
  %v647 = vld [vmem:[%s636 + $0x28] sm:$0xf]
  %v648 = vld [vmem:[%s636 + $0x2c] sm:$0xf]
  %v649 = vld [vmem:[%s636 + $0x30] sm:$0xf]
  %v650 = vld [vmem:[%s636 + $0x34] sm:$0xf]
  %v651 = vld [vmem:[%s636 + $0x38] sm:$0xf]
  %v652 = vld [vmem:[%s636 + $0x3c] sm:$0xf]
  %v669 = vunpack.c.l.b16 %v637
  %v670 = vunpack.c.l.b16 %v638
  %v671 = vunpack.c.l.b16 %v639
  %v672 = vunpack.c.l.b16 %v640
  %v673 = vunpack.c.l.b16 %v641
  %v674 = vunpack.c.l.b16 %v642
  %v675 = vunpack.c.l.b16 %v643
  %v676 = vunpack.c.l.b16 %v644
  %v677 = vunpack.c.l.b16 %v645
  %v678 = vunpack.c.l.b16 %v646
  %v679 = vunpack.c.l.b16 %v647
  %v680 = vunpack.c.l.b16 %v648
  %v681 = vunpack.c.l.b16 %v649
  %v682 = vunpack.c.l.b16 %v650
  %v683 = vunpack.c.l.b16 %v651
  %v684 = vunpack.c.l.b16 %v652
  %v685 = vpack.c.b16 %v670, %v669
  %v686 = vpack.c.b16 %v672, %v671
  %v687 = vpack.c.b16 %v674, %v673
  %v688 = vpack.c.b16 %v676, %v675
  %v689 = vpack.c.b16 %v678, %v677
  %v690 = vpack.c.b16 %v680, %v679
  %v691 = vpack.c.b16 %v682, %v681
  %v692 = vpack.c.b16 %v684, %v683
  %701 = vmatprep.subr.bf16.mxu0 0
  %702 = vmatpush1.bf16.msra.mxu0 %v685
  %703 = vmatprep.subr.bf16.mxu0 0
  %704 = vmatpush1.bf16.msra.mxu0 %v686
  %705 = vmatprep.subr.bf16.mxu0 0
  %706 = vmatpush1.bf16.msra.mxu0 %v687
  %707 = vmatprep.subr.bf16.mxu0 0
  %708 = vmatpush1.bf16.msra.mxu0 %v688
  %709 = vmatprep.subr.bf16.mxu0 0
  %710 = vmatpush1.bf16.msra.mxu0 %v689
  %711 = vmatprep.subr.bf16.mxu0 0
  %712 = vmatpush1.bf16.msra.mxu0 %v690
  %713 = vmatprep.subr.bf16.mxu0 0
  %714 = vmatpush1.bf16.msra.mxu0 %v691
  %715 = vmatprep.subr.bf16.mxu0 0
  %716 = vmatpush1.bf16.msra.mxu0 %v692
  %717 = vmatprep.subr.bf16.mxu0 0
  %718 = vmatpush1.bf16.msra.mxu0 0
  %719 = vmatprep.subr.bf16.mxu0 0
  %720 = vmatpush1.bf16.msra.mxu0 0
  %721 = vmatprep.subr.bf16.mxu0 0
  %722 = vmatpush1.bf16.msra.mxu0 0
  %723 = vmatprep.subr.bf16.mxu0 0
  %724 = vmatpush1.bf16.msra.mxu0 0
  %725 = vmatprep.subr.bf16.mxu0 0
  %726 = vmatpush1.bf16.msra.mxu0 0
  %727 = vmatprep.subr.bf16.mxu0 0
  %728 = vmatpush1.bf16.msra.mxu0 0
  %729 = vmatprep.subr.bf16.mxu0 0
  %730 = vmatpush1.bf16.msra.mxu0 0
  %731 = vmatprep.subr.bf16.mxu0 0
  %732 = vmatpush1.bf16.msra.mxu0 0
  %733 = vmatprep.mubr.bf16.mxu0 0
  %734 = vmatmul.mubr.bf16.gmra.mrb[0].mxu0 %v204
  %v735 = vpop.f32.mrb[0].mxu0
  %v736 = vadd.f32 0.0, %v735
  %v737 = vpop.f32.mrb[0].mxu0
  %v738 = vpop.f32.mrb[0].mxu0
  %v739 = vadd.f32 0.0, %v738
  %v740 = vpop.f32.mrb[0].mxu0
  %741 = vdwg.mxu0
  %742 = vst [vmem:[#allocation2 + $0x40] sm:$0xff] %v736
  %743 = vst [vmem:[#allocation2 + $0x48] sm:$0xff] %v739
  %s744 = scalar_lea.vmem %s3, 320
  %v745 = vld [vmem:[%s744] sm:$0xf]
  %v746 = vld [vmem:[%s744 + $0x4] sm:$0xf]
  %v747 = vld [vmem:[%s744 + $0x8] sm:$0xf]
  %v748 = vld [vmem:[%s744 + $0xc] sm:$0xf]
  %v749 = vld [vmem:[%s744 + $0x10] sm:$0xf]
  %v750 = vld [vmem:[%s744 + $0x14] sm:$0xf]
  %v751 = vld [vmem:[%s744 + $0x18] sm:$0xf]
  %v752 = vld [vmem:[%s744 + $0x1c] sm:$0xf]
  %v753 = vld [vmem:[%s744 + $0x20] sm:$0xf]
  %v754 = vld [vmem:[%s744 + $0x24] sm:$0xf]
  %v755 = vld [vmem:[%s744 + $0x28] sm:$0xf]
  %v756 = vld [vmem:[%s744 + $0x2c] sm:$0xf]
  %v757 = vld [vmem:[%s744 + $0x30] sm:$0xf]
  %v758 = vld [vmem:[%s744 + $0x34] sm:$0xf]
  %v759 = vld [vmem:[%s744 + $0x38] sm:$0xf]
  %v760 = vld [vmem:[%s744 + $0x3c] sm:$0xf]
  %v777 = vunpack.c.l.b16 %v745
  %v778 = vunpack.c.l.b16 %v746
  %v779 = vunpack.c.l.b16 %v747
  %v780 = vunpack.c.l.b16 %v748
  %v781 = vunpack.c.l.b16 %v749
  %v782 = vunpack.c.l.b16 %v750
  %v783 = vunpack.c.l.b16 %v751
  %v784 = vunpack.c.l.b16 %v752
  %v785 = vunpack.c.l.b16 %v753
  %v786 = vunpack.c.l.b16 %v754
  %v787 = vunpack.c.l.b16 %v755
  %v788 = vunpack.c.l.b16 %v756
  %v789 = vunpack.c.l.b16 %v757
  %v790 = vunpack.c.l.b16 %v758
  %v791 = vunpack.c.l.b16 %v759
  %v792 = vunpack.c.l.b16 %v760
  %v793 = vpack.c.b16 %v778, %v777
  %v794 = vpack.c.b16 %v780, %v779
  %v795 = vpack.c.b16 %v782, %v781
  %v796 = vpack.c.b16 %v784, %v783
  %v797 = vpack.c.b16 %v786, %v785
  %v798 = vpack.c.b16 %v788, %v787
  %v799 = vpack.c.b16 %v790, %v789
  %v800 = vpack.c.b16 %v792, %v791
  %809 = vmatprep.subr.bf16.mxu0 0
  %810 = vmatpush1.bf16.msra.mxu0 %v793
  %811 = vmatprep.subr.bf16.mxu0 0
  %812 = vmatpush1.bf16.msra.mxu0 %v794
  %813 = vmatprep.subr.bf16.mxu0 0
  %814 = vmatpush1.bf16.msra.mxu0 %v795
  %815 = vmatprep.subr.bf16.mxu0 0
  %816 = vmatpush1.bf16.msra.mxu0 %v796
  %817 = vmatprep.subr.bf16.mxu0 0
  %818 = vmatpush1.bf16.msra.mxu0 %v797
  %819 = vmatprep.subr.bf16.mxu0 0
  %820 = vmatpush1.bf16.msra.mxu0 %v798
  %821 = vmatprep.subr.bf16.mxu0 0
  %822 = vmatpush1.bf16.msra.mxu0 %v799
  %823 = vmatprep.subr.bf16.mxu0 0
  %824 = vmatpush1.bf16.msra.mxu0 %v800
  %825 = vmatprep.subr.bf16.mxu0 0
  %826 = vmatpush1.bf16.msra.mxu0 0
  %827 = vmatprep.subr.bf16.mxu0 0
  %828 = vmatpush1.bf16.msra.mxu0 0
  %829 = vmatprep.subr.bf16.mxu0 0
  %830 = vmatpush1.bf16.msra.mxu0 0
  %831 = vmatprep.subr.bf16.mxu0 0
  %832 = vmatpush1.bf16.msra.mxu0 0
  %833 = vmatprep.subr.bf16.mxu0 0
  %834 = vmatpush1.bf16.msra.mxu0 0
  %835 = vmatprep.subr.bf16.mxu0 0
  %836 = vmatpush1.bf16.msra.mxu0 0
  %837 = vmatprep.subr.bf16.mxu0 0
  %838 = vmatpush1.bf16.msra.mxu0 0
  %839 = vmatprep.subr.bf16.mxu0 0
  %840 = vmatpush1.bf16.msra.mxu0 0
  %841 = vmatprep.mubr.bf16.mxu0 0
  %842 = vmatmul.mubr.bf16.gmra.mrb[0].mxu0 %v204
  %v843 = vpop.f32.mrb[0].mxu0
  %v844 = vadd.f32 0.0, %v843
  %v845 = vpop.f32.mrb[0].mxu0
  %v846 = vpop.f32.mrb[0].mxu0
  %v847 = vadd.f32 0.0, %v846
  %v848 = vpop.f32.mrb[0].mxu0
  %849 = vdwg.mxu0
  %850 = vst [vmem:[#allocation2 + $0x50] sm:$0xff] %v844
  %851 = vst [vmem:[#allocation2 + $0x58] sm:$0xff] %v847
  %s852 = scalar_lea.vmem %s3, 384
  %v853 = vld [vmem:[%s852] sm:$0xf]
  %v854 = vld [vmem:[%s852 + $0x4] sm:$0xf]
  %v855 = vld [vmem:[%s852 + $0x8] sm:$0xf]
  %v856 = vld [vmem:[%s852 + $0xc] sm:$0xf]
  %v857 = vld [vmem:[%s852 + $0x10] sm:$0xf]
  %v858 = vld [vmem:[%s852 + $0x14] sm:$0xf]
  %v859 = vld [vmem:[%s852 + $0x18] sm:$0xf]
  %v860 = vld [vmem:[%s852 + $0x1c] sm:$0xf]
  %v861 = vld [vmem:[%s852 + $0x20] sm:$0xf]
  %v862 = vld [vmem:[%s852 + $0x24] sm:$0xf]
  %v863 = vld [vmem:[%s852 + $0x28] sm:$0xf]
  %v864 = vld [vmem:[%s852 + $0x2c] sm:$0xf]
  %v865 = vld [vmem:[%s852 + $0x30] sm:$0xf]
  %v866 = vld [vmem:[%s852 + $0x34] sm:$0xf]
  %v867 = vld [vmem:[%s852 + $0x38] sm:$0xf]
  %v868 = vld [vmem:[%s852 + $0x3c] sm:$0xf]
  %v885 = vunpack.c.l.b16 %v853
  %v886 = vunpack.c.l.b16 %v854
  %v887 = vunpack.c.l.b16 %v855
  %v888 = vunpack.c.l.b16 %v856
  %v889 = vunpack.c.l.b16 %v857
  %v890 = vunpack.c.l.b16 %v858
  %v891 = vunpack.c.l.b16 %v859
  %v892 = vunpack.c.l.b16 %v860
  %v893 = vunpack.c.l.b16 %v861
  %v894 = vunpack.c.l.b16 %v862
  %v895 = vunpack.c.l.b16 %v863
  %v896 = vunpack.c.l.b16 %v864
  %v897 = vunpack.c.l.b16 %v865
  %v898 = vunpack.c.l.b16 %v866
  %v899 = vunpack.c.l.b16 %v867
  %v900 = vunpack.c.l.b16 %v868
  %v901 = vpack.c.b16 %v886, %v885
  %v902 = vpack.c.b16 %v888, %v887
  %v903 = vpack.c.b16 %v890, %v889
  %v904 = vpack.c.b16 %v892, %v891
  %v905 = vpack.c.b16 %v894, %v893
  %v906 = vpack.c.b16 %v896, %v895
  %v907 = vpack.c.b16 %v898, %v897
  %v908 = vpack.c.b16 %v900, %v899
  %917 = vmatprep.subr.bf16.mxu0 0
  %918 = vmatpush1.bf16.msra.mxu0 %v901
  %919 = vmatprep.subr.bf16.mxu0 0
  %920 = vmatpush1.bf16.msra.mxu0 %v902
  %921 = vmatprep.subr.bf16.mxu0 0
  %922 = vmatpush1.bf16.msra.mxu0 %v903
  %923 = vmatprep.subr.bf16.mxu0 0
  %924 = vmatpush1.bf16.msra.mxu0 %v904
  %925 = vmatprep.subr.bf16.mxu0 0
  %926 = vmatpush1.bf16.msra.mxu0 %v905
  %927 = vmatprep.subr.bf16.mxu0 0
  %928 = vmatpush1.bf16.msra.mxu0 %v906
  %929 = vmatprep.subr.bf16.mxu0 0
  %930 = vmatpush1.bf16.msra.mxu0 %v907
  %931 = vmatprep.subr.bf16.mxu0 0
  %932 = vmatpush1.bf16.msra.mxu0 %v908
  %933 = vmatprep.subr.bf16.mxu0 0
  %934 = vmatpush1.bf16.msra.mxu0 0
  %935 = vmatprep.subr.bf16.mxu0 0
  %936 = vmatpush1.bf16.msra.mxu0 0
  %937 = vmatprep.subr.bf16.mxu0 0
  %938 = vmatpush1.bf16.msra.mxu0 0
  %939 = vmatprep.subr.bf16.mxu0 0
  %940 = vmatpush1.bf16.msra.mxu0 0
  %941 = vmatprep.subr.bf16.mxu0 0
  %942 = vmatpush1.bf16.msra.mxu0 0
  %943 = vmatprep.subr.bf16.mxu0 0
  %944 = vmatpush1.bf16.msra.mxu0 0
  %945 = vmatprep.subr.bf16.mxu0 0
  %946 = vmatpush1.bf16.msra.mxu0 0
  %947 = vmatprep.subr.bf16.mxu0 0
  %948 = vmatpush1.bf16.msra.mxu0 0
  %949 = vmatprep.mubr.bf16.mxu0 0
  %950 = vmatmul.mubr.bf16.gmra.mrb[0].mxu0 %v204
  %v951 = vpop.f32.mrb[0].mxu0
  %v952 = vadd.f32 0.0, %v951
  %v953 = vpop.f32.mrb[0].mxu0
  %v954 = vpop.f32.mrb[0].mxu0
  %v955 = vadd.f32 0.0, %v954
  %v956 = vpop.f32.mrb[0].mxu0
  %957 = vdwg.mxu0
  %958 = vst [vmem:[#allocation2 + $0x60] sm:$0xff] %v952
  %959 = vst [vmem:[#allocation2 + $0x68] sm:$0xff] %v955
  %s960 = scalar_lea.vmem %s3, 448
  %v961 = vld [vmem:[%s960] sm:$0xf]
  %v962 = vld [vmem:[%s960 + $0x4] sm:$0xf]
  %v963 = vld [vmem:[%s960 + $0x8] sm:$0xf]
  %v964 = vld [vmem:[%s960 + $0xc] sm:$0xf]
  %v965 = vld [vmem:[%s960 + $0x10] sm:$0xf]
  %v966 = vld [vmem:[%s960 + $0x14] sm:$0xf]
  %v967 = vld [vmem:[%s960 + $0x18] sm:$0xf]
  %v968 = vld [vmem:[%s960 + $0x1c] sm:$0xf]
  %v969 = vld [vmem:[%s960 + $0x20] sm:$0xf]
  %v970 = vld [vmem:[%s960 + $0x24] sm:$0xf]
  %v971 = vld [vmem:[%s960 + $0x28] sm:$0xf]
  %v972 = vld [vmem:[%s960 + $0x2c] sm:$0xf]
  %v973 = vld [vmem:[%s960 + $0x30] sm:$0xf]
  %v974 = vld [vmem:[%s960 + $0x34] sm:$0xf]
  %v975 = vld [vmem:[%s960 + $0x38] sm:$0xf]
  %v976 = vld [vmem:[%s960 + $0x3c] sm:$0xf]
  %v993 = vunpack.c.l.b16 %v961
  %v994 = vunpack.c.l.b16 %v962
  %v995 = vunpack.c.l.b16 %v963
  %v996 = vunpack.c.l.b16 %v964
  %v997 = vunpack.c.l.b16 %v965
  %v998 = vunpack.c.l.b16 %v966
  %v999 = vunpack.c.l.b16 %v967
  %v1000 = vunpack.c.l.b16 %v968
  %v1001 = vunpack.c.l.b16 %v969
  %v1002 = vunpack.c.l.b16 %v970
  %v1003 = vunpack.c.l.b16 %v971
  %v1004 = vunpack.c.l.b16 %v972
  %v1005 = vunpack.c.l.b16 %v973
  %v1006 = vunpack.c.l.b16 %v974
  %v1007 = vunpack.c.l.b16 %v975
  %v1008 = vunpack.c.l.b16 %v976
  %v1009 = vpack.c.b16 %v994, %v993
  %v1010 = vpack.c.b16 %v996, %v995
  %v1011 = vpack.c.b16 %v998, %v997
  %v1012 = vpack.c.b16 %v1000, %v999
  %v1013 = vpack.c.b16 %v1002, %v1001
  %v1014 = vpack.c.b16 %v1004, %v1003
  %v1015 = vpack.c.b16 %v1006, %v1005
  %v1016 = vpack.c.b16 %v1008, %v1007
  %1025 = vmatprep.subr.bf16.mxu0 0
  %1026 = vmatpush1.bf16.msra.mxu0 %v1009
  %1027 = vmatprep.subr.bf16.mxu0 0
  %1028 = vmatpush1.bf16.msra.mxu0 %v1010
  %1029 = vmatprep.subr.bf16.mxu0 0
  %1030 = vmatpush1.bf16.msra.mxu0 %v1011
  %1031 = vmatprep.subr.bf16.mxu0 0
  %1032 = vmatpush1.bf16.msra.mxu0 %v1012
  %1033 = vmatprep.subr.bf16.mxu0 0
  %1034 = vmatpush1.bf16.msra.mxu0 %v1013
  %1035 = vmatprep.subr.bf16.mxu0 0
  %1036 = vmatpush1.bf16.msra.mxu0 %v1014
  %1037 = vmatprep.subr.bf16.mxu0 0
  %1038 = vmatpush1.bf16.msra.mxu0 %v1015
  %1039 = vmatprep.subr.bf16.mxu0 0
  %1040 = vmatpush1.bf16.msra.mxu0 %v1016
  %1041 = vmatprep.subr.bf16.mxu0 0
  %1042 = vmatpush1.bf16.msra.mxu0 0
  %1043 = vmatprep.subr.bf16.mxu0 0
  %1044 = vmatpush1.bf16.msra.mxu0 0
  %1045 = vmatprep.subr.bf16.mxu0 0
  %1046 = vmatpush1.bf16.msra.mxu0 0
  %1047 = vmatprep.subr.bf16.mxu0 0
  %1048 = vmatpush1.bf16.msra.mxu0 0
  %1049 = vmatprep.subr.bf16.mxu0 0
  %1050 = vmatpush1.bf16.msra.mxu0 0
  %1051 = vmatprep.subr.bf16.mxu0 0
  %1052 = vmatpush1.bf16.msra.mxu0 0
  %1053 = vmatprep.subr.bf16.mxu0 0
  %1054 = vmatpush1.bf16.msra.mxu0 0
  %1055 = vmatprep.subr.bf16.mxu0 0
  %1056 = vmatpush1.bf16.msra.mxu0 0
  %1057 = vmatprep.mubr.bf16.mxu0 0
  %1058 = vmatmul.mubr.bf16.gmra.mrb[0].mxu0 %v204
  %v1059 = vpop.f32.mrb[0].mxu0
  %v1060 = vadd.f32 0.0, %v1059
  %v1061 = vpop.f32.mrb[0].mxu0
  %v1062 = vpop.f32.mrb[0].mxu0
  %v1063 = vadd.f32 0.0, %v1062
  %v1064 = vpop.f32.mrb[0].mxu0
  %1065 = vdwg.mxu0
  %1066 = vst [vmem:[#allocation2 + $0x70] sm:$0xff] %v1060
  %1067 = vst [vmem:[#allocation2 + $0x78] sm:$0xff] %v1063
  %s1068 = scalar_lea.vmem %s3, 512
  %v1069 = vld [vmem:[%s1068] sm:$0xf]
  %v1070 = vld [vmem:[%s1068 + $0x4] sm:$0xf]
  %v1071 = vld [vmem:[%s1068 + $0x8] sm:$0xf]
  %v1072 = vld [vmem:[%s1068 + $0xc] sm:$0xf]
  %v1073 = vld [vmem:[%s1068 + $0x10] sm:$0xf]
  %v1074 = vld [vmem:[%s1068 + $0x14] sm:$0xf]
  %v1075 = vld [vmem:[%s1068 + $0x18] sm:$0xf]
  %v1076 = vld [vmem:[%s1068 + $0x1c] sm:$0xf]
  %v1077 = vld [vmem:[%s1068 + $0x20] sm:$0xf]
  %v1078 = vld [vmem:[%s1068 + $0x24] sm:$0xf]
  %v1079 = vld [vmem:[%s1068 + $0x28] sm:$0xf]
  %v1080 = vld [vmem:[%s1068 + $0x2c] sm:$0xf]
  %v1081 = vld [vmem:[%s1068 + $0x30] sm:$0xf]
  %v1082 = vld [vmem:[%s1068 + $0x34] sm:$0xf]
  %v1083 = vld [vmem:[%s1068 + $0x38] sm:$0xf]
  %v1084 = vld [vmem:[%s1068 + $0x3c] sm:$0xf]
  %v1101 = vunpack.c.l.b16 %v1069
  %v1102 = vunpack.c.l.b16 %v1070
  %v1103 = vunpack.c.l.b16 %v1071
  %v1104 = vunpack.c.l.b16 %v1072
  %v1105 = vunpack.c.l.b16 %v1073
  %v1106 = vunpack.c.l.b16 %v1074
  %v1107 = vunpack.c.l.b16 %v1075
  %v1108 = vunpack.c.l.b16 %v1076
  %v1109 = vunpack.c.l.b16 %v1077
  %v1110 = vunpack.c.l.b16 %v1078
  %v1111 = vunpack.c.l.b16 %v1079
  %v1112 = vunpack.c.l.b16 %v1080
  %v1113 = vunpack.c.l.b16 %v1081
  %v1114 = vunpack.c.l.b16 %v1082
  %v1115 = vunpack.c.l.b16 %v1083
  %v1116 = vunpack.c.l.b16 %v1084
  %v1117 = vpack.c.b16 %v1102, %v1101
  %v1118 = vpack.c.b16 %v1104, %v1103
  %v1119 = vpack.c.b16 %v1106, %v1105
  %v1120 = vpack.c.b16 %v1108, %v1107
  %v1121 = vpack.c.b16 %v1110, %v1109
  %v1122 = vpack.c.b16 %v1112, %v1111
  %v1123 = vpack.c.b16 %v1114, %v1113
  %v1124 = vpack.c.b16 %v1116, %v1115
  %1133 = vmatprep.subr.bf16.mxu0 0
  %1134 = vmatpush1.bf16.msra.mxu0 %v1117
  %1135 = vmatprep.subr.bf16.mxu0 0
  %1136 = vmatpush1.bf16.msra.mxu0 %v1118
  %1137 = vmatprep.subr.bf16.mxu0 0
  %1138 = vmatpush1.bf16.msra.mxu0 %v1119
  %1139 = vmatprep.subr.bf16.mxu0 0
  %1140 = vmatpush1.bf16.msra.mxu0 %v1120
  %1141 = vmatprep.subr.bf16.mxu0 0
  %1142 = vmatpush1.bf16.msra.mxu0 %v1121
  %1143 = vmatprep.subr.bf16.mxu0 0
  %1144 = vmatpush1.bf16.msra.mxu0 %v1122
  %1145 = vmatprep.subr.bf16.mxu0 0
  %1146 = vmatpush1.bf16.msra.mxu0 %v1123
  %1147 = vmatprep.subr.bf16.mxu0 0
  %1148 = vmatpush1.bf16.msra.mxu0 %v1124
  %1149 = vmatprep.subr.bf16.mxu0 0
  %1150 = vmatpush1.bf16.msra.mxu0 0
  %1151 = vmatprep.subr.bf16.mxu0 0
  %1152 = vmatpush1.bf16.msra.mxu0 0
  %1153 = vmatprep.subr.bf16.mxu0 0
  %1154 = vmatpush1.bf16.msra.mxu0 0
  %1155 = vmatprep.subr.bf16.mxu0 0
  %1156 = vmatpush1.bf16.msra.mxu0 0
  %1157 = vmatprep.subr.bf16.mxu0 0
  %1158 = vmatpush1.bf16.msra.mxu0 0
  %1159 = vmatprep.subr.bf16.mxu0 0
  %1160 = vmatpush1.bf16.msra.mxu0 0
  %1161 = vmatprep.subr.bf16.mxu0 0
  %1162 = vmatpush1.bf16.msra.mxu0 0
  %1163 = vmatprep.subr.bf16.mxu0 0
  %1164 = vmatpush1.bf16.msra.mxu0 0
  %1165 = vmatprep.mubr.bf16.mxu0 0
  %1166 = vmatmul.mubr.bf16.gmra.mrb[0].mxu0 %v204
  %v1167 = vpop.f32.mrb[0].mxu0
  %v1168 = vadd.f32 0.0, %v1167
  %v1169 = vpop.f32.mrb[0].mxu0
  %v1170 = vpop.f32.mrb[0].mxu0
  %v1171 = vadd.f32 0.0, %v1170
  %v1172 = vpop.f32.mrb[0].mxu0
  %1173 = vdwg.mxu0
  %1174 = vst [vmem:[#allocation2 + $0x80] sm:$0xff] %v1168
  %1175 = vst [vmem:[#allocation2 + $0x88] sm:$0xff] %v1171
  %s1176 = scalar_lea.vmem %s3, 576
  %v1177 = vld [vmem:[%s1176] sm:$0xf]
  %v1178 = vld [vmem:[%s1176 + $0x4] sm:$0xf]
  %v1179 = vld [vmem:[%s1176 + $0x8] sm:$0xf]
  %v1180 = vld [vmem:[%s1176 + $0xc] sm:$0xf]
  %v1181 = vld [vmem:[%s1176 + $0x10] sm:$0xf]
  %v1182 = vld [vmem:[%s1176 + $0x14] sm:$0xf]
  %v1183 = vld [vmem:[%s1176 + $0x18] sm:$0xf]
  %v1184 = vld [vmem:[%s1176 + $0x1c] sm:$0xf]
  %v1185 = vld [vmem:[%s1176 + $0x20] sm:$0xf]
  %v1186 = vld [vmem:[%s1176 + $0x24] sm:$0xf]
  %v1187 = vld [vmem:[%s1176 + $0x28] sm:$0xf]
  %v1188 = vld [vmem:[%s1176 + $0x2c] sm:$0xf]
  %v1189 = vld [vmem:[%s1176 + $0x30] sm:$0xf]
  %v1190 = vld [vmem:[%s1176 + $0x34] sm:$0xf]
  %v1191 = vld [vmem:[%s1176 + $0x38] sm:$0xf]
  %v1192 = vld [vmem:[%s1176 + $0x3c] sm:$0xf]
  %v1209 = vunpack.c.l.b16 %v1177
  %v1210 = vunpack.c.l.b16 %v1178
  %v1211 = vunpack.c.l.b16 %v1179
  %v1212 = vunpack.c.l.b16 %v1180
  %v1213 = vunpack.c.l.b16 %v1181
  %v1214 = vunpack.c.l.b16 %v1182
  %v1215 = vunpack.c.l.b16 %v1183
  %v1216 = vunpack.c.l.b16 %v1184
  %v1217 = vunpack.c.l.b16 %v1185
  %v1218 = vunpack.c.l.b16 %v1186
  %v1219 = vunpack.c.l.b16 %v1187
  %v1220 = vunpack.c.l.b16 %v1188
  %v1221 = vunpack.c.l.b16 %v1189
  %v1222 = vunpack.c.l.b16 %v1190
  %v1223 = vunpack.c.l.b16 %v1191
  %v1224 = vunpack.c.l.b16 %v1192
  %v1225 = vpack.c.b16 %v1210, %v1209
  %v1226 = vpack.c.b16 %v1212, %v1211
  %v1227 = vpack.c.b16 %v1214, %v1213
  %v1228 = vpack.c.b16 %v1216, %v1215
  %v1229 = vpack.c.b16 %v1218, %v1217
  %v1230 = vpack.c.b16 %v1220, %v1219
  %v1231 = vpack.c.b16 %v1222, %v1221
  %v1232 = vpack.c.b16 %v1224, %v1223
  %1241 = vmatprep.subr.bf16.mxu0 0
  %1242 = vmatpush1.bf16.msra.mxu0 %v1225
  %1243 = vmatprep.subr.bf16.mxu0 0
  %1244 = vmatpush1.bf16.msra.mxu0 %v1226
  %1245 = vmatprep.subr.bf16.mxu0 0
  %1246 = vmatpush1.bf16.msra.mxu0 %v1227
  %1247 = vmatprep.subr.bf16.mxu0 0
  %1248 = vmatpush1.bf16.msra.mxu0 %v1228
  %1249 = vmatprep.subr.bf16.mxu0 0
  %1250 = vmatpush1.bf16.msra.mxu0 %v1229
  %1251 = vmatprep.subr.bf16.mxu0 0
  %1252 = vmatpush1.bf16.msra.mxu0 %v1230
  %1253 = vmatprep.subr.bf16.mxu0 0
  %1254 = vmatpush1.bf16.msra.mxu0 %v1231
  %1255 = vmatprep.subr.bf16.mxu0 0
  %1256 = vmatpush1.bf16.msra.mxu0 %v1232
  %1257 = vmatprep.subr.bf16.mxu0 0
  %1258 = vmatpush1.bf16.msra.mxu0 0
  %1259 = vmatprep.subr.bf16.mxu0 0
  %1260 = vmatpush1.bf16.msra.mxu0 0
  %1261 = vmatprep.subr.bf16.mxu0 0
  %1262 = vmatpush1.bf16.msra.mxu0 0
  %1263 = vmatprep.subr.bf16.mxu0 0
  %1264 = vmatpush1.bf16.msra.mxu0 0
  %1265 = vmatprep.subr.bf16.mxu0 0
  %1266 = vmatpush1.bf16.msra.mxu0 0
  %1267 = vmatprep.subr.bf16.mxu0 0
  %1268 = vmatpush1.bf16.msra.mxu0 0
  %1269 = vmatprep.subr.bf16.mxu0 0
  %1270 = vmatpush1.bf16.msra.mxu0 0
  %1271 = vmatprep.subr.bf16.mxu0 0
  %1272 = vmatpush1.bf16.msra.mxu0 0
  %1273 = vmatprep.mubr.bf16.mxu0 0
  %1274 = vmatmul.mubr.bf16.gmra.mrb[0].mxu0 %v204
  %v1275 = vpop.f32.mrb[0].mxu0
  %v1276 = vadd.f32 0.0, %v1275
  %v1277 = vpop.f32.mrb[0].mxu0
  %v1278 = vpop.f32.mrb[0].mxu0
  %v1279 = vadd.f32 0.0, %v1278
  %v1280 = vpop.f32.mrb[0].mxu0
  %1281 = vdwg.mxu0
  %1282 = vst [vmem:[#allocation2 + $0x90] sm:$0xff] %v1276
  %1283 = vst [vmem:[#allocation2 + $0x98] sm:$0xff] %v1279
  %s1284 = scalar_lea.vmem %s3, 640
  %v1285 = vld [vmem:[%s1284] sm:$0xf]
  %v1286 = vld [vmem:[%s1284 + $0x4] sm:$0xf]
  %v1287 = vld [vmem:[%s1284 + $0x8] sm:$0xf]
  %v1288 = vld [vmem:[%s1284 + $0xc] sm:$0xf]
  %v1289 = vld [vmem:[%s1284 + $0x10] sm:$0xf]
  %v1290 = vld [vmem:[%s1284 + $0x14] sm:$0xf]
  %v1291 = vld [vmem:[%s1284 + $0x18] sm:$0xf]
  %v1292 = vld [vmem:[%s1284 + $0x1c] sm:$0xf]
  %v1293 = vld [vmem:[%s1284 + $0x20] sm:$0xf]
  %v1294 = vld [vmem:[%s1284 + $0x24] sm:$0xf]
  %v1295 = vld [vmem:[%s1284 + $0x28] sm:$0xf]
  %v1296 = vld [vmem:[%s1284 + $0x2c] sm:$0xf]
  %v1297 = vld [vmem:[%s1284 + $0x30] sm:$0xf]
  %v1298 = vld [vmem:[%s1284 + $0x34] sm:$0xf]
  %v1299 = vld [vmem:[%s1284 + $0x38] sm:$0xf]
  %v1300 = vld [vmem:[%s1284 + $0x3c] sm:$0xf]
  %v1317 = vunpack.c.l.b16 %v1285
  %v1318 = vunpack.c.l.b16 %v1286
  %v1319 = vunpack.c.l.b16 %v1287
  %v1320 = vunpack.c.l.b16 %v1288
  %v1321 = vunpack.c.l.b16 %v1289
  %v1322 = vunpack.c.l.b16 %v1290
  %v1323 = vunpack.c.l.b16 %v1291
  %v1324 = vunpack.c.l.b16 %v1292
  %v1325 = vunpack.c.l.b16 %v1293
  %v1326 = vunpack.c.l.b16 %v1294
  %v1327 = vunpack.c.l.b16 %v1295
  %v1328 = vunpack.c.l.b16 %v1296
  %v1329 = vunpack.c.l.b16 %v1297
  %v1330 = vunpack.c.l.b16 %v1298
  %v1331 = vunpack.c.l.b16 %v1299
  %v1332 = vunpack.c.l.b16 %v1300
  %v1333 = vpack.c.b16 %v1318, %v1317
  %v1334 = vpack.c.b16 %v1320, %v1319
  %v1335 = vpack.c.b16 %v1322, %v1321
  %v1336 = vpack.c.b16 %v1324, %v1323
  %v1337 = vpack.c.b16 %v1326, %v1325
  %v1338 = vpack.c.b16 %v1328, %v1327
  %v1339 = vpack.c.b16 %v1330, %v1329
  %v1340 = vpack.c.b16 %v1332, %v1331
  %1349 = vmatprep.subr.bf16.mxu0 0
  %1350 = vmatpush1.bf16.msra.mxu0 %v1333
  %1351 = vmatprep.subr.bf16.mxu0 0
  %1352 = vmatpush1.bf16.msra.mxu0 %v1334
  %1353 = vmatprep.subr.bf16.mxu0 0
  %1354 = vmatpush1.bf16.msra.mxu0 %v1335
  %1355 = vmatprep.subr.bf16.mxu0 0
  %1356 = vmatpush1.bf16.msra.mxu0 %v1336
  %1357 = vmatprep.subr.bf16.mxu0 0
  %1358 = vmatpush1.bf16.msra.mxu0 %v1337
  %1359 = vmatprep.subr.bf16.mxu0 0
  %1360 = vmatpush1.bf16.msra.mxu0 %v1338
  %1361 = vmatprep.subr.bf16.mxu0 0
  %1362 = vmatpush1.bf16.msra.mxu0 %v1339
  %1363 = vmatprep.subr.bf16.mxu0 0
  %1364 = vmatpush1.bf16.msra.mxu0 %v1340
  %1365 = vmatprep.subr.bf16.mxu0 0
  %1366 = vmatpush1.bf16.msra.mxu0 0
  %1367 = vmatprep.subr.bf16.mxu0 0
  %1368 = vmatpush1.bf16.msra.mxu0 0
  %1369 = vmatprep.subr.bf16.mxu0 0
  %1370 = vmatpush1.bf16.msra.mxu0 0
  %1371 = vmatprep.subr.bf16.mxu0 0
  %1372 = vmatpush1.bf16.msra.mxu0 0
  %1373 = vmatprep.subr.bf16.mxu0 0
  %1374 = vmatpush1.bf16.msra.mxu0 0
  %1375 = vmatprep.subr.bf16.mxu0 0
  %1376 = vmatpush1.bf16.msra.mxu0 0
  %1377 = vmatprep.subr.bf16.mxu0 0
  %1378 = vmatpush1.bf16.msra.mxu0 0
  %1379 = vmatprep.subr.bf16.mxu0 0
  %1380 = vmatpush1.bf16.msra.mxu0 0
  %1381 = vmatprep.mubr.bf16.mxu0 0
  %1382 = vmatmul.mubr.bf16.gmra.mrb[0].mxu0 %v204
  %v1383 = vpop.f32.mrb[0].mxu0
  %v1384 = vadd.f32 0.0, %v1383
  %v1385 = vpop.f32.mrb[0].mxu0
  %v1386 = vpop.f32.mrb[0].mxu0
  %v1387 = vadd.f32 0.0, %v1386
  %v1388 = vpop.f32.mrb[0].mxu0
  %1389 = vdwg.mxu0
  %1390 = vst [vmem:[#allocation2 + $0xa0] sm:$0xff] %v1384
  %1391 = vst [vmem:[#allocation2 + $0xa8] sm:$0xff] %v1387
  %s1392 = scalar_lea.vmem %s3, 704
  %v1393 = vld [vmem:[%s1392] sm:$0xf]
  %v1394 = vld [vmem:[%s1392 + $0x4] sm:$0xf]
  %v1395 = vld [vmem:[%s1392 + $0x8] sm:$0xf]
  %v1396 = vld [vmem:[%s1392 + $0xc] sm:$0xf]
  %v1397 = vld [vmem:[%s1392 + $0x10] sm:$0xf]
  %v1398 = vld [vmem:[%s1392 + $0x14] sm:$0xf]
  %v1399 = vld [vmem:[%s1392 + $0x18] sm:$0xf]
  %v1400 = vld [vmem:[%s1392 + $0x1c] sm:$0xf]
  %v1401 = vld [vmem:[%s1392 + $0x20] sm:$0xf]
  %v1402 = vld [vmem:[%s1392 + $0x24] sm:$0xf]
  %v1403 = vld [vmem:[%s1392 + $0x28] sm:$0xf]
  %v1404 = vld [vmem:[%s1392 + $0x2c] sm:$0xf]
  %v1405 = vld [vmem:[%s1392 + $0x30] sm:$0xf]
  %v1406 = vld [vmem:[%s1392 + $0x34] sm:$0xf]
  %v1407 = vld [vmem:[%s1392 + $0x38] sm:$0xf]
  %v1408 = vld [vmem:[%s1392 + $0x3c] sm:$0xf]
  %v1425 = vunpack.c.l.b16 %v1393
  %v1426 = vunpack.c.l.b16 %v1394
  %v1427 = vunpack.c.l.b16 %v1395
  %v1428 = vunpack.c.l.b16 %v1396
  %v1429 = vunpack.c.l.b16 %v1397
  %v1430 = vunpack.c.l.b16 %v1398
  %v1431 = vunpack.c.l.b16 %v1399
  %v1432 = vunpack.c.l.b16 %v1400
  %v1433 = vunpack.c.l.b16 %v1401
  %v1434 = vunpack.c.l.b16 %v1402
  %v1435 = vunpack.c.l.b16 %v1403
  %v1436 = vunpack.c.l.b16 %v1404
  %v1437 = vunpack.c.l.b16 %v1405
  %v1438 = vunpack.c.l.b16 %v1406
  %v1439 = vunpack.c.l.b16 %v1407
  %v1440 = vunpack.c.l.b16 %v1408
  %v1441 = vpack.c.b16 %v1426, %v1425
  %v1442 = vpack.c.b16 %v1428, %v1427
  %v1443 = vpack.c.b16 %v1430, %v1429
  %v1444 = vpack.c.b16 %v1432, %v1431
  %v1445 = vpack.c.b16 %v1434, %v1433
  %v1446 = vpack.c.b16 %v1436, %v1435
  %v1447 = vpack.c.b16 %v1438, %v1437
  %v1448 = vpack.c.b16 %v1440, %v1439
  %1457 = vmatprep.subr.bf16.mxu0 0
  %1458 = vmatpush1.bf16.msra.mxu0 %v1441
  %1459 = vmatprep.subr.bf16.mxu0 0
  %1460 = vmatpush1.bf16.msra.mxu0 %v1442
  %1461 = vmatprep.subr.bf16.mxu0 0
  %1462 = vmatpush1.bf16.msra.mxu0 %v1443
  %1463 = vmatprep.subr.bf16.mxu0 0
  %1464 = vmatpush1.bf16.msra.mxu0 %v1444
  %1465 = vmatprep.subr.bf16.mxu0 0
  %1466 = vmatpush1.bf16.msra.mxu0 %v1445
  %1467 = vmatprep.subr.bf16.mxu0 0
  %1468 = vmatpush1.bf16.msra.mxu0 %v1446
  %1469 = vmatprep.subr.bf16.mxu0 0
  %1470 = vmatpush1.bf16.msra.mxu0 %v1447
  %1471 = vmatprep.subr.bf16.mxu0 0
  %1472 = vmatpush1.bf16.msra.mxu0 %v1448
  %1473 = vmatprep.subr.bf16.mxu0 0
  %1474 = vmatpush1.bf16.msra.mxu0 0
  %1475 = vmatprep.subr.bf16.mxu0 0
  %1476 = vmatpush1.bf16.msra.mxu0 0
  %1477 = vmatprep.subr.bf16.mxu0 0
  %1478 = vmatpush1.bf16.msra.mxu0 0
  %1479 = vmatprep.subr.bf16.mxu0 0
  %1480 = vmatpush1.bf16.msra.mxu0 0
  %1481 = vmatprep.subr.bf16.mxu0 0
  %1482 = vmatpush1.bf16.msra.mxu0 0
  %1483 = vmatprep.subr.bf16.mxu0 0
  %1484 = vmatpush1.bf16.msra.mxu0 0
  %1485 = vmatprep.subr.bf16.mxu0 0
  %1486 = vmatpush1.bf16.msra.mxu0 0
  %1487 = vmatprep.subr.bf16.mxu0 0
  %1488 = vmatpush1.bf16.msra.mxu0 0
  %1489 = vmatprep.mubr.bf16.mxu0 0
  %1490 = vmatmul.mubr.bf16.gmra.mrb[0].mxu0 %v204
  %v1491 = vpop.f32.mrb[0].mxu0
  %v1492 = vadd.f32 0.0, %v1491
  %v1493 = vpop.f32.mrb[0].mxu0
  %v1494 = vpop.f32.mrb[0].mxu0
  %v1495 = vadd.f32 0.0, %v1494
  %v1496 = vpop.f32.mrb[0].mxu0
  %1497 = vdwg.mxu0
  %1498 = vst [vmem:[#allocation2 + $0xb0] sm:$0xff] %v1492
  %1499 = vst [vmem:[#allocation2 + $0xb8] sm:$0xff] %v1495
  %s1500 = scalar_lea.vmem %s3, 768
  %v1501 = vld [vmem:[%s1500] sm:$0xf]
  %v1502 = vld [vmem:[%s1500 + $0x4] sm:$0xf]
  %v1503 = vld [vmem:[%s1500 + $0x8] sm:$0xf]
  %v1504 = vld [vmem:[%s1500 + $0xc] sm:$0xf]
  %v1505 = vld [vmem:[%s1500 + $0x10] sm:$0xf]
  %v1506 = vld [vmem:[%s1500 + $0x14] sm:$0xf]
  %v1507 = vld [vmem:[%s1500 + $0x18] sm:$0xf]
  %v1508 = vld [vmem:[%s1500 + $0x1c] sm:$0xf]
  %v1509 = vld [vmem:[%s1500 + $0x20] sm:$0xf]
  %v1510 = vld [vmem:[%s1500 + $0x24] sm:$0xf]
  %v1511 = vld [vmem:[%s1500 + $0x28] sm:$0xf]
  %v1512 = vld [vmem:[%s1500 + $0x2c] sm:$0xf]
  %v1513 = vld [vmem:[%s1500 + $0x30] sm:$0xf]
  %v1514 = vld [vmem:[%s1500 + $0x34] sm:$0xf]
  %v1515 = vld [vmem:[%s1500 + $0x38] sm:$0xf]
  %v1516 = vld [vmem:[%s1500 + $0x3c] sm:$0xf]
  %v1533 = vunpack.c.l.b16 %v1501
  %v1534 = vunpack.c.l.b16 %v1502
  %v1535 = vunpack.c.l.b16 %v1503
  %v1536 = vunpack.c.l.b16 %v1504
  %v1537 = vunpack.c.l.b16 %v1505
  %v1538 = vunpack.c.l.b16 %v1506
  %v1539 = vunpack.c.l.b16 %v1507
  %v1540 = vunpack.c.l.b16 %v1508
  %v1541 = vunpack.c.l.b16 %v1509
  %v1542 = vunpack.c.l.b16 %v1510
  %v1543 = vunpack.c.l.b16 %v1511
  %v1544 = vunpack.c.l.b16 %v1512
  %v1545 = vunpack.c.l.b16 %v1513
  %v1546 = vunpack.c.l.b16 %v1514
  %v1547 = vunpack.c.l.b16 %v1515
  %v1548 = vunpack.c.l.b16 %v1516
  %v1549 = vpack.c.b16 %v1534, %v1533
  %v1550 = vpack.c.b16 %v1536, %v1535
  %v1551 = vpack.c.b16 %v1538, %v1537
  %v1552 = vpack.c.b16 %v1540, %v1539
  %v1553 = vpack.c.b16 %v1542, %v1541
  %v1554 = vpack.c.b16 %v1544, %v1543
  %v1555 = vpack.c.b16 %v1546, %v1545
  %v1556 = vpack.c.b16 %v1548, %v1547
  %1565 = vmatprep.subr.bf16.mxu0 0
  %1566 = vmatpush1.bf16.msra.mxu0 %v1549
  %1567 = vmatprep.subr.bf16.mxu0 0
  %1568 = vmatpush1.bf16.msra.mxu0 %v1550
  %1569 = vmatprep.subr.bf16.mxu0 0
  %1570 = vmatpush1.bf16.msra.mxu0 %v1551
  %1571 = vmatprep.subr.bf16.mxu0 0
  %1572 = vmatpush1.bf16.msra.mxu0 %v1552
  %1573 = vmatprep.subr.bf16.mxu0 0
  %1574 = vmatpush1.bf16.msra.mxu0 %v1553
  %1575 = vmatprep.subr.bf16.mxu0 0
  %1576 = vmatpush1.bf16.msra.mxu0 %v1554
  %1577 = vmatprep.subr.bf16.mxu0 0
  %1578 = vmatpush1.bf16.msra.mxu0 %v1555
  %1579 = vmatprep.subr.bf16.mxu0 0
  %1580 = vmatpush1.bf16.msra.mxu0 %v1556
  %1581 = vmatprep.subr.bf16.mxu0 0
  %1582 = vmatpush1.bf16.msra.mxu0 0
  %1583 = vmatprep.subr.bf16.mxu0 0
  %1584 = vmatpush1.bf16.msra.mxu0 0
  %1585 = vmatprep.subr.bf16.mxu0 0
  %1586 = vmatpush1.bf16.msra.mxu0 0
  %1587 = vmatprep.subr.bf16.mxu0 0
  %1588 = vmatpush1.bf16.msra.mxu0 0
  %1589 = vmatprep.subr.bf16.mxu0 0
  %1590 = vmatpush1.bf16.msra.mxu0 0
  %1591 = vmatprep.subr.bf16.mxu0 0
  %1592 = vmatpush1.bf16.msra.mxu0 0
  %1593 = vmatprep.subr.bf16.mxu0 0
  %1594 = vmatpush1.bf16.msra.mxu0 0
  %1595 = vmatprep.subr.bf16.mxu0 0
  %1596 = vmatpush1.bf16.msra.mxu0 0
  %1597 = vmatprep.mubr.bf16.mxu0 0
  %1598 = vmatmul.mubr.bf16.gmra.mrb[0].mxu0 %v204
  %v1599 = vpop.f32.mrb[0].mxu0
  %v1600 = vadd.f32 0.0, %v1599
  %v1601 = vpop.f32.mrb[0].mxu0
  %v1602 = vpop.f32.mrb[0].mxu0
  %v1603 = vadd.f32 0.0, %v1602
  %v1604 = vpop.f32.mrb[0].mxu0
  %1605 = vdwg.mxu0
  %1606 = vst [vmem:[#allocation2 + $0xc0] sm:$0xff] %v1600
  %1607 = vst [vmem:[#allocation2 + $0xc8] sm:$0xff] %v1603
  %s1608 = scalar_lea.vmem %s3, 832
  %v1609 = vld [vmem:[%s1608] sm:$0xf]
  %v1610 = vld [vmem:[%s1608 + $0x4] sm:$0xf]
  %v1611 = vld [vmem:[%s1608 + $0x8] sm:$0xf]
  %v1612 = vld [vmem:[%s1608 + $0xc] sm:$0xf]
  %v1613 = vld [vmem:[%s1608 + $0x10] sm:$0xf]
  %v1614 = vld [vmem:[%s1608 + $0x14] sm:$0xf]
  %v1615 = vld [vmem:[%s1608 + $0x18] sm:$0xf]
  %v1616 = vld [vmem:[%s1608 + $0x1c] sm:$0xf]
  %v1617 = vld [vmem:[%s1608 + $0x20] sm:$0xf]
  %v1618 = vld [vmem:[%s1608 + $0x24] sm:$0xf]
  %v1619 = vld [vmem:[%s1608 + $0x28] sm:$0xf]
  %v1620 = vld [vmem:[%s1608 + $0x2c] sm:$0xf]
  %v1621 = vld [vmem:[%s1608 + $0x30] sm:$0xf]
  %v1622 = vld [vmem:[%s1608 + $0x34] sm:$0xf]
  %v1623 = vld [vmem:[%s1608 + $0x38] sm:$0xf]
  %v1624 = vld [vmem:[%s1608 + $0x3c] sm:$0xf]
  %v1641 = vunpack.c.l.b16 %v1609
  %v1642 = vunpack.c.l.b16 %v1610
  %v1643 = vunpack.c.l.b16 %v1611
  %v1644 = vunpack.c.l.b16 %v1612
  %v1645 = vunpack.c.l.b16 %v1613
  %v1646 = vunpack.c.l.b16 %v1614
  %v1647 = vunpack.c.l.b16 %v1615
  %v1648 = vunpack.c.l.b16 %v1616
  %v1649 = vunpack.c.l.b16 %v1617
  %v1650 = vunpack.c.l.b16 %v1618
  %v1651 = vunpack.c.l.b16 %v1619
  %v1652 = vunpack.c.l.b16 %v1620
  %v1653 = vunpack.c.l.b16 %v1621
  %v1654 = vunpack.c.l.b16 %v1622
  %v1655 = vunpack.c.l.b16 %v1623
  %v1656 = vunpack.c.l.b16 %v1624
  %v1657 = vpack.c.b16 %v1642, %v1641
  %v1658 = vpack.c.b16 %v1644, %v1643
  %v1659 = vpack.c.b16 %v1646, %v1645
  %v1660 = vpack.c.b16 %v1648, %v1647
  %v1661 = vpack.c.b16 %v1650, %v1649
  %v1662 = vpack.c.b16 %v1652, %v1651
  %v1663 = vpack.c.b16 %v1654, %v1653
  %v1664 = vpack.c.b16 %v1656, %v1655
  %1673 = vmatprep.subr.bf16.mxu0 0
  %1674 = vmatpush1.bf16.msra.mxu0 %v1657
  %1675 = vmatprep.subr.bf16.mxu0 0
  %1676 = vmatpush1.bf16.msra.mxu0 %v1658
  %1677 = vmatprep.subr.bf16.mxu0 0
  %1678 = vmatpush1.bf16.msra.mxu0 %v1659
  %1679 = vmatprep.subr.bf16.mxu0 0
  %1680 = vmatpush1.bf16.msra.mxu0 %v1660
  %1681 = vmatprep.subr.bf16.mxu0 0
  %1682 = vmatpush1.bf16.msra.mxu0 %v1661
  %1683 = vmatprep.subr.bf16.mxu0 0
  %1684 = vmatpush1.bf16.msra.mxu0 %v1662
  %1685 = vmatprep.subr.bf16.mxu0 0
  %1686 = vmatpush1.bf16.msra.mxu0 %v1663
  %1687 = vmatprep.subr.bf16.mxu0 0
  %1688 = vmatpush1.bf16.msra.mxu0 %v1664
  %1689 = vmatprep.subr.bf16.mxu0 0
  %1690 = vmatpush1.bf16.msra.mxu0 0
  %1691 = vmatprep.subr.bf16.mxu0 0
  %1692 = vmatpush1.bf16.msra.mxu0 0
  %1693 = vmatprep.subr.bf16.mxu0 0
  %1694 = vmatpush1.bf16.msra.mxu0 0
  %1695 = vmatprep.subr.bf16.mxu0 0
  %1696 = vmatpush1.bf16.msra.mxu0 0
  %1697 = vmatprep.subr.bf16.mxu0 0
  %1698 = vmatpush1.bf16.msra.mxu0 0
  %1699 = vmatprep.subr.bf16.mxu0 0
  %1700 = vmatpush1.bf16.msra.mxu0 0
  %1701 = vmatprep.subr.bf16.mxu0 0
  %1702 = vmatpush1.bf16.msra.mxu0 0
  %1703 = vmatprep.subr.bf16.mxu0 0
  %1704 = vmatpush1.bf16.msra.mxu0 0
  %1705 = vmatprep.mubr.bf16.mxu0 0
  %1706 = vmatmul.mubr.bf16.gmra.mrb[0].mxu0 %v204
  %v1707 = vpop.f32.mrb[0].mxu0
  %v1708 = vadd.f32 0.0, %v1707
  %v1709 = vpop.f32.mrb[0].mxu0
  %v1710 = vpop.f32.mrb[0].mxu0
  %v1711 = vadd.f32 0.0, %v1710
  %v1712 = vpop.f32.mrb[0].mxu0
  %1713 = vdwg.mxu0
  %1714 = vst [vmem:[#allocation2 + $0xd0] sm:$0xff] %v1708
  %1715 = vst [vmem:[#allocation2 + $0xd8] sm:$0xff] %v1711
  %s1716 = scalar_lea.vmem %s3, 896
  %v1717 = vld [vmem:[%s1716] sm:$0xf]
  %v1718 = vld [vmem:[%s1716 + $0x4] sm:$0xf]
  %v1719 = vld [vmem:[%s1716 + $0x8] sm:$0xf]
  %v1720 = vld [vmem:[%s1716 + $0xc] sm:$0xf]
  %v1721 = vld [vmem:[%s1716 + $0x10] sm:$0xf]
  %v1722 = vld [vmem:[%s1716 + $0x14] sm:$0xf]
  %v1723 = vld [vmem:[%s1716 + $0x18] sm:$0xf]
  %v1724 = vld [vmem:[%s1716 + $0x1c] sm:$0xf]
  %v1725 = vld [vmem:[%s1716 + $0x20] sm:$0xf]
  %v1726 = vld [vmem:[%s1716 + $0x24] sm:$0xf]
  %v1727 = vld [vmem:[%s1716 + $0x28] sm:$0xf]
  %v1728 = vld [vmem:[%s1716 + $0x2c] sm:$0xf]
  %v1729 = vld [vmem:[%s1716 + $0x30] sm:$0xf]
  %v1730 = vld [vmem:[%s1716 + $0x34] sm:$0xf]
  %v1731 = vld [vmem:[%s1716 + $0x38] sm:$0xf]
  %v1732 = vld [vmem:[%s1716 + $0x3c] sm:$0xf]
  %v1749 = vunpack.c.l.b16 %v1717
  %v1750 = vunpack.c.l.b16 %v1718
  %v1751 = vunpack.c.l.b16 %v1719
  %v1752 = vunpack.c.l.b16 %v1720
  %v1753 = vunpack.c.l.b16 %v1721
  %v1754 = vunpack.c.l.b16 %v1722
  %v1755 = vunpack.c.l.b16 %v1723
  %v1756 = vunpack.c.l.b16 %v1724
  %v1757 = vunpack.c.l.b16 %v1725
  %v1758 = vunpack.c.l.b16 %v1726
  %v1759 = vunpack.c.l.b16 %v1727
  %v1760 = vunpack.c.l.b16 %v1728
  %v1761 = vunpack.c.l.b16 %v1729
  %v1762 = vunpack.c.l.b16 %v1730
  %v1763 = vunpack.c.l.b16 %v1731
  %v1764 = vunpack.c.l.b16 %v1732
  %v1765 = vpack.c.b16 %v1750, %v1749
  %v1766 = vpack.c.b16 %v1752, %v1751
  %v1767 = vpack.c.b16 %v1754, %v1753
  %v1768 = vpack.c.b16 %v1756, %v1755
  %v1769 = vpack.c.b16 %v1758, %v1757
  %v1770 = vpack.c.b16 %v1760, %v1759
  %v1771 = vpack.c.b16 %v1762, %v1761
  %v1772 = vpack.c.b16 %v1764, %v1763
  %1781 = vmatprep.subr.bf16.mxu0 0
  %1782 = vmatpush1.bf16.msra.mxu0 %v1765
  %1783 = vmatprep.subr.bf16.mxu0 0
  %1784 = vmatpush1.bf16.msra.mxu0 %v1766
  %1785 = vmatprep.subr.bf16.mxu0 0
  %1786 = vmatpush1.bf16.msra.mxu0 %v1767
  %1787 = vmatprep.subr.bf16.mxu0 0
  %1788 = vmatpush1.bf16.msra.mxu0 %v1768
  %1789 = vmatprep.subr.bf16.mxu0 0
  %1790 = vmatpush1.bf16.msra.mxu0 %v1769
  %1791 = vmatprep.subr.bf16.mxu0 0
  %1792 = vmatpush1.bf16.msra.mxu0 %v1770
  %1793 = vmatprep.subr.bf16.mxu0 0
  %1794 = vmatpush1.bf16.msra.mxu0 %v1771
  %1795 = vmatprep.subr.bf16.mxu0 0
  %1796 = vmatpush1.bf16.msra.mxu0 %v1772
  %1797 = vmatprep.subr.bf16.mxu0 0
  %1798 = vmatpush1.bf16.msra.mxu0 0
  %1799 = vmatprep.subr.bf16.mxu0 0
  %1800 = vmatpush1.bf16.msra.mxu0 0
  %1801 = vmatprep.subr.bf16.mxu0 0
  %1802 = vmatpush1.bf16.msra.mxu0 0
  %1803 = vmatprep.subr.bf16.mxu0 0
  %1804 = vmatpush1.bf16.msra.mxu0 0
  %1805 = vmatprep.subr.bf16.mxu0 0
  %1806 = vmatpush1.bf16.msra.mxu0 0
  %1807 = vmatprep.subr.bf16.mxu0 0
  %1808 = vmatpush1.bf16.msra.mxu0 0
  %1809 = vmatprep.subr.bf16.mxu0 0
  %1810 = vmatpush1.bf16.msra.mxu0 0
  %1811 = vmatprep.subr.bf16.mxu0 0
  %1812 = vmatpush1.bf16.msra.mxu0 0
  %1813 = vmatprep.mubr.bf16.mxu0 0
  %1814 = vmatmul.mubr.bf16.gmra.mrb[0].mxu0 %v204
  %v1815 = vpop.f32.mrb[0].mxu0
  %v1816 = vadd.f32 0.0, %v1815
  %v1817 = vpop.f32.mrb[0].mxu0
  %v1818 = vpop.f32.mrb[0].mxu0
  %v1819 = vadd.f32 0.0, %v1818
  %v1820 = vpop.f32.mrb[0].mxu0
  %1821 = vdwg.mxu0
  %1822 = vst [vmem:[#allocation2 + $0xe0] sm:$0xff] %v1816
  %1823 = vst [vmem:[#allocation2 + $0xe8] sm:$0xff] %v1819
  %s1824 = scalar_lea.vmem %s3, 960
  %v1825 = vld [vmem:[%s1824] sm:$0xf]
  %v1826 = vld [vmem:[%s1824 + $0x4] sm:$0xf]
  %v1827 = vld [vmem:[%s1824 + $0x8] sm:$0xf]
  %v1828 = vld [vmem:[%s1824 + $0xc] sm:$0xf]
  %v1829 = vld [vmem:[%s1824 + $0x10] sm:$0xf]
  %v1830 = vld [vmem:[%s1824 + $0x14] sm:$0xf]
  %v1831 = vld [vmem:[%s1824 + $0x18] sm:$0xf]
  %v1832 = vld [vmem:[%s1824 + $0x1c] sm:$0xf]
  %v1833 = vld [vmem:[%s1824 + $0x20] sm:$0xf]
  %v1834 = vld [vmem:[%s1824 + $0x24] sm:$0xf]
  %v1835 = vld [vmem:[%s1824 + $0x28] sm:$0xf]
  %v1836 = vld [vmem:[%s1824 + $0x2c] sm:$0xf]
  %v1837 = vld [vmem:[%s1824 + $0x30] sm:$0xf]
  %v1838 = vld [vmem:[%s1824 + $0x34] sm:$0xf]
  %v1839 = vld [vmem:[%s1824 + $0x38] sm:$0xf]
  %v1840 = vld [vmem:[%s1824 + $0x3c] sm:$0xf]
  %v1857 = vunpack.c.l.b16 %v1825
  %v1858 = vunpack.c.l.b16 %v1826
  %v1859 = vunpack.c.l.b16 %v1827
  %v1860 = vunpack.c.l.b16 %v1828
  %v1861 = vunpack.c.l.b16 %v1829
  %v1862 = vunpack.c.l.b16 %v1830
  %v1863 = vunpack.c.l.b16 %v1831
  %v1864 = vunpack.c.l.b16 %v1832
  %v1865 = vunpack.c.l.b16 %v1833
  %v1866 = vunpack.c.l.b16 %v1834
  %v1867 = vunpack.c.l.b16 %v1835
  %v1868 = vunpack.c.l.b16 %v1836
  %v1869 = vunpack.c.l.b16 %v1837
  %v1870 = vunpack.c.l.b16 %v1838
  %v1871 = vunpack.c.l.b16 %v1839
  %v1872 = vunpack.c.l.b16 %v1840
  %v1873 = vpack.c.b16 %v1858, %v1857
  %v1874 = vpack.c.b16 %v1860, %v1859
  %v1875 = vpack.c.b16 %v1862, %v1861
  %v1876 = vpack.c.b16 %v1864, %v1863
  %v1877 = vpack.c.b16 %v1866, %v1865
  %v1878 = vpack.c.b16 %v1868, %v1867
  %v1879 = vpack.c.b16 %v1870, %v1869
  %v1880 = vpack.c.b16 %v1872, %v1871
  %1889 = vmatprep.subr.bf16.mxu0 0
  %1890 = vmatpush1.bf16.msra.mxu0 %v1873
  %1891 = vmatprep.subr.bf16.mxu0 0
  %1892 = vmatpush1.bf16.msra.mxu0 %v1874
  %1893 = vmatprep.subr.bf16.mxu0 0
  %1894 = vmatpush1.bf16.msra.mxu0 %v1875
  %1895 = vmatprep.subr.bf16.mxu0 0
  %1896 = vmatpush1.bf16.msra.mxu0 %v1876
  %1897 = vmatprep.subr.bf16.mxu0 0
  %1898 = vmatpush1.bf16.msra.mxu0 %v1877
  %1899 = vmatprep.subr.bf16.mxu0 0
  %1900 = vmatpush1.bf16.msra.mxu0 %v1878
  %1901 = vmatprep.subr.bf16.mxu0 0
  %1902 = vmatpush1.bf16.msra.mxu0 %v1879
  %1903 = vmatprep.subr.bf16.mxu0 0
  %1904 = vmatpush1.bf16.msra.mxu0 %v1880
  %1905 = vmatprep.subr.bf16.mxu0 0
  %1906 = vmatpush1.bf16.msra.mxu0 0
  %1907 = vmatprep.subr.bf16.mxu0 0
  %1908 = vmatpush1.bf16.msra.mxu0 0
  %1909 = vmatprep.subr.bf16.mxu0 0
  %1910 = vmatpush1.bf16.msra.mxu0 0
  %1911 = vmatprep.subr.bf16.mxu0 0
  %1912 = vmatpush1.bf16.msra.mxu0 0
  %1913 = vmatprep.subr.bf16.mxu0 0
  %1914 = vmatpush1.bf16.msra.mxu0 0
  %1915 = vmatprep.subr.bf16.mxu0 0
  %1916 = vmatpush1.bf16.msra.mxu0 0
  %1917 = vmatprep.subr.bf16.mxu0 0
  %1918 = vmatpush1.bf16.msra.mxu0 0
  %1919 = vmatprep.subr.bf16.mxu0 0
  %1920 = vmatpush1.bf16.msra.mxu0 0
  %1921 = vmatprep.mubr.bf16.mxu0 0
  %1922 = vmatmul.mubr.bf16.gmra.mrb[0].mxu0 %v204
  %v1923 = vpop.f32.mrb[0].mxu0
  %v1924 = vadd.f32 0.0, %v1923
  %v1925 = vpop.f32.mrb[0].mxu0
  %v1926 = vpop.f32.mrb[0].mxu0
  %v1927 = vadd.f32 0.0, %v1926
  %v1928 = vpop.f32.mrb[0].mxu0
  %1929 = vdwg.mxu0
  %1930 = vst [vmem:[#allocation2 + $0xf0] sm:$0xff] %v1924
  %1931 = vst [vmem:[#allocation2 + $0xf8] sm:$0xff] %v1927
  %v1932 = vld [vmem:[%s7] sm:$0xff]
  %v1933 = vld [vmem:[%s7 + $0x8] sm:$0xff]
  %v1934 = vld [vmem:[%s7 + $0x10] sm:$0xff]
  %v1935 = vld [vmem:[%s7 + $0x18] sm:$0xff]
  %v1936 = vld [vmem:[#allocation2] sm:$0xff]
  %v1937 = vld [vmem:[#allocation2 + $0x8] sm:$0xff]
  %v1938 = vld [vmem:[#allocation2 + $0x10] sm:$0xff]
  %v1939 = vld [vmem:[#allocation2 + $0x18] sm:$0xff]
  %v1940 = vld [vmem:[#allocation2 + $0x20] sm:$0xff]
  %v1941 = vld [vmem:[#allocation2 + $0x28] sm:$0xff]
  %v1942 = vld [vmem:[#allocation2 + $0x30] sm:$0xff]
  %v1943 = vld [vmem:[#allocation2 + $0x38] sm:$0xff]
  %v1944 = vld [vmem:[#allocation2 + $0x40] sm:$0xff]
  %v1945 = vld [vmem:[#allocation2 + $0x48] sm:$0xff]
  %v1946 = vld [vmem:[#allocation2 + $0x50] sm:$0xff]
  %v1947 = vld [vmem:[#allocation2 + $0x58] sm:$0xff]
  %v1948 = vld [vmem:[#allocation2 + $0x60] sm:$0xff]
  %v1949 = vld [vmem:[#allocation2 + $0x68] sm:$0xff]
  %v1950 = vld [vmem:[#allocation2 + $0x70] sm:$0xff]
  %v1951 = vld [vmem:[#allocation2 + $0x78] sm:$0xff]
  %v1952 = vld [vmem:[#allocation2 + $0x80] sm:$0xff]
  %v1953 = vld [vmem:[#allocation2 + $0x88] sm:$0xff]
  %v1954 = vld [vmem:[#allocation2 + $0x90] sm:$0xff]
  %v1955 = vld [vmem:[#allocation2 + $0x98] sm:$0xff]
  %v1956 = vld [vmem:[#allocation2 + $0xa0] sm:$0xff]
  %v1957 = vld [vmem:[#allocation2 + $0xa8] sm:$0xff]
  %v1958 = vld [vmem:[#allocation2 + $0xb0] sm:$0xff]
  %v1959 = vld [vmem:[#allocation2 + $0xb8] sm:$0xff]
  %v1960 = vld [vmem:[#allocation2 + $0xc0] sm:$0xff]
  %v1961 = vld [vmem:[#allocation2 + $0xc8] sm:$0xff]
  %v1962 = vld [vmem:[#allocation2 + $0xd0] sm:$0xff]
  %v1963 = vld [vmem:[#allocation2 + $0xd8] sm:$0xff]
  %v1964 = vld [vmem:[#allocation2 + $0xe0] sm:$0xff]
  %v1965 = vld [vmem:[#allocation2 + $0xe8] sm:$0xff]
  %v1966 = vld [vmem:[#allocation2 + $0xf0] sm:$0xff]
  %v1967 = vld [vmem:[#allocation2 + $0xf8] sm:$0xff]
  %1968 = vmatprep.subr.mxu0 0.0
  %1969 = vmatpush1.msra.mxu0 %v1936
  %1970 = vmatprep.subr.mxu0 0.0
  %1971 = vmatpush1.msra.mxu0 %v1937
  %1972 = vmatprep.subr.mxu0 0.0
  %1973 = vmatpush1.msra.mxu0 %v1938
  %1974 = vmatprep.subr.mxu0 0.0
  %1975 = vmatpush1.msra.mxu0 %v1939
  %1976 = vmatprep.subr.mxu0 0.0
  %1977 = vmatpush1.msra.mxu0 %v1940
  %1978 = vmatprep.subr.mxu0 0.0
  %1979 = vmatpush1.msra.mxu0 %v1941
  %1980 = vmatprep.subr.mxu0 0.0
  %1981 = vmatpush1.msra.mxu0 %v1942
  %1982 = vmatprep.subr.mxu0 0.0
  %1983 = vmatpush1.msra.mxu0 %v1943
  %1984 = vmatprep.subr.mxu0 0.0
  %1985 = vmatpush1.msra.mxu0 %v1944
  %1986 = vmatprep.subr.mxu0 0.0
  %1987 = vmatpush1.msra.mxu0 %v1945
  %1988 = vmatprep.subr.mxu0 0.0
  %1989 = vmatpush1.msra.mxu0 %v1946
  %1990 = vmatprep.subr.mxu0 0.0
  %1991 = vmatpush1.msra.mxu0 %v1947
  %1992 = vmatprep.subr.mxu0 0.0
  %1993 = vmatpush1.msra.mxu0 %v1948
  %1994 = vmatprep.subr.mxu0 0.0
  %1995 = vmatpush1.msra.mxu0 %v1949
  %1996 = vmatprep.subr.mxu0 0.0
  %1997 = vmatpush1.msra.mxu0 %v1950
  %1998 = vmatprep.subr.mxu0 0.0
  %1999 = vmatpush1.msra.mxu0 %v1951
  %2000 = vmatprep.subr.mxu0 0.0
  %2001 = vmatpush1.msra.mxu0 %v1952
  %2002 = vmatprep.subr.mxu0 0.0
  %2003 = vmatpush1.msra.mxu0 %v1953
  %2004 = vmatprep.subr.mxu0 0.0
  %2005 = vmatpush1.msra.mxu0 %v1954
  %2006 = vmatprep.subr.mxu0 0.0
  %2007 = vmatpush1.msra.mxu0 %v1955
  %2008 = vmatprep.subr.mxu0 0.0
  %2009 = vmatpush1.msra.mxu0 %v1956
  %2010 = vmatprep.subr.mxu0 0.0
  %2011 = vmatpush1.msra.mxu0 %v1957
  %2012 = vmatprep.subr.mxu0 0.0
  %2013 = vmatpush1.msra.mxu0 %v1958
  %2014 = vmatprep.subr.mxu0 0.0
  %2015 = vmatpush1.msra.mxu0 %v1959
  %2016 = vmatprep.subr.mxu0 0.0
  %2017 = vmatpush1.msra.mxu0 %v1960
  %2018 = vmatprep.subr.mxu0 0.0
  %2019 = vmatpush1.msra.mxu0 %v1961
  %2020 = vmatprep.subr.mxu0 0.0
  %2021 = vmatpush1.msra.mxu0 %v1962
  %2022 = vmatprep.subr.mxu0 0.0
  %2023 = vmatpush1.msra.mxu0 %v1963
  %2024 = vmatprep.subr.mxu0 0.0
  %2025 = vmatpush1.msra.mxu0 %v1964
  %2026 = vmatprep.subr.mxu0 0.0
  %2027 = vmatpush1.msra.mxu0 %v1965
  %2028 = vmatprep.subr.mxu0 0.0
  %2029 = vmatpush1.msra.mxu0 %v1966
  %2030 = vmatprep.subr.mxu0 0.0
  %2031 = vmatpush1.msra.mxu0 %v1967
  %2032 = vmatprep.mubr.f32.mxu0 %v1933
  %2033 = vmatmul.mubr.f32.gmra.mrb[0].mxu0 %v1932
  %v2034 = vpop.f32.mrb[0].mxu0
  %v2035 = vadd.f32 0.0, %v2034
  %v2036 = vpop.f32.mrb[0].mxu0
  %2037 = vmatprep.mubr.f32.mxu0 %v1935
  %2038 = vmatmul.mubr.f32.gmra.mrb[0].mxu0 %v1934
  %v2039 = vpop.f32.mrb[0].mxu0
  %v2040 = vadd.f32 0.0, %v2039
  %v2041 = vpop.f32.mrb[0].mxu0
  %2042 = vdwg.mxu0
  %v2043 = vpack.c.bf16 %v2040, %v2035
  %v2044 = vld [vmem:[%s4] sm:$0xff]
  %v2045 = vld [vmem:[%s4 + $0x8] sm:$0xff]
  %v2046 = vld [vmem:[%s4 + $0x10] sm:$0xff]
  %v2047 = vld [vmem:[%s4 + $0x18] sm:$0xff]
  %v2048 = vld [vmem:[%s4 + $0x20] sm:$0xff]
  %v2049 = vld [vmem:[%s4 + $0x28] sm:$0xff]
  %v2050 = vld [vmem:[%s4 + $0x30] sm:$0xff]
  %v2051 = vld [vmem:[%s4 + $0x38] sm:$0xff]
  %v2052 = vld [vmem:[%s4 + $0x40] sm:$0xff]
  %v2053 = vld [vmem:[%s4 + $0x48] sm:$0xff]
  %v2054 = vld [vmem:[%s4 + $0x50] sm:$0xff]
  %v2055 = vld [vmem:[%s4 + $0x58] sm:$0xff]
  %v2056 = vld [vmem:[%s4 + $0x60] sm:$0xff]
  %v2057 = vld [vmem:[%s4 + $0x68] sm:$0xff]
  %v2058 = vld [vmem:[%s4 + $0x70] sm:$0xff]
  %v2059 = vld [vmem:[%s4 + $0x78] sm:$0xff]
  %v2060 = vld [vmem:[%s5] sm:$0x3]
  %v2062 = vlaneseq
  %v2063 = vshrl.u32 %v2062, 7
  %v2064 = vsub.s32 0, %v2063
  %v2065 = vrot.slane %v2060, %v2064
  %v2066 = vlaneseq
  %v2067 = vshrl.u32 %v2066, 7
  %v2068 = vsub.s32 1, %v2067
  %v2069 = vrot.slane %v2060, %v2068
  %v2088 = vunpack.c.l.b16 %v2044
  %v2089 = vunpack.c.h.b16 %v2044
  %v2090 = vunpack.c.l.b16 %v2045
  %v2091 = vunpack.c.h.b16 %v2045
  %v2092 = vunpack.c.l.b16 %v2046
  %v2093 = vunpack.c.h.b16 %v2046
  %v2094 = vunpack.c.l.b16 %v2047
  %v2095 = vunpack.c.h.b16 %v2047
  %v2096 = vunpack.c.l.b16 %v2048
  %v2097 = vunpack.c.h.b16 %v2048
  %v2098 = vunpack.c.l.b16 %v2049
  %v2099 = vunpack.c.h.b16 %v2049
  %v2100 = vunpack.c.l.b16 %v2050
  %v2101 = vunpack.c.h.b16 %v2050
  %v2102 = vunpack.c.l.b16 %v2051
  %v2103 = vunpack.c.h.b16 %v2051
  %v2104 = vunpack.c.l.b16 %v2052
  %v2105 = vunpack.c.h.b16 %v2052
  %v2106 = vunpack.c.l.b16 %v2053
  %v2107 = vunpack.c.h.b16 %v2053
  %v2108 = vunpack.c.l.b16 %v2054
  %v2109 = vunpack.c.h.b16 %v2054
  %v2110 = vunpack.c.l.b16 %v2055
  %v2111 = vunpack.c.h.b16 %v2055
  %v2112 = vunpack.c.l.b16 %v2056
  %v2113 = vunpack.c.h.b16 %v2056
  %v2114 = vunpack.c.l.b16 %v2057
  %v2115 = vunpack.c.h.b16 %v2057
  %v2116 = vunpack.c.l.b16 %v2058
  %v2117 = vunpack.c.h.b16 %v2058
  %v2118 = vunpack.c.l.b16 %v2059
  %v2119 = vunpack.c.h.b16 %v2059
  %v2120 = vpack.c.b16 %v2090, %v2088
  %v2121 = vpack.c.b16 %v2091, %v2089
  %v2122 = vpack.c.b16 %v2094, %v2092
  %v2123 = vpack.c.b16 %v2095, %v2093
  %v2124 = vpack.c.b16 %v2098, %v2096
  %v2125 = vpack.c.b16 %v2099, %v2097
  %v2126 = vpack.c.b16 %v2102, %v2100
  %v2127 = vpack.c.b16 %v2103, %v2101
  %v2128 = vpack.c.b16 %v2106, %v2104
  %v2129 = vpack.c.b16 %v2107, %v2105
  %v2130 = vpack.c.b16 %v2110, %v2108
  %v2131 = vpack.c.b16 %v2111, %v2109
  %v2132 = vpack.c.b16 %v2114, %v2112
  %v2133 = vpack.c.b16 %v2115, %v2113
  %v2134 = vpack.c.b16 %v2118, %v2116
  %v2135 = vpack.c.b16 %v2119, %v2117
  %2152 = vmatprep.subr.bf16.mxu0 %v2121
  %2153 = vmatpush1.bf16.msra.mxu0 %v2120
  %2154 = vmatprep.subr.bf16.mxu0 %v2123
  %2155 = vmatpush1.bf16.msra.mxu0 %v2122
  %2156 = vmatprep.subr.bf16.mxu0 %v2125
  %2157 = vmatpush1.bf16.msra.mxu0 %v2124
  %2158 = vmatprep.subr.bf16.mxu0 %v2127
  %2159 = vmatpush1.bf16.msra.mxu0 %v2126
  %2160 = vmatprep.subr.bf16.mxu0 %v2129
  %2161 = vmatpush1.bf16.msra.mxu0 %v2128
  %2162 = vmatprep.subr.bf16.mxu0 %v2131
  %2163 = vmatpush1.bf16.msra.mxu0 %v2130
  %2164 = vmatprep.subr.bf16.mxu0 %v2133
  %2165 = vmatpush1.bf16.msra.mxu0 %v2132
  %2166 = vmatprep.subr.bf16.mxu0 %v2135
  %2167 = vmatpush1.bf16.msra.mxu0 %v2134
  %2168 = vmatprep.subr.bf16.mxu0 0
  %2169 = vmatpush1.bf16.msra.mxu0 0
  %2170 = vmatprep.subr.bf16.mxu0 0
  %2171 = vmatpush1.bf16.msra.mxu0 0
  %2172 = vmatprep.subr.bf16.mxu0 0
  %2173 = vmatpush1.bf16.msra.mxu0 0
  %2174 = vmatprep.subr.bf16.mxu0 0
  %2175 = vmatpush1.bf16.msra.mxu0 0
  %2176 = vmatprep.subr.bf16.mxu0 0
  %2177 = vmatpush1.bf16.msra.mxu0 0
  %2178 = vmatprep.subr.bf16.mxu0 0
  %2179 = vmatpush1.bf16.msra.mxu0 0
  %2180 = vmatprep.subr.bf16.mxu0 0
  %2181 = vmatpush1.bf16.msra.mxu0 0
  %2182 = vmatprep.subr.bf16.mxu0 0
  %2183 = vmatpush1.bf16.msra.mxu0 0
  %2184 = vmatprep.mubr.bf16.mxu0 0
  %2185 = vmatmul.mubr.bf16.gmra.mrb[0].mxu0 %v2043
  %v2186 = vpop.f32.mrb[0].mxu0
  %v2187 = vadd.f32 %v2065, %v2186
  %v2188 = vpop.f32.mrb[0].mxu0
  %v2189 = vadd.f32 %v2069, %v2188
  %v2190 = vpop.f32.mrb[0].mxu0
  %v2191 = vadd.f32 %v2065, %v2190
  %v2192 = vpop.f32.mrb[0].mxu0
  %v2193 = vadd.f32 %v2069, %v2192
  %2194 = vdwg.mxu0
  %v2195 = vxor.u32 %v2189, 2147483648
  %v2196 = vxor.u32 %v2193, 2147483648
  %v2197 = vmul.f32 %v2195, 1.442695
  %v2198 = vpow.pop %v2197
  %v2199 = vmul.f32 %v2196, 1.442695
  %v2200 = vpow.pop %v2199
  %v2201 = vadd.f32 %v2198, 1.0
  %v2202 = vadd.f32 %v2200, 1.0
  %v2203 = vrcp.pop %v2201
  %v2204 = vmul.f32 1.0, %v2203
  %v2205 = vrcp.pop %v2202
  %v2206 = vmul.f32 1.0, %v2205
  %v2207 = vmul.f32 %v2204, %v2187
  %v2208 = vmul.f32 %v2206, %v2191
  %v2209 = vpack.c.bf16 %v2208, %v2207
  %v2210 = vld [vmem:[%s6] sm:$0xf]
  %v2211 = vld [vmem:[%s6 + $0x4] sm:$0xf]
  %v2212 = vld [vmem:[%s6 + $0x8] sm:$0xf]
  %v2213 = vld [vmem:[%s6 + $0xc] sm:$0xf]
  %v2214 = vld [vmem:[%s6 + $0x10] sm:$0xf]
  %v2215 = vld [vmem:[%s6 + $0x14] sm:$0xf]
  %v2216 = vld [vmem:[%s6 + $0x18] sm:$0xf]
  %v2217 = vld [vmem:[%s6 + $0x1c] sm:$0xf]
  %v2218 = vld [vmem:[%s6 + $0x20] sm:$0xf]
  %v2219 = vld [vmem:[%s6 + $0x24] sm:$0xf]
  %v2220 = vld [vmem:[%s6 + $0x28] sm:$0xf]
  %v2221 = vld [vmem:[%s6 + $0x2c] sm:$0xf]
  %v2222 = vld [vmem:[%s6 + $0x30] sm:$0xf]
  %v2223 = vld [vmem:[%s6 + $0x34] sm:$0xf]
  %v2224 = vld [vmem:[%s6 + $0x38] sm:$0xf]
  %v2225 = vld [vmem:[%s6 + $0x3c] sm:$0xf]
  %v2242 = vunpack.c.l.b16 %v2210
  %v2243 = vunpack.c.l.b16 %v2211
  %v2244 = vunpack.c.l.b16 %v2212
  %v2245 = vunpack.c.l.b16 %v2213
  %v2246 = vunpack.c.l.b16 %v2214
  %v2247 = vunpack.c.l.b16 %v2215
  %v2248 = vunpack.c.l.b16 %v2216
  %v2249 = vunpack.c.l.b16 %v2217
  %v2250 = vunpack.c.l.b16 %v2218
  %v2251 = vunpack.c.l.b16 %v2219
  %v2252 = vunpack.c.l.b16 %v2220
  %v2253 = vunpack.c.l.b16 %v2221
  %v2254 = vunpack.c.l.b16 %v2222
  %v2255 = vunpack.c.l.b16 %v2223
  %v2256 = vunpack.c.l.b16 %v2224
  %v2257 = vunpack.c.l.b16 %v2225
  %v2258 = vpack.c.b16 %v2243, %v2242
  %v2259 = vpack.c.b16 %v2245, %v2244
  %v2260 = vpack.c.b16 %v2247, %v2246
  %v2261 = vpack.c.b16 %v2249, %v2248
  %v2262 = vpack.c.b16 %v2251, %v2250
  %v2263 = vpack.c.b16 %v2253, %v2252
  %v2264 = vpack.c.b16 %v2255, %v2254
  %v2265 = vpack.c.b16 %v2257, %v2256
  %2274 = vmatprep.subr.bf16.mxu0 0
  %2275 = vmatpush1.bf16.msra.mxu0 %v2258
  %2276 = vmatprep.subr.bf16.mxu0 0
  %2277 = vmatpush1.bf16.msra.mxu0 %v2259
  %2278 = vmatprep.subr.bf16.mxu0 0
  %2279 = vmatpush1.bf16.msra.mxu0 %v2260
  %2280 = vmatprep.subr.bf16.mxu0 0
  %2281 = vmatpush1.bf16.msra.mxu0 %v2261
  %2282 = vmatprep.subr.bf16.mxu0 0
  %2283 = vmatpush1.bf16.msra.mxu0 %v2262
  %2284 = vmatprep.subr.bf16.mxu0 0
  %2285 = vmatpush1.bf16.msra.mxu0 %v2263
  %2286 = vmatprep.subr.bf16.mxu0 0
  %2287 = vmatpush1.bf16.msra.mxu0 %v2264
  %2288 = vmatprep.subr.bf16.mxu0 0
  %2289 = vmatpush1.bf16.msra.mxu0 %v2265
  %2290 = vmatprep.subr.bf16.mxu0 0
  %2291 = vmatpush1.bf16.msra.mxu0 0
  %2292 = vmatprep.subr.bf16.mxu0 0
  %2293 = vmatpush1.bf16.msra.mxu0 0
  %2294 = vmatprep.subr.bf16.mxu0 0
  %2295 = vmatpush1.bf16.msra.mxu0 0
  %2296 = vmatprep.subr.bf16.mxu0 0
  %2297 = vmatpush1.bf16.msra.mxu0 0
  %2298 = vmatprep.subr.bf16.mxu0 0
  %2299 = vmatpush1.bf16.msra.mxu0 0
  %2300 = vmatprep.subr.bf16.mxu0 0
  %2301 = vmatpush1.bf16.msra.mxu0 0
  %2302 = vmatprep.subr.bf16.mxu0 0
  %2303 = vmatpush1.bf16.msra.mxu0 0
  %2304 = vmatprep.subr.bf16.mxu0 0
  %2305 = vmatpush1.bf16.msra.mxu0 0
  %2306 = vmatprep.mubr.bf16.mxu0 0
  %2307 = vmatmul.mubr.bf16.gmra.mrb[0].mxu0 %v2209
  %v2308 = vpop.f32.mrb[0].mxu0
  %v2309 = vadd.f32 0.0, %v2308
  %v2310 = vpop.f32.mrb[0].mxu0
  %v2311 = vpop.f32.mrb[0].mxu0
  %v2312 = vadd.f32 0.0, %v2311
  %v2313 = vpop.f32.mrb[0].mxu0
  %2314 = vdwg.mxu0
  %2315 = vst [vmem:[#allocation2] sm:$0xff] %v2309
  %2316 = vst [vmem:[#allocation2 + $0x8] sm:$0xff] %v2312
  %s2317 = scalar_lea.vmem %s6, 64
  %v2318 = vld [vmem:[%s2317] sm:$0xf]
  %v2319 = vld [vmem:[%s2317 + $0x4] sm:$0xf]
  %v2320 = vld [vmem:[%s2317 + $0x8] sm:$0xf]
  %v2321 = vld [vmem:[%s2317 + $0xc] sm:$0xf]
  %v2322 = vld [vmem:[%s2317 + $0x10] sm:$0xf]
  %v2323 = vld [vmem:[%s2317 + $0x14] sm:$0xf]
  %v2324 = vld [vmem:[%s2317 + $0x18] sm:$0xf]
  %v2325 = vld [vmem:[%s2317 + $0x1c] sm:$0xf]
  %v2326 = vld [vmem:[%s2317 + $0x20] sm:$0xf]
  %v2327 = vld [vmem:[%s2317 + $0x24] sm:$0xf]
  %v2328 = vld [vmem:[%s2317 + $0x28] sm:$0xf]
  %v2329 = vld [vmem:[%s2317 + $0x2c] sm:$0xf]
  %v2330 = vld [vmem:[%s2317 + $0x30] sm:$0xf]
  %v2331 = vld [vmem:[%s2317 + $0x34] sm:$0xf]
  %v2332 = vld [vmem:[%s2317 + $0x38] sm:$0xf]
  %v2333 = vld [vmem:[%s2317 + $0x3c] sm:$0xf]
  %v2350 = vunpack.c.l.b16 %v2318
  %v2351 = vunpack.c.l.b16 %v2319
  %v2352 = vunpack.c.l.b16 %v2320
  %v2353 = vunpack.c.l.b16 %v2321
  %v2354 = vunpack.c.l.b16 %v2322
  %v2355 = vunpack.c.l.b16 %v2323
  %v2356 = vunpack.c.l.b16 %v2324
  %v2357 = vunpack.c.l.b16 %v2325
  %v2358 = vunpack.c.l.b16 %v2326
  %v2359 = vunpack.c.l.b16 %v2327
  %v2360 = vunpack.c.l.b16 %v2328
  %v2361 = vunpack.c.l.b16 %v2329
  %v2362 = vunpack.c.l.b16 %v2330
  %v2363 = vunpack.c.l.b16 %v2331
  %v2364 = vunpack.c.l.b16 %v2332
  %v2365 = vunpack.c.l.b16 %v2333
  %v2366 = vpack.c.b16 %v2351, %v2350
  %v2367 = vpack.c.b16 %v2353, %v2352
  %v2368 = vpack.c.b16 %v2355, %v2354
  %v2369 = vpack.c.b16 %v2357, %v2356
  %v2370 = vpack.c.b16 %v2359, %v2358
  %v2371 = vpack.c.b16 %v2361, %v2360
  %v2372 = vpack.c.b16 %v2363, %v2362
  %v2373 = vpack.c.b16 %v2365, %v2364
  %2382 = vmatprep.subr.bf16.mxu0 0
  %2383 = vmatpush1.bf16.msra.mxu0 %v2366
  %2384 = vmatprep.subr.bf16.mxu0 0
  %2385 = vmatpush1.bf16.msra.mxu0 %v2367
  %2386 = vmatprep.subr.bf16.mxu0 0
  %2387 = vmatpush1.bf16.msra.mxu0 %v2368
  %2388 = vmatprep.subr.bf16.mxu0 0
  %2389 = vmatpush1.bf16.msra.mxu0 %v2369
  %2390 = vmatprep.subr.bf16.mxu0 0
  %2391 = vmatpush1.bf16.msra.mxu0 %v2370
  %2392 = vmatprep.subr.bf16.mxu0 0
  %2393 = vmatpush1.bf16.msra.mxu0 %v2371
  %2394 = vmatprep.subr.bf16.mxu0 0
  %2395 = vmatpush1.bf16.msra.mxu0 %v2372
  %2396 = vmatprep.subr.bf16.mxu0 0
  %2397 = vmatpush1.bf16.msra.mxu0 %v2373
  %2398 = vmatprep.subr.bf16.mxu0 0
  %2399 = vmatpush1.bf16.msra.mxu0 0
  %2400 = vmatprep.subr.bf16.mxu0 0
  %2401 = vmatpush1.bf16.msra.mxu0 0
  %2402 = vmatprep.subr.bf16.mxu0 0
  %2403 = vmatpush1.bf16.msra.mxu0 0
  %2404 = vmatprep.subr.bf16.mxu0 0
  %2405 = vmatpush1.bf16.msra.mxu0 0
  %2406 = vmatprep.subr.bf16.mxu0 0
  %2407 = vmatpush1.bf16.msra.mxu0 0
  %2408 = vmatprep.subr.bf16.mxu0 0
  %2409 = vmatpush1.bf16.msra.mxu0 0
  %2410 = vmatprep.subr.bf16.mxu0 0
  %2411 = vmatpush1.bf16.msra.mxu0 0
  %2412 = vmatprep.subr.bf16.mxu0 0
  %2413 = vmatpush1.bf16.msra.mxu0 0
  %2414 = vmatprep.mubr.bf16.mxu0 0
  %2415 = vmatmul.mubr.bf16.gmra.mrb[0].mxu0 %v2209
  %v2416 = vpop.f32.mrb[0].mxu0
  %v2417 = vadd.f32 0.0, %v2416
  %v2418 = vpop.f32.mrb[0].mxu0
  %v2419 = vpop.f32.mrb[0].mxu0
  %v2420 = vadd.f32 0.0, %v2419
  %v2421 = vpop.f32.mrb[0].mxu0
  %2422 = vdwg.mxu0
  %2423 = vst [vmem:[#allocation2 + $0x10] sm:$0xff] %v2417
  %2424 = vst [vmem:[#allocation2 + $0x18] sm:$0xff] %v2420
  %s2425 = scalar_lea.vmem %s6, 128
  %v2426 = vld [vmem:[%s2425] sm:$0xf]
  %v2427 = vld [vmem:[%s2425 + $0x4] sm:$0xf]
  %v2428 = vld [vmem:[%s2425 + $0x8] sm:$0xf]
  %v2429 = vld [vmem:[%s2425 + $0xc] sm:$0xf]
  %v2430 = vld [vmem:[%s2425 + $0x10] sm:$0xf]
  %v2431 = vld [vmem:[%s2425 + $0x14] sm:$0xf]
  %v2432 = vld [vmem:[%s2425 + $0x18] sm:$0xf]
  %v2433 = vld [vmem:[%s2425 + $0x1c] sm:$0xf]
  %v2434 = vld [vmem:[%s2425 + $0x20] sm:$0xf]
  %v2435 = vld [vmem:[%s2425 + $0x24] sm:$0xf]
  %v2436 = vld [vmem:[%s2425 + $0x28] sm:$0xf]
  %v2437 = vld [vmem:[%s2425 + $0x2c] sm:$0xf]
  %v2438 = vld [vmem:[%s2425 + $0x30] sm:$0xf]
  %v2439 = vld [vmem:[%s2425 + $0x34] sm:$0xf]
  %v2440 = vld [vmem:[%s2425 + $0x38] sm:$0xf]
  %v2441 = vld [vmem:[%s2425 + $0x3c] sm:$0xf]
  %v2458 = vunpack.c.l.b16 %v2426
  %v2459 = vunpack.c.l.b16 %v2427
  %v2460 = vunpack.c.l.b16 %v2428
  %v2461 = vunpack.c.l.b16 %v2429
  %v2462 = vunpack.c.l.b16 %v2430
  %v2463 = vunpack.c.l.b16 %v2431
  %v2464 = vunpack.c.l.b16 %v2432
  %v2465 = vunpack.c.l.b16 %v2433
  %v2466 = vunpack.c.l.b16 %v2434
  %v2467 = vunpack.c.l.b16 %v2435
  %v2468 = vunpack.c.l.b16 %v2436
  %v2469 = vunpack.c.l.b16 %v2437
  %v2470 = vunpack.c.l.b16 %v2438
  %v2471 = vunpack.c.l.b16 %v2439
  %v2472 = vunpack.c.l.b16 %v2440
  %v2473 = vunpack.c.l.b16 %v2441
  %v2474 = vpack.c.b16 %v2459, %v2458
  %v2475 = vpack.c.b16 %v2461, %v2460
  %v2476 = vpack.c.b16 %v2463, %v2462
  %v2477 = vpack.c.b16 %v2465, %v2464
  %v2478 = vpack.c.b16 %v2467, %v2466
  %v2479 = vpack.c.b16 %v2469, %v2468
  %v2480 = vpack.c.b16 %v2471, %v2470
  %v2481 = vpack.c.b16 %v2473, %v2472
  %2490 = vmatprep.subr.bf16.mxu0 0
  %2491 = vmatpush1.bf16.msra.mxu0 %v2474
  %2492 = vmatprep.subr.bf16.mxu0 0
  %2493 = vmatpush1.bf16.msra.mxu0 %v2475
  %2494 = vmatprep.subr.bf16.mxu0 0
  %2495 = vmatpush1.bf16.msra.mxu0 %v2476
  %2496 = vmatprep.subr.bf16.mxu0 0
  %2497 = vmatpush1.bf16.msra.mxu0 %v2477
  %2498 = vmatprep.subr.bf16.mxu0 0
  %2499 = vmatpush1.bf16.msra.mxu0 %v2478
  %2500 = vmatprep.subr.bf16.mxu0 0
  %2501 = vmatpush1.bf16.msra.mxu0 %v2479
  %2502 = vmatprep.subr.bf16.mxu0 0
  %2503 = vmatpush1.bf16.msra.mxu0 %v2480
  %2504 = vmatprep.subr.bf16.mxu0 0
  %2505 = vmatpush1.bf16.msra.mxu0 %v2481
  %2506 = vmatprep.subr.bf16.mxu0 0
  %2507 = vmatpush1.bf16.msra.mxu0 0
  %2508 = vmatprep.subr.bf16.mxu0 0
  %2509 = vmatpush1.bf16.msra.mxu0 0
  %2510 = vmatprep.subr.bf16.mxu0 0
  %2511 = vmatpush1.bf16.msra.mxu0 0
  %2512 = vmatprep.subr.bf16.mxu0 0
  %2513 = vmatpush1.bf16.msra.mxu0 0
  %2514 = vmatprep.subr.bf16.mxu0 0
  %2515 = vmatpush1.bf16.msra.mxu0 0
  %2516 = vmatprep.subr.bf16.mxu0 0
  %2517 = vmatpush1.bf16.msra.mxu0 0
  %2518 = vmatprep.subr.bf16.mxu0 0
  %2519 = vmatpush1.bf16.msra.mxu0 0
  %2520 = vmatprep.subr.bf16.mxu0 0
  %2521 = vmatpush1.bf16.msra.mxu0 0
  %2522 = vmatprep.mubr.bf16.mxu0 0
  %2523 = vmatmul.mubr.bf16.gmra.mrb[0].mxu0 %v2209
  %v2524 = vpop.f32.mrb[0].mxu0
  %v2525 = vadd.f32 0.0, %v2524
  %v2526 = vpop.f32.mrb[0].mxu0
  %v2527 = vpop.f32.mrb[0].mxu0
  %v2528 = vadd.f32 0.0, %v2527
  %v2529 = vpop.f32.mrb[0].mxu0
  %2530 = vdwg.mxu0
  %2531 = vst [vmem:[#allocation2 + $0x20] sm:$0xff] %v2525
  %2532 = vst [vmem:[#allocation2 + $0x28] sm:$0xff] %v2528
  %s2533 = scalar_lea.vmem %s6, 192
  %v2534 = vld [vmem:[%s2533] sm:$0xf]
  %v2535 = vld [vmem:[%s2533 + $0x4] sm:$0xf]
  %v2536 = vld [vmem:[%s2533 + $0x8] sm:$0xf]
  %v2537 = vld [vmem:[%s2533 + $0xc] sm:$0xf]
  %v2538 = vld [vmem:[%s2533 + $0x10] sm:$0xf]
  %v2539 = vld [vmem:[%s2533 + $0x14] sm:$0xf]
  %v2540 = vld [vmem:[%s2533 + $0x18] sm:$0xf]
  %v2541 = vld [vmem:[%s2533 + $0x1c] sm:$0xf]
  %v2542 = vld [vmem:[%s2533 + $0x20] sm:$0xf]
  %v2543 = vld [vmem:[%s2533 + $0x24] sm:$0xf]
  %v2544 = vld [vmem:[%s2533 + $0x28] sm:$0xf]
  %v2545 = vld [vmem:[%s2533 + $0x2c] sm:$0xf]
  %v2546 = vld [vmem:[%s2533 + $0x30] sm:$0xf]
  %v2547 = vld [vmem:[%s2533 + $0x34] sm:$0xf]
  %v2548 = vld [vmem:[%s2533 + $0x38] sm:$0xf]
  %v2549 = vld [vmem:[%s2533 + $0x3c] sm:$0xf]
  %v2566 = vunpack.c.l.b16 %v2534
  %v2567 = vunpack.c.l.b16 %v2535
  %v2568 = vunpack.c.l.b16 %v2536
  %v2569 = vunpack.c.l.b16 %v2537
  %v2570 = vunpack.c.l.b16 %v2538
  %v2571 = vunpack.c.l.b16 %v2539
  %v2572 = vunpack.c.l.b16 %v2540
  %v2573 = vunpack.c.l.b16 %v2541
  %v2574 = vunpack.c.l.b16 %v2542
  %v2575 = vunpack.c.l.b16 %v2543
  %v2576 = vunpack.c.l.b16 %v2544
  %v2577 = vunpack.c.l.b16 %v2545
  %v2578 = vunpack.c.l.b16 %v2546
  %v2579 = vunpack.c.l.b16 %v2547
  %v2580 = vunpack.c.l.b16 %v2548
  %v2581 = vunpack.c.l.b16 %v2549
  %v2582 = vpack.c.b16 %v2567, %v2566
  %v2583 = vpack.c.b16 %v2569, %v2568
  %v2584 = vpack.c.b16 %v2571, %v2570
  %v2585 = vpack.c.b16 %v2573, %v2572
  %v2586 = vpack.c.b16 %v2575, %v2574
  %v2587 = vpack.c.b16 %v2577, %v2576
  %v2588 = vpack.c.b16 %v2579, %v2578
  %v2589 = vpack.c.b16 %v2581, %v2580
  %2598 = vmatprep.subr.bf16.mxu0 0
  %2599 = vmatpush1.bf16.msra.mxu0 %v2582
  %2600 = vmatprep.subr.bf16.mxu0 0
  %2601 = vmatpush1.bf16.msra.mxu0 %v2583
  %2602 = vmatprep.subr.bf16.mxu0 0
  %2603 = vmatpush1.bf16.msra.mxu0 %v2584
  %2604 = vmatprep.subr.bf16.mxu0 0
  %2605 = vmatpush1.bf16.msra.mxu0 %v2585
  %2606 = vmatprep.subr.bf16.mxu0 0
  %2607 = vmatpush1.bf16.msra.mxu0 %v2586
  %2608 = vmatprep.subr.bf16.mxu0 0
  %2609 = vmatpush1.bf16.msra.mxu0 %v2587
  %2610 = vmatprep.subr.bf16.mxu0 0
  %2611 = vmatpush1.bf16.msra.mxu0 %v2588
  %2612 = vmatprep.subr.bf16.mxu0 0
  %2613 = vmatpush1.bf16.msra.mxu0 %v2589
  %2614 = vmatprep.subr.bf16.mxu0 0
  %2615 = vmatpush1.bf16.msra.mxu0 0
  %2616 = vmatprep.subr.bf16.mxu0 0
  %2617 = vmatpush1.bf16.msra.mxu0 0
  %2618 = vmatprep.subr.bf16.mxu0 0
  %2619 = vmatpush1.bf16.msra.mxu0 0
  %2620 = vmatprep.subr.bf16.mxu0 0
  %2621 = vmatpush1.bf16.msra.mxu0 0
  %2622 = vmatprep.subr.bf16.mxu0 0
  %2623 = vmatpush1.bf16.msra.mxu0 0
  %2624 = vmatprep.subr.bf16.mxu0 0
  %2625 = vmatpush1.bf16.msra.mxu0 0
  %2626 = vmatprep.subr.bf16.mxu0 0
  %2627 = vmatpush1.bf16.msra.mxu0 0
  %2628 = vmatprep.subr.bf16.mxu0 0
  %2629 = vmatpush1.bf16.msra.mxu0 0
  %2630 = vmatprep.mubr.bf16.mxu0 0
  %2631 = vmatmul.mubr.bf16.gmra.mrb[0].mxu0 %v2209
  %v2632 = vpop.f32.mrb[0].mxu0
  %v2633 = vadd.f32 0.0, %v2632
  %v2634 = vpop.f32.mrb[0].mxu0
  %v2635 = vpop.f32.mrb[0].mxu0
  %v2636 = vadd.f32 0.0, %v2635
  %v2637 = vpop.f32.mrb[0].mxu0
  %2638 = vdwg.mxu0
  %2639 = vst [vmem:[#allocation2 + $0x30] sm:$0xff] %v2633
  %2640 = vst [vmem:[#allocation2 + $0x38] sm:$0xff] %v2636
  %s2641 = scalar_lea.vmem %s6, 256
  %v2642 = vld [vmem:[%s2641] sm:$0xf]
  %v2643 = vld [vmem:[%s2641 + $0x4] sm:$0xf]
  %v2644 = vld [vmem:[%s2641 + $0x8] sm:$0xf]
  %v2645 = vld [vmem:[%s2641 + $0xc] sm:$0xf]
  %v2646 = vld [vmem:[%s2641 + $0x10] sm:$0xf]
  %v2647 = vld [vmem:[%s2641 + $0x14] sm:$0xf]
  %v2648 = vld [vmem:[%s2641 + $0x18] sm:$0xf]
  %v2649 = vld [vmem:[%s2641 + $0x1c] sm:$0xf]
  %v2650 = vld [vmem:[%s2641 + $0x20] sm:$0xf]
  %v2651 = vld [vmem:[%s2641 + $0x24] sm:$0xf]
  %v2652 = vld [vmem:[%s2641 + $0x28] sm:$0xf]
  %v2653 = vld [vmem:[%s2641 + $0x2c] sm:$0xf]
  %v2654 = vld [vmem:[%s2641 + $0x30] sm:$0xf]
  %v2655 = vld [vmem:[%s2641 + $0x34] sm:$0xf]
  %v2656 = vld [vmem:[%s2641 + $0x38] sm:$0xf]
  %v2657 = vld [vmem:[%s2641 + $0x3c] sm:$0xf]
  %v2674 = vunpack.c.l.b16 %v2642
  %v2675 = vunpack.c.l.b16 %v2643
  %v2676 = vunpack.c.l.b16 %v2644
  %v2677 = vunpack.c.l.b16 %v2645
  %v2678 = vunpack.c.l.b16 %v2646
  %v2679 = vunpack.c.l.b16 %v2647
  %v2680 = vunpack.c.l.b16 %v2648
  %v2681 = vunpack.c.l.b16 %v2649
  %v2682 = vunpack.c.l.b16 %v2650
  %v2683 = vunpack.c.l.b16 %v2651
  %v2684 = vunpack.c.l.b16 %v2652
  %v2685 = vunpack.c.l.b16 %v2653
  %v2686 = vunpack.c.l.b16 %v2654
  %v2687 = vunpack.c.l.b16 %v2655
  %v2688 = vunpack.c.l.b16 %v2656
  %v2689 = vunpack.c.l.b16 %v2657
  %v2690 = vpack.c.b16 %v2675, %v2674
  %v2691 = vpack.c.b16 %v2677, %v2676
  %v2692 = vpack.c.b16 %v2679, %v2678
  %v2693 = vpack.c.b16 %v2681, %v2680
  %v2694 = vpack.c.b16 %v2683, %v2682
  %v2695 = vpack.c.b16 %v2685, %v2684
  %v2696 = vpack.c.b16 %v2687, %v2686
  %v2697 = vpack.c.b16 %v2689, %v2688
  %2706 = vmatprep.subr.bf16.mxu0 0
  %2707 = vmatpush1.bf16.msra.mxu0 %v2690
  %2708 = vmatprep.subr.bf16.mxu0 0
  %2709 = vmatpush1.bf16.msra.mxu0 %v2691
  %2710 = vmatprep.subr.bf16.mxu0 0
  %2711 = vmatpush1.bf16.msra.mxu0 %v2692
  %2712 = vmatprep.subr.bf16.mxu0 0
  %2713 = vmatpush1.bf16.msra.mxu0 %v2693
  %2714 = vmatprep.subr.bf16.mxu0 0
  %2715 = vmatpush1.bf16.msra.mxu0 %v2694
  %2716 = vmatprep.subr.bf16.mxu0 0
  %2717 = vmatpush1.bf16.msra.mxu0 %v2695
  %2718 = vmatprep.subr.bf16.mxu0 0
  %2719 = vmatpush1.bf16.msra.mxu0 %v2696
  %2720 = vmatprep.subr.bf16.mxu0 0
  %2721 = vmatpush1.bf16.msra.mxu0 %v2697
  %2722 = vmatprep.subr.bf16.mxu0 0
  %2723 = vmatpush1.bf16.msra.mxu0 0
  %2724 = vmatprep.subr.bf16.mxu0 0
  %2725 = vmatpush1.bf16.msra.mxu0 0
  %2726 = vmatprep.subr.bf16.mxu0 0
  %2727 = vmatpush1.bf16.msra.mxu0 0
  %2728 = vmatprep.subr.bf16.mxu0 0
  %2729 = vmatpush1.bf16.msra.mxu0 0
  %2730 = vmatprep.subr.bf16.mxu0 0
  %2731 = vmatpush1.bf16.msra.mxu0 0
  %2732 = vmatprep.subr.bf16.mxu0 0
  %2733 = vmatpush1.bf16.msra.mxu0 0
  %2734 = vmatprep.subr.bf16.mxu0 0
  %2735 = vmatpush1.bf16.msra.mxu0 0
  %2736 = vmatprep.subr.bf16.mxu0 0
  %2737 = vmatpush1.bf16.msra.mxu0 0
  %2738 = vmatprep.mubr.bf16.mxu0 0
  %2739 = vmatmul.mubr.bf16.gmra.mrb[0].mxu0 %v2209
  %v2740 = vpop.f32.mrb[0].mxu0
  %v2741 = vadd.f32 0.0, %v2740
  %v2742 = vpop.f32.mrb[0].mxu0
  %v2743 = vpop.f32.mrb[0].mxu0
  %v2744 = vadd.f32 0.0, %v2743
  %v2745 = vpop.f32.mrb[0].mxu0
  %2746 = vdwg.mxu0
  %2747 = vst [vmem:[#allocation2 + $0x40] sm:$0xff] %v2741
  %2748 = vst [vmem:[#allocation2 + $0x48] sm:$0xff] %v2744
  %s2749 = scalar_lea.vmem %s6, 320
  %v2750 = vld [vmem:[%s2749] sm:$0xf]
  %v2751 = vld [vmem:[%s2749 + $0x4] sm:$0xf]
  %v2752 = vld [vmem:[%s2749 + $0x8] sm:$0xf]
  %v2753 = vld [vmem:[%s2749 + $0xc] sm:$0xf]
  %v2754 = vld [vmem:[%s2749 + $0x10] sm:$0xf]
  %v2755 = vld [vmem:[%s2749 + $0x14] sm:$0xf]
  %v2756 = vld [vmem:[%s2749 + $0x18] sm:$0xf]
  %v2757 = vld [vmem:[%s2749 + $0x1c] sm:$0xf]
  %v2758 = vld [vmem:[%s2749 + $0x20] sm:$0xf]
  %v2759 = vld [vmem:[%s2749 + $0x24] sm:$0xf]
  %v2760 = vld [vmem:[%s2749 + $0x28] sm:$0xf]
  %v2761 = vld [vmem:[%s2749 + $0x2c] sm:$0xf]
  %v2762 = vld [vmem:[%s2749 + $0x30] sm:$0xf]
  %v2763 = vld [vmem:[%s2749 + $0x34] sm:$0xf]
  %v2764 = vld [vmem:[%s2749 + $0x38] sm:$0xf]
  %v2765 = vld [vmem:[%s2749 + $0x3c] sm:$0xf]
  %v2782 = vunpack.c.l.b16 %v2750
  %v2783 = vunpack.c.l.b16 %v2751
  %v2784 = vunpack.c.l.b16 %v2752
  %v2785 = vunpack.c.l.b16 %v2753
  %v2786 = vunpack.c.l.b16 %v2754
  %v2787 = vunpack.c.l.b16 %v2755
  %v2788 = vunpack.c.l.b16 %v2756
  %v2789 = vunpack.c.l.b16 %v2757
  %v2790 = vunpack.c.l.b16 %v2758
  %v2791 = vunpack.c.l.b16 %v2759
  %v2792 = vunpack.c.l.b16 %v2760
  %v2793 = vunpack.c.l.b16 %v2761
  %v2794 = vunpack.c.l.b16 %v2762
  %v2795 = vunpack.c.l.b16 %v2763
  %v2796 = vunpack.c.l.b16 %v2764
  %v2797 = vunpack.c.l.b16 %v2765
  %v2798 = vpack.c.b16 %v2783, %v2782
  %v2799 = vpack.c.b16 %v2785, %v2784
  %v2800 = vpack.c.b16 %v2787, %v2786
  %v2801 = vpack.c.b16 %v2789, %v2788
  %v2802 = vpack.c.b16 %v2791, %v2790
  %v2803 = vpack.c.b16 %v2793, %v2792
  %v2804 = vpack.c.b16 %v2795, %v2794
  %v2805 = vpack.c.b16 %v2797, %v2796
  %2814 = vmatprep.subr.bf16.mxu0 0
  %2815 = vmatpush1.bf16.msra.mxu0 %v2798
  %2816 = vmatprep.subr.bf16.mxu0 0
  %2817 = vmatpush1.bf16.msra.mxu0 %v2799
  %2818 = vmatprep.subr.bf16.mxu0 0
  %2819 = vmatpush1.bf16.msra.mxu0 %v2800
  %2820 = vmatprep.subr.bf16.mxu0 0
  %2821 = vmatpush1.bf16.msra.mxu0 %v2801
  %2822 = vmatprep.subr.bf16.mxu0 0
  %2823 = vmatpush1.bf16.msra.mxu0 %v2802
  %2824 = vmatprep.subr.bf16.mxu0 0
  %2825 = vmatpush1.bf16.msra.mxu0 %v2803
  %2826 = vmatprep.subr.bf16.mxu0 0
  %2827 = vmatpush1.bf16.msra.mxu0 %v2804
  %2828 = vmatprep.subr.bf16.mxu0 0
  %2829 = vmatpush1.bf16.msra.mxu0 %v2805
  %2830 = vmatprep.subr.bf16.mxu0 0
  %2831 = vmatpush1.bf16.msra.mxu0 0
  %2832 = vmatprep.subr.bf16.mxu0 0
  %2833 = vmatpush1.bf16.msra.mxu0 0
  %2834 = vmatprep.subr.bf16.mxu0 0
  %2835 = vmatpush1.bf16.msra.mxu0 0
  %2836 = vmatprep.subr.bf16.mxu0 0
  %2837 = vmatpush1.bf16.msra.mxu0 0
  %2838 = vmatprep.subr.bf16.mxu0 0
  %2839 = vmatpush1.bf16.msra.mxu0 0
  %2840 = vmatprep.subr.bf16.mxu0 0
  %2841 = vmatpush1.bf16.msra.mxu0 0
  %2842 = vmatprep.subr.bf16.mxu0 0
  %2843 = vmatpush1.bf16.msra.mxu0 0
  %2844 = vmatprep.subr.bf16.mxu0 0
  %2845 = vmatpush1.bf16.msra.mxu0 0
  %2846 = vmatprep.mubr.bf16.mxu0 0
  %2847 = vmatmul.mubr.bf16.gmra.mrb[0].mxu0 %v2209
  %v2848 = vpop.f32.mrb[0].mxu0
  %v2849 = vadd.f32 0.0, %v2848
  %v2850 = vpop.f32.mrb[0].mxu0
  %v2851 = vpop.f32.mrb[0].mxu0
  %v2852 = vadd.f32 0.0, %v2851
  %v2853 = vpop.f32.mrb[0].mxu0
  %2854 = vdwg.mxu0
  %2855 = vst [vmem:[#allocation2 + $0x50] sm:$0xff] %v2849
  %2856 = vst [vmem:[#allocation2 + $0x58] sm:$0xff] %v2852
  %s2857 = scalar_lea.vmem %s6, 384
  %v2858 = vld [vmem:[%s2857] sm:$0xf]
  %v2859 = vld [vmem:[%s2857 + $0x4] sm:$0xf]
  %v2860 = vld [vmem:[%s2857 + $0x8] sm:$0xf]
  %v2861 = vld [vmem:[%s2857 + $0xc] sm:$0xf]
  %v2862 = vld [vmem:[%s2857 + $0x10] sm:$0xf]
  %v2863 = vld [vmem:[%s2857 + $0x14] sm:$0xf]
  %v2864 = vld [vmem:[%s2857 + $0x18] sm:$0xf]
  %v2865 = vld [vmem:[%s2857 + $0x1c] sm:$0xf]
  %v2866 = vld [vmem:[%s2857 + $0x20] sm:$0xf]
  %v2867 = vld [vmem:[%s2857 + $0x24] sm:$0xf]
  %v2868 = vld [vmem:[%s2857 + $0x28] sm:$0xf]
  %v2869 = vld [vmem:[%s2857 + $0x2c] sm:$0xf]
  %v2870 = vld [vmem:[%s2857 + $0x30] sm:$0xf]
  %v2871 = vld [vmem:[%s2857 + $0x34] sm:$0xf]
  %v2872 = vld [vmem:[%s2857 + $0x38] sm:$0xf]
  %v2873 = vld [vmem:[%s2857 + $0x3c] sm:$0xf]
  %v2890 = vunpack.c.l.b16 %v2858
  %v2891 = vunpack.c.l.b16 %v2859
  %v2892 = vunpack.c.l.b16 %v2860
  %v2893 = vunpack.c.l.b16 %v2861
  %v2894 = vunpack.c.l.b16 %v2862
  %v2895 = vunpack.c.l.b16 %v2863
  %v2896 = vunpack.c.l.b16 %v2864
  %v2897 = vunpack.c.l.b16 %v2865
  %v2898 = vunpack.c.l.b16 %v2866
  %v2899 = vunpack.c.l.b16 %v2867
  %v2900 = vunpack.c.l.b16 %v2868
  %v2901 = vunpack.c.l.b16 %v2869
  %v2902 = vunpack.c.l.b16 %v2870
  %v2903 = vunpack.c.l.b16 %v2871
  %v2904 = vunpack.c.l.b16 %v2872
  %v2905 = vunpack.c.l.b16 %v2873
  %v2906 = vpack.c.b16 %v2891, %v2890
  %v2907 = vpack.c.b16 %v2893, %v2892
  %v2908 = vpack.c.b16 %v2895, %v2894
  %v2909 = vpack.c.b16 %v2897, %v2896
  %v2910 = vpack.c.b16 %v2899, %v2898
  %v2911 = vpack.c.b16 %v2901, %v2900
  %v2912 = vpack.c.b16 %v2903, %v2902
  %v2913 = vpack.c.b16 %v2905, %v2904
  %2922 = vmatprep.subr.bf16.mxu0 0
  %2923 = vmatpush1.bf16.msra.mxu0 %v2906
  %2924 = vmatprep.subr.bf16.mxu0 0
  %2925 = vmatpush1.bf16.msra.mxu0 %v2907
  %2926 = vmatprep.subr.bf16.mxu0 0
  %2927 = vmatpush1.bf16.msra.mxu0 %v2908
  %2928 = vmatprep.subr.bf16.mxu0 0
  %2929 = vmatpush1.bf16.msra.mxu0 %v2909
  %2930 = vmatprep.subr.bf16.mxu0 0
  %2931 = vmatpush1.bf16.msra.mxu0 %v2910
  %2932 = vmatprep.subr.bf16.mxu0 0
  %2933 = vmatpush1.bf16.msra.mxu0 %v2911
  %2934 = vmatprep.subr.bf16.mxu0 0
  %2935 = vmatpush1.bf16.msra.mxu0 %v2912
  %2936 = vmatprep.subr.bf16.mxu0 0
  %2937 = vmatpush1.bf16.msra.mxu0 %v2913
  %2938 = vmatprep.subr.bf16.mxu0 0
  %2939 = vmatpush1.bf16.msra.mxu0 0
  %2940 = vmatprep.subr.bf16.mxu0 0
  %2941 = vmatpush1.bf16.msra.mxu0 0
  %2942 = vmatprep.subr.bf16.mxu0 0
  %2943 = vmatpush1.bf16.msra.mxu0 0
  %2944 = vmatprep.subr.bf16.mxu0 0
  %2945 = vmatpush1.bf16.msra.mxu0 0
  %2946 = vmatprep.subr.bf16.mxu0 0
  %2947 = vmatpush1.bf16.msra.mxu0 0
  %2948 = vmatprep.subr.bf16.mxu0 0
  %2949 = vmatpush1.bf16.msra.mxu0 0
  %2950 = vmatprep.subr.bf16.mxu0 0
  %2951 = vmatpush1.bf16.msra.mxu0 0
  %2952 = vmatprep.subr.bf16.mxu0 0
  %2953 = vmatpush1.bf16.msra.mxu0 0
  %2954 = vmatprep.mubr.bf16.mxu0 0
  %2955 = vmatmul.mubr.bf16.gmra.mrb[0].mxu0 %v2209
  %v2956 = vpop.f32.mrb[0].mxu0
  %v2957 = vadd.f32 0.0, %v2956
  %v2958 = vpop.f32.mrb[0].mxu0
  %v2959 = vpop.f32.mrb[0].mxu0
  %v2960 = vadd.f32 0.0, %v2959
  %v2961 = vpop.f32.mrb[0].mxu0
  %2962 = vdwg.mxu0
  %2963 = vst [vmem:[#allocation2 + $0x60] sm:$0xff] %v2957
  %2964 = vst [vmem:[#allocation2 + $0x68] sm:$0xff] %v2960
  %s2965 = scalar_lea.vmem %s6, 448
  %v2966 = vld [vmem:[%s2965] sm:$0xf]
  %v2967 = vld [vmem:[%s2965 + $0x4] sm:$0xf]
  %v2968 = vld [vmem:[%s2965 + $0x8] sm:$0xf]
  %v2969 = vld [vmem:[%s2965 + $0xc] sm:$0xf]
  %v2970 = vld [vmem:[%s2965 + $0x10] sm:$0xf]
  %v2971 = vld [vmem:[%s2965 + $0x14] sm:$0xf]
  %v2972 = vld [vmem:[%s2965 + $0x18] sm:$0xf]
  %v2973 = vld [vmem:[%s2965 + $0x1c] sm:$0xf]
  %v2974 = vld [vmem:[%s2965 + $0x20] sm:$0xf]
  %v2975 = vld [vmem:[%s2965 + $0x24] sm:$0xf]
  %v2976 = vld [vmem:[%s2965 + $0x28] sm:$0xf]
  %v2977 = vld [vmem:[%s2965 + $0x2c] sm:$0xf]
  %v2978 = vld [vmem:[%s2965 + $0x30] sm:$0xf]
  %v2979 = vld [vmem:[%s2965 + $0x34] sm:$0xf]
  %v2980 = vld [vmem:[%s2965 + $0x38] sm:$0xf]
  %v2981 = vld [vmem:[%s2965 + $0x3c] sm:$0xf]
  %v2998 = vunpack.c.l.b16 %v2966
  %v2999 = vunpack.c.l.b16 %v2967
  %v3000 = vunpack.c.l.b16 %v2968
  %v3001 = vunpack.c.l.b16 %v2969
  %v3002 = vunpack.c.l.b16 %v2970
  %v3003 = vunpack.c.l.b16 %v2971
  %v3004 = vunpack.c.l.b16 %v2972
  %v3005 = vunpack.c.l.b16 %v2973
  %v3006 = vunpack.c.l.b16 %v2974
  %v3007 = vunpack.c.l.b16 %v2975
  %v3008 = vunpack.c.l.b16 %v2976
  %v3009 = vunpack.c.l.b16 %v2977
  %v3010 = vunpack.c.l.b16 %v2978
  %v3011 = vunpack.c.l.b16 %v2979
  %v3012 = vunpack.c.l.b16 %v2980
  %v3013 = vunpack.c.l.b16 %v2981
  %v3014 = vpack.c.b16 %v2999, %v2998
  %v3015 = vpack.c.b16 %v3001, %v3000
  %v3016 = vpack.c.b16 %v3003, %v3002
  %v3017 = vpack.c.b16 %v3005, %v3004
  %v3018 = vpack.c.b16 %v3007, %v3006
  %v3019 = vpack.c.b16 %v3009, %v3008
  %v3020 = vpack.c.b16 %v3011, %v3010
  %v3021 = vpack.c.b16 %v3013, %v3012
  %3030 = vmatprep.subr.bf16.mxu0 0
  %3031 = vmatpush1.bf16.msra.mxu0 %v3014
  %3032 = vmatprep.subr.bf16.mxu0 0
  %3033 = vmatpush1.bf16.msra.mxu0 %v3015
  %3034 = vmatprep.subr.bf16.mxu0 0
  %3035 = vmatpush1.bf16.msra.mxu0 %v3016
  %3036 = vmatprep.subr.bf16.mxu0 0
  %3037 = vmatpush1.bf16.msra.mxu0 %v3017
  %3038 = vmatprep.subr.bf16.mxu0 0
  %3039 = vmatpush1.bf16.msra.mxu0 %v3018
  %3040 = vmatprep.subr.bf16.mxu0 0
  %3041 = vmatpush1.bf16.msra.mxu0 %v3019
  %3042 = vmatprep.subr.bf16.mxu0 0
  %3043 = vmatpush1.bf16.msra.mxu0 %v3020
  %3044 = vmatprep.subr.bf16.mxu0 0
  %3045 = vmatpush1.bf16.msra.mxu0 %v3021
  %3046 = vmatprep.subr.bf16.mxu0 0
  %3047 = vmatpush1.bf16.msra.mxu0 0
  %3048 = vmatprep.subr.bf16.mxu0 0
  %3049 = vmatpush1.bf16.msra.mxu0 0
  %3050 = vmatprep.subr.bf16.mxu0 0
  %3051 = vmatpush1.bf16.msra.mxu0 0
  %3052 = vmatprep.subr.bf16.mxu0 0
  %3053 = vmatpush1.bf16.msra.mxu0 0
  %3054 = vmatprep.subr.bf16.mxu0 0
  %3055 = vmatpush1.bf16.msra.mxu0 0
  %3056 = vmatprep.subr.bf16.mxu0 0
  %3057 = vmatpush1.bf16.msra.mxu0 0
  %3058 = vmatprep.subr.bf16.mxu0 0
  %3059 = vmatpush1.bf16.msra.mxu0 0
  %3060 = vmatprep.subr.bf16.mxu0 0
  %3061 = vmatpush1.bf16.msra.mxu0 0
  %3062 = vmatprep.mubr.bf16.mxu0 0
  %3063 = vmatmul.mubr.bf16.gmra.mrb[0].mxu0 %v2209
  %v3064 = vpop.f32.mrb[0].mxu0
  %v3065 = vadd.f32 0.0, %v3064
  %v3066 = vpop.f32.mrb[0].mxu0
  %v3067 = vpop.f32.mrb[0].mxu0
  %v3068 = vadd.f32 0.0, %v3067
  %v3069 = vpop.f32.mrb[0].mxu0
  %3070 = vdwg.mxu0
  %3071 = vst [vmem:[#allocation2 + $0x70] sm:$0xff] %v3065
  %3072 = vst [vmem:[#allocation2 + $0x78] sm:$0xff] %v3068
  %s3073 = scalar_lea.vmem %s6, 512
  %v3074 = vld [vmem:[%s3073] sm:$0xf]
  %v3075 = vld [vmem:[%s3073 + $0x4] sm:$0xf]
  %v3076 = vld [vmem:[%s3073 + $0x8] sm:$0xf]
  %v3077 = vld [vmem:[%s3073 + $0xc] sm:$0xf]
  %v3078 = vld [vmem:[%s3073 + $0x10] sm:$0xf]
  %v3079 = vld [vmem:[%s3073 + $0x14] sm:$0xf]
  %v3080 = vld [vmem:[%s3073 + $0x18] sm:$0xf]
  %v3081 = vld [vmem:[%s3073 + $0x1c] sm:$0xf]
  %v3082 = vld [vmem:[%s3073 + $0x20] sm:$0xf]
  %v3083 = vld [vmem:[%s3073 + $0x24] sm:$0xf]
  %v3084 = vld [vmem:[%s3073 + $0x28] sm:$0xf]
  %v3085 = vld [vmem:[%s3073 + $0x2c] sm:$0xf]
  %v3086 = vld [vmem:[%s3073 + $0x30] sm:$0xf]
  %v3087 = vld [vmem:[%s3073 + $0x34] sm:$0xf]
  %v3088 = vld [vmem:[%s3073 + $0x38] sm:$0xf]
  %v3089 = vld [vmem:[%s3073 + $0x3c] sm:$0xf]
  %v3106 = vunpack.c.l.b16 %v3074
  %v3107 = vunpack.c.l.b16 %v3075
  %v3108 = vunpack.c.l.b16 %v3076
  %v3109 = vunpack.c.l.b16 %v3077
  %v3110 = vunpack.c.l.b16 %v3078
  %v3111 = vunpack.c.l.b16 %v3079
  %v3112 = vunpack.c.l.b16 %v3080
  %v3113 = vunpack.c.l.b16 %v3081
  %v3114 = vunpack.c.l.b16 %v3082
  %v3115 = vunpack.c.l.b16 %v3083
  %v3116 = vunpack.c.l.b16 %v3084
  %v3117 = vunpack.c.l.b16 %v3085
  %v3118 = vunpack.c.l.b16 %v3086
  %v3119 = vunpack.c.l.b16 %v3087
  %v3120 = vunpack.c.l.b16 %v3088
  %v3121 = vunpack.c.l.b16 %v3089
  %v3122 = vpack.c.b16 %v3107, %v3106
  %v3123 = vpack.c.b16 %v3109, %v3108
  %v3124 = vpack.c.b16 %v3111, %v3110
  %v3125 = vpack.c.b16 %v3113, %v3112
  %v3126 = vpack.c.b16 %v3115, %v3114
  %v3127 = vpack.c.b16 %v3117, %v3116
  %v3128 = vpack.c.b16 %v3119, %v3118
  %v3129 = vpack.c.b16 %v3121, %v3120
  %3138 = vmatprep.subr.bf16.mxu0 0
  %3139 = vmatpush1.bf16.msra.mxu0 %v3122
  %3140 = vmatprep.subr.bf16.mxu0 0
  %3141 = vmatpush1.bf16.msra.mxu0 %v3123
  %3142 = vmatprep.subr.bf16.mxu0 0
  %3143 = vmatpush1.bf16.msra.mxu0 %v3124
  %3144 = vmatprep.subr.bf16.mxu0 0
  %3145 = vmatpush1.bf16.msra.mxu0 %v3125
  %3146 = vmatprep.subr.bf16.mxu0 0
  %3147 = vmatpush1.bf16.msra.mxu0 %v3126
  %3148 = vmatprep.subr.bf16.mxu0 0
  %3149 = vmatpush1.bf16.msra.mxu0 %v3127
  %3150 = vmatprep.subr.bf16.mxu0 0
  %3151 = vmatpush1.bf16.msra.mxu0 %v3128
  %3152 = vmatprep.subr.bf16.mxu0 0
  %3153 = vmatpush1.bf16.msra.mxu0 %v3129
  %3154 = vmatprep.subr.bf16.mxu0 0
  %3155 = vmatpush1.bf16.msra.mxu0 0
  %3156 = vmatprep.subr.bf16.mxu0 0
  %3157 = vmatpush1.bf16.msra.mxu0 0
  %3158 = vmatprep.subr.bf16.mxu0 0
  %3159 = vmatpush1.bf16.msra.mxu0 0
  %3160 = vmatprep.subr.bf16.mxu0 0
  %3161 = vmatpush1.bf16.msra.mxu0 0
  %3162 = vmatprep.subr.bf16.mxu0 0
  %3163 = vmatpush1.bf16.msra.mxu0 0
  %3164 = vmatprep.subr.bf16.mxu0 0
  %3165 = vmatpush1.bf16.msra.mxu0 0
  %3166 = vmatprep.subr.bf16.mxu0 0
  %3167 = vmatpush1.bf16.msra.mxu0 0
  %3168 = vmatprep.subr.bf16.mxu0 0
  %3169 = vmatpush1.bf16.msra.mxu0 0
  %3170 = vmatprep.mubr.bf16.mxu0 0
  %3171 = vmatmul.mubr.bf16.gmra.mrb[0].mxu0 %v2209
  %v3172 = vpop.f32.mrb[0].mxu0
  %v3173 = vadd.f32 0.0, %v3172
  %v3174 = vpop.f32.mrb[0].mxu0
  %v3175 = vpop.f32.mrb[0].mxu0
  %v3176 = vadd.f32 0.0, %v3175
  %v3177 = vpop.f32.mrb[0].mxu0
  %3178 = vdwg.mxu0
  %3179 = vst [vmem:[#allocation2 + $0x80] sm:$0xff] %v3173
  %3180 = vst [vmem:[#allocation2 + $0x88] sm:$0xff] %v3176
  %s3181 = scalar_lea.vmem %s6, 576
  %v3182 = vld [vmem:[%s3181] sm:$0xf]
  %v3183 = vld [vmem:[%s3181 + $0x4] sm:$0xf]
  %v3184 = vld [vmem:[%s3181 + $0x8] sm:$0xf]
  %v3185 = vld [vmem:[%s3181 + $0xc] sm:$0xf]
  %v3186 = vld [vmem:[%s3181 + $0x10] sm:$0xf]
  %v3187 = vld [vmem:[%s3181 + $0x14] sm:$0xf]
  %v3188 = vld [vmem:[%s3181 + $0x18] sm:$0xf]
  %v3189 = vld [vmem:[%s3181 + $0x1c] sm:$0xf]
  %v3190 = vld [vmem:[%s3181 + $0x20] sm:$0xf]
  %v3191 = vld [vmem:[%s3181 + $0x24] sm:$0xf]
  %v3192 = vld [vmem:[%s3181 + $0x28] sm:$0xf]
  %v3193 = vld [vmem:[%s3181 + $0x2c] sm:$0xf]
  %v3194 = vld [vmem:[%s3181 + $0x30] sm:$0xf]
  %v3195 = vld [vmem:[%s3181 + $0x34] sm:$0xf]
  %v3196 = vld [vmem:[%s3181 + $0x38] sm:$0xf]
  %v3197 = vld [vmem:[%s3181 + $0x3c] sm:$0xf]
  %v3214 = vunpack.c.l.b16 %v3182
  %v3215 = vunpack.c.l.b16 %v3183
  %v3216 = vunpack.c.l.b16 %v3184
  %v3217 = vunpack.c.l.b16 %v3185
  %v3218 = vunpack.c.l.b16 %v3186
  %v3219 = vunpack.c.l.b16 %v3187
  %v3220 = vunpack.c.l.b16 %v3188
  %v3221 = vunpack.c.l.b16 %v3189
  %v3222 = vunpack.c.l.b16 %v3190
  %v3223 = vunpack.c.l.b16 %v3191
  %v3224 = vunpack.c.l.b16 %v3192
  %v3225 = vunpack.c.l.b16 %v3193
  %v3226 = vunpack.c.l.b16 %v3194
  %v3227 = vunpack.c.l.b16 %v3195
  %v3228 = vunpack.c.l.b16 %v3196
  %v3229 = vunpack.c.l.b16 %v3197
  %v3230 = vpack.c.b16 %v3215, %v3214
  %v3231 = vpack.c.b16 %v3217, %v3216
  %v3232 = vpack.c.b16 %v3219, %v3218
  %v3233 = vpack.c.b16 %v3221, %v3220
  %v3234 = vpack.c.b16 %v3223, %v3222
  %v3235 = vpack.c.b16 %v3225, %v3224
  %v3236 = vpack.c.b16 %v3227, %v3226
  %v3237 = vpack.c.b16 %v3229, %v3228
  %3246 = vmatprep.subr.bf16.mxu0 0
  %3247 = vmatpush1.bf16.msra.mxu0 %v3230
  %3248 = vmatprep.subr.bf16.mxu0 0
  %3249 = vmatpush1.bf16.msra.mxu0 %v3231
  %3250 = vmatprep.subr.bf16.mxu0 0
  %3251 = vmatpush1.bf16.msra.mxu0 %v3232
  %3252 = vmatprep.subr.bf16.mxu0 0
  %3253 = vmatpush1.bf16.msra.mxu0 %v3233
  %3254 = vmatprep.subr.bf16.mxu0 0
  %3255 = vmatpush1.bf16.msra.mxu0 %v3234
  %3256 = vmatprep.subr.bf16.mxu0 0
  %3257 = vmatpush1.bf16.msra.mxu0 %v3235
  %3258 = vmatprep.subr.bf16.mxu0 0
  %3259 = vmatpush1.bf16.msra.mxu0 %v3236
  %3260 = vmatprep.subr.bf16.mxu0 0
  %3261 = vmatpush1.bf16.msra.mxu0 %v3237
  %3262 = vmatprep.subr.bf16.mxu0 0
  %3263 = vmatpush1.bf16.msra.mxu0 0
  %3264 = vmatprep.subr.bf16.mxu0 0
  %3265 = vmatpush1.bf16.msra.mxu0 0
  %3266 = vmatprep.subr.bf16.mxu0 0
  %3267 = vmatpush1.bf16.msra.mxu0 0
  %3268 = vmatprep.subr.bf16.mxu0 0
  %3269 = vmatpush1.bf16.msra.mxu0 0
  %3270 = vmatprep.subr.bf16.mxu0 0
  %3271 = vmatpush1.bf16.msra.mxu0 0
  %3272 = vmatprep.subr.bf16.mxu0 0
  %3273 = vmatpush1.bf16.msra.mxu0 0
  %3274 = vmatprep.subr.bf16.mxu0 0
  %3275 = vmatpush1.bf16.msra.mxu0 0
  %3276 = vmatprep.subr.bf16.mxu0 0
  %3277 = vmatpush1.bf16.msra.mxu0 0
  %3278 = vmatprep.mubr.bf16.mxu0 0
  %3279 = vmatmul.mubr.bf16.gmra.mrb[0].mxu0 %v2209
  %v3280 = vpop.f32.mrb[0].mxu0
  %v3281 = vadd.f32 0.0, %v3280
  %v3282 = vpop.f32.mrb[0].mxu0
  %v3283 = vpop.f32.mrb[0].mxu0
  %v3284 = vadd.f32 0.0, %v3283
  %v3285 = vpop.f32.mrb[0].mxu0
  %3286 = vdwg.mxu0
  %3287 = vst [vmem:[#allocation2 + $0x90] sm:$0xff] %v3281
  %3288 = vst [vmem:[#allocation2 + $0x98] sm:$0xff] %v3284
  %s3289 = scalar_lea.vmem %s6, 640
  %v3290 = vld [vmem:[%s3289] sm:$0xf]
  %v3291 = vld [vmem:[%s3289 + $0x4] sm:$0xf]
  %v3292 = vld [vmem:[%s3289 + $0x8] sm:$0xf]
  %v3293 = vld [vmem:[%s3289 + $0xc] sm:$0xf]
  %v3294 = vld [vmem:[%s3289 + $0x10] sm:$0xf]
  %v3295 = vld [vmem:[%s3289 + $0x14] sm:$0xf]
  %v3296 = vld [vmem:[%s3289 + $0x18] sm:$0xf]
  %v3297 = vld [vmem:[%s3289 + $0x1c] sm:$0xf]
  %v3298 = vld [vmem:[%s3289 + $0x20] sm:$0xf]
  %v3299 = vld [vmem:[%s3289 + $0x24] sm:$0xf]
  %v3300 = vld [vmem:[%s3289 + $0x28] sm:$0xf]
  %v3301 = vld [vmem:[%s3289 + $0x2c] sm:$0xf]
  %v3302 = vld [vmem:[%s3289 + $0x30] sm:$0xf]
  %v3303 = vld [vmem:[%s3289 + $0x34] sm:$0xf]
  %v3304 = vld [vmem:[%s3289 + $0x38] sm:$0xf]
  %v3305 = vld [vmem:[%s3289 + $0x3c] sm:$0xf]
  %v3322 = vunpack.c.l.b16 %v3290
  %v3323 = vunpack.c.l.b16 %v3291
  %v3324 = vunpack.c.l.b16 %v3292
  %v3325 = vunpack.c.l.b16 %v3293
  %v3326 = vunpack.c.l.b16 %v3294
  %v3327 = vunpack.c.l.b16 %v3295
  %v3328 = vunpack.c.l.b16 %v3296
  %v3329 = vunpack.c.l.b16 %v3297
  %v3330 = vunpack.c.l.b16 %v3298
  %v3331 = vunpack.c.l.b16 %v3299
  %v3332 = vunpack.c.l.b16 %v3300
  %v3333 = vunpack.c.l.b16 %v3301
  %v3334 = vunpack.c.l.b16 %v3302
  %v3335 = vunpack.c.l.b16 %v3303
  %v3336 = vunpack.c.l.b16 %v3304
  %v3337 = vunpack.c.l.b16 %v3305
  %v3338 = vpack.c.b16 %v3323, %v3322
  %v3339 = vpack.c.b16 %v3325, %v3324
  %v3340 = vpack.c.b16 %v3327, %v3326
  %v3341 = vpack.c.b16 %v3329, %v3328
  %v3342 = vpack.c.b16 %v3331, %v3330
  %v3343 = vpack.c.b16 %v3333, %v3332
  %v3344 = vpack.c.b16 %v3335, %v3334
  %v3345 = vpack.c.b16 %v3337, %v3336
  %3354 = vmatprep.subr.bf16.mxu0 0
  %3355 = vmatpush1.bf16.msra.mxu0 %v3338
  %3356 = vmatprep.subr.bf16.mxu0 0
  %3357 = vmatpush1.bf16.msra.mxu0 %v3339
  %3358 = vmatprep.subr.bf16.mxu0 0
  %3359 = vmatpush1.bf16.msra.mxu0 %v3340
  %3360 = vmatprep.subr.bf16.mxu0 0
  %3361 = vmatpush1.bf16.msra.mxu0 %v3341
  %3362 = vmatprep.subr.bf16.mxu0 0
  %3363 = vmatpush1.bf16.msra.mxu0 %v3342
  %3364 = vmatprep.subr.bf16.mxu0 0
  %3365 = vmatpush1.bf16.msra.mxu0 %v3343
  %3366 = vmatprep.subr.bf16.mxu0 0
  %3367 = vmatpush1.bf16.msra.mxu0 %v3344
  %3368 = vmatprep.subr.bf16.mxu0 0
  %3369 = vmatpush1.bf16.msra.mxu0 %v3345
  %3370 = vmatprep.subr.bf16.mxu0 0
  %3371 = vmatpush1.bf16.msra.mxu0 0
  %3372 = vmatprep.subr.bf16.mxu0 0
  %3373 = vmatpush1.bf16.msra.mxu0 0
  %3374 = vmatprep.subr.bf16.mxu0 0
  %3375 = vmatpush1.bf16.msra.mxu0 0
  %3376 = vmatprep.subr.bf16.mxu0 0
  %3377 = vmatpush1.bf16.msra.mxu0 0
  %3378 = vmatprep.subr.bf16.mxu0 0
  %3379 = vmatpush1.bf16.msra.mxu0 0
  %3380 = vmatprep.subr.bf16.mxu0 0
  %3381 = vmatpush1.bf16.msra.mxu0 0
  %3382 = vmatprep.subr.bf16.mxu0 0
  %3383 = vmatpush1.bf16.msra.mxu0 0
  %3384 = vmatprep.subr.bf16.mxu0 0
  %3385 = vmatpush1.bf16.msra.mxu0 0
  %3386 = vmatprep.mubr.bf16.mxu0 0
  %3387 = vmatmul.mubr.bf16.gmra.mrb[0].mxu0 %v2209
  %v3388 = vpop.f32.mrb[0].mxu0
  %v3389 = vadd.f32 0.0, %v3388
  %v3390 = vpop.f32.mrb[0].mxu0
  %v3391 = vpop.f32.mrb[0].mxu0
  %v3392 = vadd.f32 0.0, %v3391
  %v3393 = vpop.f32.mrb[0].mxu0
  %3394 = vdwg.mxu0
  %3395 = vst [vmem:[#allocation2 + $0xa0] sm:$0xff] %v3389
  %3396 = vst [vmem:[#allocation2 + $0xa8] sm:$0xff] %v3392
  %s3397 = scalar_lea.vmem %s6, 704
  %v3398 = vld [vmem:[%s3397] sm:$0xf]
  %v3399 = vld [vmem:[%s3397 + $0x4] sm:$0xf]
  %v3400 = vld [vmem:[%s3397 + $0x8] sm:$0xf]
  %v3401 = vld [vmem:[%s3397 + $0xc] sm:$0xf]
  %v3402 = vld [vmem:[%s3397 + $0x10] sm:$0xf]
  %v3403 = vld [vmem:[%s3397 + $0x14] sm:$0xf]
  %v3404 = vld [vmem:[%s3397 + $0x18] sm:$0xf]
  %v3405 = vld [vmem:[%s3397 + $0x1c] sm:$0xf]
  %v3406 = vld [vmem:[%s3397 + $0x20] sm:$0xf]
  %v3407 = vld [vmem:[%s3397 + $0x24] sm:$0xf]
  %v3408 = vld [vmem:[%s3397 + $0x28] sm:$0xf]
  %v3409 = vld [vmem:[%s3397 + $0x2c] sm:$0xf]
  %v3410 = vld [vmem:[%s3397 + $0x30] sm:$0xf]
  %v3411 = vld [vmem:[%s3397 + $0x34] sm:$0xf]
  %v3412 = vld [vmem:[%s3397 + $0x38] sm:$0xf]
  %v3413 = vld [vmem:[%s3397 + $0x3c] sm:$0xf]
  %v3430 = vunpack.c.l.b16 %v3398
  %v3431 = vunpack.c.l.b16 %v3399
  %v3432 = vunpack.c.l.b16 %v3400
  %v3433 = vunpack.c.l.b16 %v3401
  %v3434 = vunpack.c.l.b16 %v3402
  %v3435 = vunpack.c.l.b16 %v3403
  %v3436 = vunpack.c.l.b16 %v3404
  %v3437 = vunpack.c.l.b16 %v3405
  %v3438 = vunpack.c.l.b16 %v3406
  %v3439 = vunpack.c.l.b16 %v3407
  %v3440 = vunpack.c.l.b16 %v3408
  %v3441 = vunpack.c.l.b16 %v3409
  %v3442 = vunpack.c.l.b16 %v3410
  %v3443 = vunpack.c.l.b16 %v3411
  %v3444 = vunpack.c.l.b16 %v3412
  %v3445 = vunpack.c.l.b16 %v3413
  %v3446 = vpack.c.b16 %v3431, %v3430
  %v3447 = vpack.c.b16 %v3433, %v3432
  %v3448 = vpack.c.b16 %v3435, %v3434
  %v3449 = vpack.c.b16 %v3437, %v3436
  %v3450 = vpack.c.b16 %v3439, %v3438
  %v3451 = vpack.c.b16 %v3441, %v3440
  %v3452 = vpack.c.b16 %v3443, %v3442
  %v3453 = vpack.c.b16 %v3445, %v3444
  %3462 = vmatprep.subr.bf16.mxu0 0
  %3463 = vmatpush1.bf16.msra.mxu0 %v3446
  %3464 = vmatprep.subr.bf16.mxu0 0
  %3465 = vmatpush1.bf16.msra.mxu0 %v3447
  %3466 = vmatprep.subr.bf16.mxu0 0
  %3467 = vmatpush1.bf16.msra.mxu0 %v3448
  %3468 = vmatprep.subr.bf16.mxu0 0
  %3469 = vmatpush1.bf16.msra.mxu0 %v3449
  %3470 = vmatprep.subr.bf16.mxu0 0
  %3471 = vmatpush1.bf16.msra.mxu0 %v3450
  %3472 = vmatprep.subr.bf16.mxu0 0
  %3473 = vmatpush1.bf16.msra.mxu0 %v3451
  %3474 = vmatprep.subr.bf16.mxu0 0
  %3475 = vmatpush1.bf16.msra.mxu0 %v3452
  %3476 = vmatprep.subr.bf16.mxu0 0
  %3477 = vmatpush1.bf16.msra.mxu0 %v3453
  %3478 = vmatprep.subr.bf16.mxu0 0
  %3479 = vmatpush1.bf16.msra.mxu0 0
  %3480 = vmatprep.subr.bf16.mxu0 0
  %3481 = vmatpush1.bf16.msra.mxu0 0
  %3482 = vmatprep.subr.bf16.mxu0 0
  %3483 = vmatpush1.bf16.msra.mxu0 0
  %3484 = vmatprep.subr.bf16.mxu0 0
  %3485 = vmatpush1.bf16.msra.mxu0 0
  %3486 = vmatprep.subr.bf16.mxu0 0
  %3487 = vmatpush1.bf16.msra.mxu0 0
  %3488 = vmatprep.subr.bf16.mxu0 0
  %3489 = vmatpush1.bf16.msra.mxu0 0
  %3490 = vmatprep.subr.bf16.mxu0 0
  %3491 = vmatpush1.bf16.msra.mxu0 0
  %3492 = vmatprep.subr.bf16.mxu0 0
  %3493 = vmatpush1.bf16.msra.mxu0 0
  %3494 = vmatprep.mubr.bf16.mxu0 0
  %3495 = vmatmul.mubr.bf16.gmra.mrb[0].mxu0 %v2209
  %v3496 = vpop.f32.mrb[0].mxu0
  %v3497 = vadd.f32 0.0, %v3496
  %v3498 = vpop.f32.mrb[0].mxu0
  %v3499 = vpop.f32.mrb[0].mxu0
  %v3500 = vadd.f32 0.0, %v3499
  %v3501 = vpop.f32.mrb[0].mxu0
  %3502 = vdwg.mxu0
  %3503 = vst [vmem:[#allocation2 + $0xb0] sm:$0xff] %v3497
  %3504 = vst [vmem:[#allocation2 + $0xb8] sm:$0xff] %v3500
  %s3505 = scalar_lea.vmem %s6, 768
  %v3506 = vld [vmem:[%s3505] sm:$0xf]
  %v3507 = vld [vmem:[%s3505 + $0x4] sm:$0xf]
  %v3508 = vld [vmem:[%s3505 + $0x8] sm:$0xf]
  %v3509 = vld [vmem:[%s3505 + $0xc] sm:$0xf]
  %v3510 = vld [vmem:[%s3505 + $0x10] sm:$0xf]
  %v3511 = vld [vmem:[%s3505 + $0x14] sm:$0xf]
  %v3512 = vld [vmem:[%s3505 + $0x18] sm:$0xf]
  %v3513 = vld [vmem:[%s3505 + $0x1c] sm:$0xf]
  %v3514 = vld [vmem:[%s3505 + $0x20] sm:$0xf]
  %v3515 = vld [vmem:[%s3505 + $0x24] sm:$0xf]
  %v3516 = vld [vmem:[%s3505 + $0x28] sm:$0xf]
  %v3517 = vld [vmem:[%s3505 + $0x2c] sm:$0xf]
  %v3518 = vld [vmem:[%s3505 + $0x30] sm:$0xf]
  %v3519 = vld [vmem:[%s3505 + $0x34] sm:$0xf]
  %v3520 = vld [vmem:[%s3505 + $0x38] sm:$0xf]
  %v3521 = vld [vmem:[%s3505 + $0x3c] sm:$0xf]
  %v3538 = vunpack.c.l.b16 %v3506
  %v3539 = vunpack.c.l.b16 %v3507
  %v3540 = vunpack.c.l.b16 %v3508
  %v3541 = vunpack.c.l.b16 %v3509
  %v3542 = vunpack.c.l.b16 %v3510
  %v3543 = vunpack.c.l.b16 %v3511
  %v3544 = vunpack.c.l.b16 %v3512
  %v3545 = vunpack.c.l.b16 %v3513
  %v3546 = vunpack.c.l.b16 %v3514
  %v3547 = vunpack.c.l.b16 %v3515
  %v3548 = vunpack.c.l.b16 %v3516
  %v3549 = vunpack.c.l.b16 %v3517
  %v3550 = vunpack.c.l.b16 %v3518
  %v3551 = vunpack.c.l.b16 %v3519
  %v3552 = vunpack.c.l.b16 %v3520
  %v3553 = vunpack.c.l.b16 %v3521
  %v3554 = vpack.c.b16 %v3539, %v3538
  %v3555 = vpack.c.b16 %v3541, %v3540
  %v3556 = vpack.c.b16 %v3543, %v3542
  %v3557 = vpack.c.b16 %v3545, %v3544
  %v3558 = vpack.c.b16 %v3547, %v3546
  %v3559 = vpack.c.b16 %v3549, %v3548
  %v3560 = vpack.c.b16 %v3551, %v3550
  %v3561 = vpack.c.b16 %v3553, %v3552
  %3570 = vmatprep.subr.bf16.mxu0 0
  %3571 = vmatpush1.bf16.msra.mxu0 %v3554
  %3572 = vmatprep.subr.bf16.mxu0 0
  %3573 = vmatpush1.bf16.msra.mxu0 %v3555
  %3574 = vmatprep.subr.bf16.mxu0 0
  %3575 = vmatpush1.bf16.msra.mxu0 %v3556
  %3576 = vmatprep.subr.bf16.mxu0 0
  %3577 = vmatpush1.bf16.msra.mxu0 %v3557
  %3578 = vmatprep.subr.bf16.mxu0 0
  %3579 = vmatpush1.bf16.msra.mxu0 %v3558
  %3580 = vmatprep.subr.bf16.mxu0 0
  %3581 = vmatpush1.bf16.msra.mxu0 %v3559
  %3582 = vmatprep.subr.bf16.mxu0 0
  %3583 = vmatpush1.bf16.msra.mxu0 %v3560
  %3584 = vmatprep.subr.bf16.mxu0 0
  %3585 = vmatpush1.bf16.msra.mxu0 %v3561
  %3586 = vmatprep.subr.bf16.mxu0 0
  %3587 = vmatpush1.bf16.msra.mxu0 0
  %3588 = vmatprep.subr.bf16.mxu0 0
  %3589 = vmatpush1.bf16.msra.mxu0 0
  %3590 = vmatprep.subr.bf16.mxu0 0
  %3591 = vmatpush1.bf16.msra.mxu0 0
  %3592 = vmatprep.subr.bf16.mxu0 0
  %3593 = vmatpush1.bf16.msra.mxu0 0
  %3594 = vmatprep.subr.bf16.mxu0 0
  %3595 = vmatpush1.bf16.msra.mxu0 0
  %3596 = vmatprep.subr.bf16.mxu0 0
  %3597 = vmatpush1.bf16.msra.mxu0 0
  %3598 = vmatprep.subr.bf16.mxu0 0
  %3599 = vmatpush1.bf16.msra.mxu0 0
  %3600 = vmatprep.subr.bf16.mxu0 0
  %3601 = vmatpush1.bf16.msra.mxu0 0
  %3602 = vmatprep.mubr.bf16.mxu0 0
  %3603 = vmatmul.mubr.bf16.gmra.mrb[0].mxu0 %v2209
  %v3604 = vpop.f32.mrb[0].mxu0
  %v3605 = vadd.f32 0.0, %v3604
  %v3606 = vpop.f32.mrb[0].mxu0
  %v3607 = vpop.f32.mrb[0].mxu0
  %v3608 = vadd.f32 0.0, %v3607
  %v3609 = vpop.f32.mrb[0].mxu0
  %3610 = vdwg.mxu0
  %3611 = vst [vmem:[#allocation2 + $0xc0] sm:$0xff] %v3605
  %3612 = vst [vmem:[#allocation2 + $0xc8] sm:$0xff] %v3608
  %s3613 = scalar_lea.vmem %s6, 832
  %v3614 = vld [vmem:[%s3613] sm:$0xf]
  %v3615 = vld [vmem:[%s3613 + $0x4] sm:$0xf]
  %v3616 = vld [vmem:[%s3613 + $0x8] sm:$0xf]
  %v3617 = vld [vmem:[%s3613 + $0xc] sm:$0xf]
  %v3618 = vld [vmem:[%s3613 + $0x10] sm:$0xf]
  %v3619 = vld [vmem:[%s3613 + $0x14] sm:$0xf]
  %v3620 = vld [vmem:[%s3613 + $0x18] sm:$0xf]
  %v3621 = vld [vmem:[%s3613 + $0x1c] sm:$0xf]
  %v3622 = vld [vmem:[%s3613 + $0x20] sm:$0xf]
  %v3623 = vld [vmem:[%s3613 + $0x24] sm:$0xf]
  %v3624 = vld [vmem:[%s3613 + $0x28] sm:$0xf]
  %v3625 = vld [vmem:[%s3613 + $0x2c] sm:$0xf]
  %v3626 = vld [vmem:[%s3613 + $0x30] sm:$0xf]
  %v3627 = vld [vmem:[%s3613 + $0x34] sm:$0xf]
  %v3628 = vld [vmem:[%s3613 + $0x38] sm:$0xf]
  %v3629 = vld [vmem:[%s3613 + $0x3c] sm:$0xf]
  %v3646 = vunpack.c.l.b16 %v3614
  %v3647 = vunpack.c.l.b16 %v3615
  %v3648 = vunpack.c.l.b16 %v3616
  %v3649 = vunpack.c.l.b16 %v3617
  %v3650 = vunpack.c.l.b16 %v3618
  %v3651 = vunpack.c.l.b16 %v3619
  %v3652 = vunpack.c.l.b16 %v3620
  %v3653 = vunpack.c.l.b16 %v3621
  %v3654 = vunpack.c.l.b16 %v3622
  %v3655 = vunpack.c.l.b16 %v3623
  %v3656 = vunpack.c.l.b16 %v3624
  %v3657 = vunpack.c.l.b16 %v3625
  %v3658 = vunpack.c.l.b16 %v3626
  %v3659 = vunpack.c.l.b16 %v3627
  %v3660 = vunpack.c.l.b16 %v3628
  %v3661 = vunpack.c.l.b16 %v3629
  %v3662 = vpack.c.b16 %v3647, %v3646
  %v3663 = vpack.c.b16 %v3649, %v3648
  %v3664 = vpack.c.b16 %v3651, %v3650
  %v3665 = vpack.c.b16 %v3653, %v3652
  %v3666 = vpack.c.b16 %v3655, %v3654
  %v3667 = vpack.c.b16 %v3657, %v3656
  %v3668 = vpack.c.b16 %v3659, %v3658
  %v3669 = vpack.c.b16 %v3661, %v3660
  %3678 = vmatprep.subr.bf16.mxu0 0
  %3679 = vmatpush1.bf16.msra.mxu0 %v3662
  %3680 = vmatprep.subr.bf16.mxu0 0
  %3681 = vmatpush1.bf16.msra.mxu0 %v3663
  %3682 = vmatprep.subr.bf16.mxu0 0
  %3683 = vmatpush1.bf16.msra.mxu0 %v3664
  %3684 = vmatprep.subr.bf16.mxu0 0
  %3685 = vmatpush1.bf16.msra.mxu0 %v3665
  %3686 = vmatprep.subr.bf16.mxu0 0
  %3687 = vmatpush1.bf16.msra.mxu0 %v3666
  %3688 = vmatprep.subr.bf16.mxu0 0
  %3689 = vmatpush1.bf16.msra.mxu0 %v3667
  %3690 = vmatprep.subr.bf16.mxu0 0
  %3691 = vmatpush1.bf16.msra.mxu0 %v3668
  %3692 = vmatprep.subr.bf16.mxu0 0
  %3693 = vmatpush1.bf16.msra.mxu0 %v3669
  %3694 = vmatprep.subr.bf16.mxu0 0
  %3695 = vmatpush1.bf16.msra.mxu0 0
  %3696 = vmatprep.subr.bf16.mxu0 0
  %3697 = vmatpush1.bf16.msra.mxu0 0
  %3698 = vmatprep.subr.bf16.mxu0 0
  %3699 = vmatpush1.bf16.msra.mxu0 0
  %3700 = vmatprep.subr.bf16.mxu0 0
  %3701 = vmatpush1.bf16.msra.mxu0 0
  %3702 = vmatprep.subr.bf16.mxu0 0
  %3703 = vmatpush1.bf16.msra.mxu0 0
  %3704 = vmatprep.subr.bf16.mxu0 0
  %3705 = vmatpush1.bf16.msra.mxu0 0
  %3706 = vmatprep.subr.bf16.mxu0 0
  %3707 = vmatpush1.bf16.msra.mxu0 0
  %3708 = vmatprep.subr.bf16.mxu0 0
  %3709 = vmatpush1.bf16.msra.mxu0 0
  %3710 = vmatprep.mubr.bf16.mxu0 0
  %3711 = vmatmul.mubr.bf16.gmra.mrb[0].mxu0 %v2209
  %v3712 = vpop.f32.mrb[0].mxu0
  %v3713 = vadd.f32 0.0, %v3712
  %v3714 = vpop.f32.mrb[0].mxu0
  %v3715 = vpop.f32.mrb[0].mxu0
  %v3716 = vadd.f32 0.0, %v3715
  %v3717 = vpop.f32.mrb[0].mxu0
  %3718 = vdwg.mxu0
  %3719 = vst [vmem:[#allocation2 + $0xd0] sm:$0xff] %v3713
  %3720 = vst [vmem:[#allocation2 + $0xd8] sm:$0xff] %v3716
  %s3721 = scalar_lea.vmem %s6, 896
  %v3722 = vld [vmem:[%s3721] sm:$0xf]
  %v3723 = vld [vmem:[%s3721 + $0x4] sm:$0xf]
  %v3724 = vld [vmem:[%s3721 + $0x8] sm:$0xf]
  %v3725 = vld [vmem:[%s3721 + $0xc] sm:$0xf]
  %v3726 = vld [vmem:[%s3721 + $0x10] sm:$0xf]
  %v3727 = vld [vmem:[%s3721 + $0x14] sm:$0xf]
  %v3728 = vld [vmem:[%s3721 + $0x18] sm:$0xf]
  %v3729 = vld [vmem:[%s3721 + $0x1c] sm:$0xf]
  %v3730 = vld [vmem:[%s3721 + $0x20] sm:$0xf]
  %v3731 = vld [vmem:[%s3721 + $0x24] sm:$0xf]
  %v3732 = vld [vmem:[%s3721 + $0x28] sm:$0xf]
  %v3733 = vld [vmem:[%s3721 + $0x2c] sm:$0xf]
  %v3734 = vld [vmem:[%s3721 + $0x30] sm:$0xf]
  %v3735 = vld [vmem:[%s3721 + $0x34] sm:$0xf]
  %v3736 = vld [vmem:[%s3721 + $0x38] sm:$0xf]
  %v3737 = vld [vmem:[%s3721 + $0x3c] sm:$0xf]
  %v3754 = vunpack.c.l.b16 %v3722
  %v3755 = vunpack.c.l.b16 %v3723
  %v3756 = vunpack.c.l.b16 %v3724
  %v3757 = vunpack.c.l.b16 %v3725
  %v3758 = vunpack.c.l.b16 %v3726
  %v3759 = vunpack.c.l.b16 %v3727
  %v3760 = vunpack.c.l.b16 %v3728
  %v3761 = vunpack.c.l.b16 %v3729
  %v3762 = vunpack.c.l.b16 %v3730
  %v3763 = vunpack.c.l.b16 %v3731
  %v3764 = vunpack.c.l.b16 %v3732
  %v3765 = vunpack.c.l.b16 %v3733
  %v3766 = vunpack.c.l.b16 %v3734
  %v3767 = vunpack.c.l.b16 %v3735
  %v3768 = vunpack.c.l.b16 %v3736
  %v3769 = vunpack.c.l.b16 %v3737
  %v3770 = vpack.c.b16 %v3755, %v3754
  %v3771 = vpack.c.b16 %v3757, %v3756
  %v3772 = vpack.c.b16 %v3759, %v3758
  %v3773 = vpack.c.b16 %v3761, %v3760
  %v3774 = vpack.c.b16 %v3763, %v3762
  %v3775 = vpack.c.b16 %v3765, %v3764
  %v3776 = vpack.c.b16 %v3767, %v3766
  %v3777 = vpack.c.b16 %v3769, %v3768
  %3786 = vmatprep.subr.bf16.mxu0 0
  %3787 = vmatpush1.bf16.msra.mxu0 %v3770
  %3788 = vmatprep.subr.bf16.mxu0 0
  %3789 = vmatpush1.bf16.msra.mxu0 %v3771
  %3790 = vmatprep.subr.bf16.mxu0 0
  %3791 = vmatpush1.bf16.msra.mxu0 %v3772
  %3792 = vmatprep.subr.bf16.mxu0 0
  %3793 = vmatpush1.bf16.msra.mxu0 %v3773
  %3794 = vmatprep.subr.bf16.mxu0 0
  %3795 = vmatpush1.bf16.msra.mxu0 %v3774
  %3796 = vmatprep.subr.bf16.mxu0 0
  %3797 = vmatpush1.bf16.msra.mxu0 %v3775
  %3798 = vmatprep.subr.bf16.mxu0 0
  %3799 = vmatpush1.bf16.msra.mxu0 %v3776
  %3800 = vmatprep.subr.bf16.mxu0 0
  %3801 = vmatpush1.bf16.msra.mxu0 %v3777
  %3802 = vmatprep.subr.bf16.mxu0 0
  %3803 = vmatpush1.bf16.msra.mxu0 0
  %3804 = vmatprep.subr.bf16.mxu0 0
  %3805 = vmatpush1.bf16.msra.mxu0 0
  %3806 = vmatprep.subr.bf16.mxu0 0
  %3807 = vmatpush1.bf16.msra.mxu0 0
  %3808 = vmatprep.subr.bf16.mxu0 0
  %3809 = vmatpush1.bf16.msra.mxu0 0
  %3810 = vmatprep.subr.bf16.mxu0 0
  %3811 = vmatpush1.bf16.msra.mxu0 0
  %3812 = vmatprep.subr.bf16.mxu0 0
  %3813 = vmatpush1.bf16.msra.mxu0 0
  %3814 = vmatprep.subr.bf16.mxu0 0
  %3815 = vmatpush1.bf16.msra.mxu0 0
  %3816 = vmatprep.subr.bf16.mxu0 0
  %3817 = vmatpush1.bf16.msra.mxu0 0
  %3818 = vmatprep.mubr.bf16.mxu0 0
  %3819 = vmatmul.mubr.bf16.gmra.mrb[0].mxu0 %v2209
  %v3820 = vpop.f32.mrb[0].mxu0
  %v3821 = vadd.f32 0.0, %v3820
  %v3822 = vpop.f32.mrb[0].mxu0
  %v3823 = vpop.f32.mrb[0].mxu0
  %v3824 = vadd.f32 0.0, %v3823
  %v3825 = vpop.f32.mrb[0].mxu0
  %3826 = vdwg.mxu0
  %3827 = vst [vmem:[#allocation2 + $0xe0] sm:$0xff] %v3821
  %3828 = vst [vmem:[#allocation2 + $0xe8] sm:$0xff] %v3824
  %s3829 = scalar_lea.vmem %s6, 960
  %v3830 = vld [vmem:[%s3829] sm:$0xf]
  %v3831 = vld [vmem:[%s3829 + $0x4] sm:$0xf]
  %v3832 = vld [vmem:[%s3829 + $0x8] sm:$0xf]
  %v3833 = vld [vmem:[%s3829 + $0xc] sm:$0xf]
  %v3834 = vld [vmem:[%s3829 + $0x10] sm:$0xf]
  %v3835 = vld [vmem:[%s3829 + $0x14] sm:$0xf]
  %v3836 = vld [vmem:[%s3829 + $0x18] sm:$0xf]
  %v3837 = vld [vmem:[%s3829 + $0x1c] sm:$0xf]
  %v3838 = vld [vmem:[%s3829 + $0x20] sm:$0xf]
  %v3839 = vld [vmem:[%s3829 + $0x24] sm:$0xf]
  %v3840 = vld [vmem:[%s3829 + $0x28] sm:$0xf]
  %v3841 = vld [vmem:[%s3829 + $0x2c] sm:$0xf]
  %v3842 = vld [vmem:[%s3829 + $0x30] sm:$0xf]
  %v3843 = vld [vmem:[%s3829 + $0x34] sm:$0xf]
  %v3844 = vld [vmem:[%s3829 + $0x38] sm:$0xf]
  %v3845 = vld [vmem:[%s3829 + $0x3c] sm:$0xf]
  %v3862 = vunpack.c.l.b16 %v3830
  %v3863 = vunpack.c.l.b16 %v3831
  %v3864 = vunpack.c.l.b16 %v3832
  %v3865 = vunpack.c.l.b16 %v3833
  %v3866 = vunpack.c.l.b16 %v3834
  %v3867 = vunpack.c.l.b16 %v3835
  %v3868 = vunpack.c.l.b16 %v3836
  %v3869 = vunpack.c.l.b16 %v3837
  %v3870 = vunpack.c.l.b16 %v3838
  %v3871 = vunpack.c.l.b16 %v3839
  %v3872 = vunpack.c.l.b16 %v3840
  %v3873 = vunpack.c.l.b16 %v3841
  %v3874 = vunpack.c.l.b16 %v3842
  %v3875 = vunpack.c.l.b16 %v3843
  %v3876 = vunpack.c.l.b16 %v3844
  %v3877 = vunpack.c.l.b16 %v3845
  %v3878 = vpack.c.b16 %v3863, %v3862
  %v3879 = vpack.c.b16 %v3865, %v3864
  %v3880 = vpack.c.b16 %v3867, %v3866
  %v3881 = vpack.c.b16 %v3869, %v3868
  %v3882 = vpack.c.b16 %v3871, %v3870
  %v3883 = vpack.c.b16 %v3873, %v3872
  %v3884 = vpack.c.b16 %v3875, %v3874
  %v3885 = vpack.c.b16 %v3877, %v3876
  %3894 = vmatprep.subr.bf16.mxu0 0
  %3895 = vmatpush1.bf16.msra.mxu0 %v3878
  %3896 = vmatprep.subr.bf16.mxu0 0
  %3897 = vmatpush1.bf16.msra.mxu0 %v3879
  %3898 = vmatprep.subr.bf16.mxu0 0
  %3899 = vmatpush1.bf16.msra.mxu0 %v3880
  %3900 = vmatprep.subr.bf16.mxu0 0
  %3901 = vmatpush1.bf16.msra.mxu0 %v3881
  %3902 = vmatprep.subr.bf16.mxu0 0
  %3903 = vmatpush1.bf16.msra.mxu0 %v3882
  %3904 = vmatprep.subr.bf16.mxu0 0
  %3905 = vmatpush1.bf16.msra.mxu0 %v3883
  %3906 = vmatprep.subr.bf16.mxu0 0
  %3907 = vmatpush1.bf16.msra.mxu0 %v3884
  %3908 = vmatprep.subr.bf16.mxu0 0
  %3909 = vmatpush1.bf16.msra.mxu0 %v3885
  %3910 = vmatprep.subr.bf16.mxu0 0
  %3911 = vmatpush1.bf16.msra.mxu0 0
  %3912 = vmatprep.subr.bf16.mxu0 0
  %3913 = vmatpush1.bf16.msra.mxu0 0
  %3914 = vmatprep.subr.bf16.mxu0 0
  %3915 = vmatpush1.bf16.msra.mxu0 0
  %3916 = vmatprep.subr.bf16.mxu0 0
  %3917 = vmatpush1.bf16.msra.mxu0 0
  %3918 = vmatprep.subr.bf16.mxu0 0
  %3919 = vmatpush1.bf16.msra.mxu0 0
  %3920 = vmatprep.subr.bf16.mxu0 0
  %3921 = vmatpush1.bf16.msra.mxu0 0
  %3922 = vmatprep.subr.bf16.mxu0 0
  %3923 = vmatpush1.bf16.msra.mxu0 0
  %3924 = vmatprep.subr.bf16.mxu0 0
  %3925 = vmatpush1.bf16.msra.mxu0 0
  %3926 = vmatprep.mubr.bf16.mxu0 0
  %3927 = vmatmul.mubr.bf16.gmra.mrb[0].mxu0 %v2209
  %v3928 = vpop.f32.mrb[0].mxu0
  %v3929 = vadd.f32 0.0, %v3928
  %v3930 = vpop.f32.mrb[0].mxu0
  %v3931 = vpop.f32.mrb[0].mxu0
  %v3932 = vadd.f32 0.0, %v3931
  %v3933 = vpop.f32.mrb[0].mxu0
  %3934 = vdwg.mxu0
  %3935 = vst [vmem:[#allocation2 + $0xf0] sm:$0xff] %v3929
  %3936 = vst [vmem:[#allocation2 + $0xf8] sm:$0xff] %v3932
  %v3937 = vld [vmem:[%s7] sm:$0xff]
  %v3938 = vld [vmem:[%s7 + $0x8] sm:$0xff]
  %v3939 = vld [vmem:[%s7 + $0x10] sm:$0xff]
  %v3940 = vld [vmem:[%s7 + $0x18] sm:$0xff]
  %v3941 = vld [vmem:[#allocation2] sm:$0xff]
  %v3942 = vld [vmem:[#allocation2 + $0x8] sm:$0xff]
  %v3943 = vld [vmem:[#allocation2 + $0x10] sm:$0xff]
  %v3944 = vld [vmem:[#allocation2 + $0x18] sm:$0xff]
  %v3945 = vld [vmem:[#allocation2 + $0x20] sm:$0xff]
  %v3946 = vld [vmem:[#allocation2 + $0x28] sm:$0xff]
  %v3947 = vld [vmem:[#allocation2 + $0x30] sm:$0xff]
  %v3948 = vld [vmem:[#allocation2 + $0x38] sm:$0xff]
  %v3949 = vld [vmem:[#allocation2 + $0x40] sm:$0xff]
  %v3950 = vld [vmem:[#allocation2 + $0x48] sm:$0xff]
  %v3951 = vld [vmem:[#allocation2 + $0x50] sm:$0xff]
  %v3952 = vld [vmem:[#allocation2 + $0x58] sm:$0xff]
  %v3953 = vld [vmem:[#allocation2 + $0x60] sm:$0xff]
  %v3954 = vld [vmem:[#allocation2 + $0x68] sm:$0xff]
  %v3955 = vld [vmem:[#allocation2 + $0x70] sm:$0xff]
  %v3956 = vld [vmem:[#allocation2 + $0x78] sm:$0xff]
  %v3957 = vld [vmem:[#allocation2 + $0x80] sm:$0xff]
  %v3958 = vld [vmem:[#allocation2 + $0x88] sm:$0xff]
  %v3959 = vld [vmem:[#allocation2 + $0x90] sm:$0xff]
  %v3960 = vld [vmem:[#allocation2 + $0x98] sm:$0xff]
  %v3961 = vld [vmem:[#allocation2 + $0xa0] sm:$0xff]
  %v3962 = vld [vmem:[#allocation2 + $0xa8] sm:$0xff]
  %v3963 = vld [vmem:[#allocation2 + $0xb0] sm:$0xff]
  %v3964 = vld [vmem:[#allocation2 + $0xb8] sm:$0xff]
  %v3965 = vld [vmem:[#allocation2 + $0xc0] sm:$0xff]
  %v3966 = vld [vmem:[#allocation2 + $0xc8] sm:$0xff]
  %v3967 = vld [vmem:[#allocation2 + $0xd0] sm:$0xff]
  %v3968 = vld [vmem:[#allocation2 + $0xd8] sm:$0xff]
  %v3969 = vld [vmem:[#allocation2 + $0xe0] sm:$0xff]
  %v3970 = vld [vmem:[#allocation2 + $0xe8] sm:$0xff]
  %v3971 = vld [vmem:[#allocation2 + $0xf0] sm:$0xff]
  %v3972 = vld [vmem:[#allocation2 + $0xf8] sm:$0xff]
  %3973 = vmatprep.subr.mxu0 0.0
  %3974 = vmatpush1.msra.mxu0 %v3941
  %3975 = vmatprep.subr.mxu0 0.0
  %3976 = vmatpush1.msra.mxu0 %v3942
  %3977 = vmatprep.subr.mxu0 0.0
  %3978 = vmatpush1.msra.mxu0 %v3943
  %3979 = vmatprep.subr.mxu0 0.0
  %3980 = vmatpush1.msra.mxu0 %v3944
  %3981 = vmatprep.subr.mxu0 0.0
  %3982 = vmatpush1.msra.mxu0 %v3945
  %3983 = vmatprep.subr.mxu0 0.0
  %3984 = vmatpush1.msra.mxu0 %v3946
  %3985 = vmatprep.subr.mxu0 0.0
  %3986 = vmatpush1.msra.mxu0 %v3947
  %3987 = vmatprep.subr.mxu0 0.0
  %3988 = vmatpush1.msra.mxu0 %v3948
  %3989 = vmatprep.subr.mxu0 0.0
  %3990 = vmatpush1.msra.mxu0 %v3949
  %3991 = vmatprep.subr.mxu0 0.0
  %3992 = vmatpush1.msra.mxu0 %v3950
  %3993 = vmatprep.subr.mxu0 0.0
  %3994 = vmatpush1.msra.mxu0 %v3951
  %3995 = vmatprep.subr.mxu0 0.0
  %3996 = vmatpush1.msra.mxu0 %v3952
  %3997 = vmatprep.subr.mxu0 0.0
  %3998 = vmatpush1.msra.mxu0 %v3953
  %3999 = vmatprep.subr.mxu0 0.0
  %4000 = vmatpush1.msra.mxu0 %v3954
  %4001 = vmatprep.subr.mxu0 0.0
  %4002 = vmatpush1.msra.mxu0 %v3955
  %4003 = vmatprep.subr.mxu0 0.0
  %4004 = vmatpush1.msra.mxu0 %v3956
  %4005 = vmatprep.subr.mxu0 0.0
  %4006 = vmatpush1.msra.mxu0 %v3957
  %4007 = vmatprep.subr.mxu0 0.0
  %4008 = vmatpush1.msra.mxu0 %v3958
  %4009 = vmatprep.subr.mxu0 0.0
  %4010 = vmatpush1.msra.mxu0 %v3959
  %4011 = vmatprep.subr.mxu0 0.0
  %4012 = vmatpush1.msra.mxu0 %v3960
  %4013 = vmatprep.subr.mxu0 0.0
  %4014 = vmatpush1.msra.mxu0 %v3961
  %4015 = vmatprep.subr.mxu0 0.0
  %4016 = vmatpush1.msra.mxu0 %v3962
  %4017 = vmatprep.subr.mxu0 0.0
  %4018 = vmatpush1.msra.mxu0 %v3963
  %4019 = vmatprep.subr.mxu0 0.0
  %4020 = vmatpush1.msra.mxu0 %v3964
  %4021 = vmatprep.subr.mxu0 0.0
  %4022 = vmatpush1.msra.mxu0 %v3965
  %4023 = vmatprep.subr.mxu0 0.0
  %4024 = vmatpush1.msra.mxu0 %v3966
  %4025 = vmatprep.subr.mxu0 0.0
  %4026 = vmatpush1.msra.mxu0 %v3967
  %4027 = vmatprep.subr.mxu0 0.0
  %4028 = vmatpush1.msra.mxu0 %v3968
  %4029 = vmatprep.subr.mxu0 0.0
  %4030 = vmatpush1.msra.mxu0 %v3969
  %4031 = vmatprep.subr.mxu0 0.0
  %4032 = vmatpush1.msra.mxu0 %v3970
  %4033 = vmatprep.subr.mxu0 0.0
  %4034 = vmatpush1.msra.mxu0 %v3971
  %4035 = vmatprep.subr.mxu0 0.0
  %4036 = vmatpush1.msra.mxu0 %v3972
  %4037 = vmatprep.mubr.f32.mxu0 %v3938
  %4038 = vmatmul.mubr.f32.gmra.mrb[0].mxu0 %v3937
  %v4039 = vpop.f32.mrb[0].mxu0
  %v4040 = vadd.f32 0.0, %v4039
  %v4041 = vpop.f32.mrb[0].mxu0
  %4042 = vmatprep.mubr.f32.mxu0 %v3940
  %4043 = vmatmul.mubr.f32.gmra.mrb[0].mxu0 %v3939
  %v4044 = vpop.f32.mrb[0].mxu0
  %v4045 = vadd.f32 0.0, %v4044
  %v4046 = vpop.f32.mrb[0].mxu0
  %4047 = vdwg.mxu0
  %v4048 = vpack.c.bf16 %v4045, %v4040
  %v4049 = vld [vmem:[%s8] sm:$0xf]
  %v4050 = vld [vmem:[%s8 + $0x4] sm:$0xf]
  %v4051 = vld [vmem:[%s8 + $0x8] sm:$0xf]
  %v4052 = vld [vmem:[%s8 + $0xc] sm:$0xf]
  %v4053 = vld [vmem:[%s8 + $0x10] sm:$0xf]
  %v4054 = vld [vmem:[%s8 + $0x14] sm:$0xf]
  %v4055 = vld [vmem:[%s8 + $0x18] sm:$0xf]
  %v4056 = vld [vmem:[%s8 + $0x1c] sm:$0xf]
  %v4057 = vld [vmem:[%s8 + $0x20] sm:$0xf]
  %v4058 = vld [vmem:[%s8 + $0x24] sm:$0xf]
  %v4059 = vld [vmem:[%s8 + $0x28] sm:$0xf]
  %v4060 = vld [vmem:[%s8 + $0x2c] sm:$0xf]
  %v4061 = vld [vmem:[%s8 + $0x30] sm:$0xf]
  %v4062 = vld [vmem:[%s8 + $0x34] sm:$0xf]
  %v4063 = vld [vmem:[%s8 + $0x38] sm:$0xf]
  %v4064 = vld [vmem:[%s8 + $0x3c] sm:$0xf]
  %v4065 = vld [vmem:[%s9] sm:$0x1]
  %v4067 = vlaneseq
  %v4068 = vshrl.u32 %v4067, 7
  %v4069 = vsub.s32 0, %v4068
  %v4070 = vrot.slane %v4065, %v4069
  %v4088 = vunpack.c.l.b16 %v4049
  %v4089 = vunpack.c.l.b16 %v4050
  %v4090 = vunpack.c.l.b16 %v4051
  %v4091 = vunpack.c.l.b16 %v4052
  %v4092 = vunpack.c.l.b16 %v4053
  %v4093 = vunpack.c.l.b16 %v4054
  %v4094 = vunpack.c.l.b16 %v4055
  %v4095 = vunpack.c.l.b16 %v4056
  %v4096 = vunpack.c.l.b16 %v4057
  %v4097 = vunpack.c.l.b16 %v4058
  %v4098 = vunpack.c.l.b16 %v4059
  %v4099 = vunpack.c.l.b16 %v4060
  %v4100 = vunpack.c.l.b16 %v4061
  %v4101 = vunpack.c.l.b16 %v4062
  %v4102 = vunpack.c.l.b16 %v4063
  %v4103 = vunpack.c.l.b16 %v4064
  %v4104 = vpack.c.b16 %v4089, %v4088
  %v4105 = vpack.c.b16 %v4091, %v4090
  %v4106 = vpack.c.b16 %v4093, %v4092
  %v4107 = vpack.c.b16 %v4095, %v4094
  %v4108 = vpack.c.b16 %v4097, %v4096
  %v4109 = vpack.c.b16 %v4099, %v4098
  %v4110 = vpack.c.b16 %v4101, %v4100
  %v4111 = vpack.c.b16 %v4103, %v4102
  %4120 = vmatprep.subr.bf16.mxu0 0
  %4121 = vmatpush1.bf16.msra.mxu0 %v4104
  %4122 = vmatprep.subr.bf16.mxu0 0
  %4123 = vmatpush1.bf16.msra.mxu0 %v4105
  %4124 = vmatprep.subr.bf16.mxu0 0
  %4125 = vmatpush1.bf16.msra.mxu0 %v4106
  %4126 = vmatprep.subr.bf16.mxu0 0
  %4127 = vmatpush1.bf16.msra.mxu0 %v4107
  %4128 = vmatprep.subr.bf16.mxu0 0
  %4129 = vmatpush1.bf16.msra.mxu0 %v4108
  %4130 = vmatprep.subr.bf16.mxu0 0
  %4131 = vmatpush1.bf16.msra.mxu0 %v4109
  %4132 = vmatprep.subr.bf16.mxu0 0
  %4133 = vmatpush1.bf16.msra.mxu0 %v4110
  %4134 = vmatprep.subr.bf16.mxu0 0
  %4135 = vmatpush1.bf16.msra.mxu0 %v4111
  %4136 = vmatprep.subr.bf16.mxu0 0
  %4137 = vmatpush1.bf16.msra.mxu0 0
  %4138 = vmatprep.subr.bf16.mxu0 0
  %4139 = vmatpush1.bf16.msra.mxu0 0
  %4140 = vmatprep.subr.bf16.mxu0 0
  %4141 = vmatpush1.bf16.msra.mxu0 0
  %4142 = vmatprep.subr.bf16.mxu0 0
  %4143 = vmatpush1.bf16.msra.mxu0 0
  %4144 = vmatprep.subr.bf16.mxu0 0
  %4145 = vmatpush1.bf16.msra.mxu0 0
  %4146 = vmatprep.subr.bf16.mxu0 0
  %4147 = vmatpush1.bf16.msra.mxu0 0
  %4148 = vmatprep.subr.bf16.mxu0 0
  %4149 = vmatpush1.bf16.msra.mxu0 0
  %4150 = vmatprep.subr.bf16.mxu0 0
  %4151 = vmatpush1.bf16.msra.mxu0 0
  %4152 = vmatprep.mubr.bf16.mxu0 0
  %4153 = vmatmul.mubr.bf16.gmra.mrb[0].mxu0 %v4048
  %v4154 = vpop.f32.mrb[0].mxu0
  %v4155 = vadd.f32 %v4070, %v4154
  %v4156 = vpop.f32.mrb[0].mxu0
  %v4157 = vpop.f32.mrb[0].mxu0
  %v4158 = vadd.f32 %v4070, %v4157
  %v4159 = vpop.f32.mrb[0].mxu0
  %4160 = vdwg.mxu0
  %4161 = vst [vmem:[%s10] sm:$0xff] %v4155
  %4162 = vst [vmem:[%s10 + $0x8] sm:$0xff] %v4158
  // Predicated region
  $region42: #{ssm_synaptic_delay.1} parent=0 // pred_check
    _
  $region43: #{ssm_synaptic_delay.1} parent=0 // pred_check_branch
    %4164 = sbr.rel (0) target = $region45
  $region44: #{ssm_synaptic_delay.1} parent=0 // pred_region
    _
  $region45: #{ssm_synaptic_delay.1} parent=0 // pred_fallthru
    _
  // Predicated region
  $region46: #{ssm_synaptic_delay.1} parent=0 // pred_check
    _
  $region47: #{ssm_synaptic_delay.1} parent=0 // pred_check_branch
    %4166 = sbr.rel (0) target = $region49
  $region48: #{ssm_synaptic_delay.1} parent=0 // pred_region
    _
  $region49: #{ssm_synaptic_delay.1} parent=0 // pred_fallthru
    _

</llo_original>
